<compile_context>
chip_gen: v7x
topology: tpu7x:2x2x1
jax: 0.10.0
libtpu: 0.0.40
codegen_flags: <defaults>
</compile_context>

<pallas_src>
import jax
import jax.numpy as jnp
from jax.experimental import pallas as pl
from jax.experimental.pallas import tpu as pltpu


# ----------------------------------------------------------------------------
# Pallas kernels
# ----------------------------------------------------------------------------
def attention_branch_fused_kernel(patch_ref, w_pre_ref, w_post_ref, pack_ref,
                                  s_mat_ref, scal_ref,
                                  out_ref, vis_ref, att_ref):
    """attention_branch forward for ONE (branch, batch) grid item, VMEM-resident.

    pack_ref rows: 0=b_pre(256) 1=folded extractor weight(256)
                   2=folded post bias(512) 3=lin_w(2) 4=lin_b(2)
    scal_ref[b]:   0=folded extractor bias 1,2=folded (1x1 conv ∘ BN1) affine
    """
    b = pl.program_id(0)

    # resnet_pre stand-in: 16x16/stride-16 conv 3->256 as (196,768)@(768,256)
    # bf16 MXU matmul with f32 accumulation.
    x = jnp.dot(patch_ref[...], w_pre_ref[...],
                preferred_element_type=jnp.float32) + pack_ref[0:1, 0:256]   # (196,256)

    # extractor = BatchNorm2d(256) -> Conv2d(256,1,1); BN folded into the conv.
    # 256->1 conv = lane reduction (VPU/XLU), not a 1-column MXU matmul.
    s = jnp.sum(x * pack_ref[1:2, 0:256], axis=-1, keepdims=True) \
        + scal_ref[b, 0]                                                     # (196,1)

    # attentionbranch2attentionmechanism = ReLU -> [Conv2d(1,1,1) ∘ BN2d(1)]
    # folded affine -> Sigmoid (stable sigmoid via EUP tanh).
    t = jnp.maximum(s, 0.0) * scal_ref[b, 1] + scal_ref[b, 2]
    att_map = 0.5 * (jnp.tanh(0.5 * t) + 1.0)                                # (196,1)
    vis_ref[...] = att_map                       # visualization_att_map

    # h = att * identity + identity
    hatt = att_map * x + x                                                   # (196,256)

    # attentionbranch2classifier = AvgPool2d(14) -> Linear(1,2) -> Softmax(dim=3)
    m = jnp.mean(s, keepdims=True)                                           # (1,1)
    logits = m * pack_ref[3:4, 0:2] + pack_ref[4:5, 0:2]                     # (1,2)
    e = jnp.exp(logits - jnp.max(logits, axis=-1, keepdims=True))
    att_ref[...] = e * pl.reciprocal(jnp.sum(e, axis=-1, keepdims=True),
                                     approx=True)

    # perception_branch = resnet_post stand-in (2x2/stride-2 conv 256->512)
    #                     -> AvgPool2d(7) -> Flatten -> BatchNorm1d(512)
    # Collapsed by linearity to: (S @ hatt).reshape(1,1024) @ W_post' + b'
    # with BN1d(512) folded into W_post'/b'.  S is a constant (4,196)
    # per-offset averaging matrix -> one small MXU matmul instead of 4 masked
    # VPU passes.
    mean4 = jnp.dot(s_mat_ref[...], hatt.astype(jnp.bfloat16),
                    preferred_element_type=jnp.float32)                      # (4,256)
    mean_patch = jnp.concatenate(
        [mean4[0:1], mean4[1:2], mean4[2:3], mean4[3:4]], axis=-1)           # (1,1024)
    pooled = jnp.dot(mean_patch.astype(jnp.bfloat16), w_post_ref[...],
                     preferred_element_type=jnp.float32) + pack_ref[2:3, :]  # (1,512)
    out_ref[...] = pooled.astype(out_ref.dtype)   # bf16: feeds parception directly


def parception_branch_kernel(x_ref, w12_ref, wbal_ref, wp1_ref, wp23_ref,
                             pack_ref, y_ref):
    """parception_branch: pack_ref rows 0=[b21|b22] 1=bbal_cat 2=[v_r|v_d]
    3=folded bp1 4=folded bp23."""
    h_rgb = jnp.dot(x_ref[0], w12_ref[0],
                    preferred_element_type=jnp.float32) + pack_ref[0:1, 0:256]
    h_dep = jnp.dot(x_ref[1], w12_ref[1],
                    preferred_element_type=jnp.float32) + pack_ref[0:1, 256:512]
    n = h_rgb.shape[0]

    # balancing(x) = tanh(x @ W + b) @ v ; rgb/depth stacked into ONE matmul.
    hcat = jnp.concatenate([h_rgb, h_dep], axis=0).astype(jnp.bfloat16)      # (2N,256)
    tcat = jnp.tanh(jnp.dot(hcat, wbal_ref[...],
                            preferred_element_type=jnp.float32)
                    + pack_ref[1:2, :])                                      # (2N,512)
    e_rgb = jnp.sum(tcat[:n, 0:256] * pack_ref[2:3, 0:256],
                    axis=-1, keepdims=True)                                  # (N,1)
    e_dep = jnp.sum(tcat[n:, 256:512] * pack_ref[2:3, 256:512],
                    axis=-1, keepdims=True)                                  # (N,1)

    er = jnp.exp(e_rgb)
    ed = jnp.exp(e_dep)
    inv = pl.reciprocal(er + ed, approx=True)
    balanced = (er * inv) * h_rgb + (ed * inv) * h_dep                       # (N,256)

    # parception1 = [BN1d(256) folded into] Linear(256,256) -> ReLU
    #               -> [Linear(256,16)->Linear(16,2) folded] -> Softmax(dim=1)
    z = jnp.maximum(
        jnp.dot(balanced.astype(jnp.bfloat16), wp1_ref[...],
                preferred_element_type=jnp.float32) + pack_ref[3:4, 0:256],
        0.0)
    logits = jnp.dot(z, wp23_ref[...],
                     preferred_element_type=jnp.float32) + pack_ref[4:5, 0:2]
    e = jnp.exp(logits - jnp.max(logits, axis=-1, keepdims=True))
    y_ref[...] = e * pl.reciprocal(jnp.sum(e, axis=-1, keepdims=True),
                                   approx=True)


# ----------------------------------------------------------------------------
# Plain-JAX glue
# ----------------------------------------------------------------------------
def _im2col_16_nhwc(x):
    """(M,224,224,C) NHWC -> (M,196,256*C): 16x16 patches, stride 16."""
    m, c = x.shape[0], x.shape[3]
    x = x.reshape(m, 14, 16, 14, 16, c)
    x = x.transpose(0, 1, 3, 2, 4, 5)                  # (M,14,14,16,16,C)
    return x.reshape(m, 196, 16 * 16 * c)


def ponnet_forward(plan, input_rgb, input_depth, input_meta):
    del input_meta  # unused by the reference forward (NO-meta variant)
    n = input_rgb.shape[0]

    # nn.Upsample([224,224], bilinear, align_corners=False), rgb+depth batched.
    # Cast to bf16 BEFORE the big im2col transpose to halve its HBM traffic.
    # TODO(synk): the upsample+im2col could be moved inside the kernel via a
    # precomputed interpolation matrix to avoid the 224x224 HBM round trip.
    x_small = jnp.stack([input_rgb, input_depth], axis=0)            # (2,N,3,16,16)
    x_small = jnp.transpose(x_small, (0, 1, 3, 4, 2)).reshape(2 * n, 16, 16, 3)
    x224 = jax.image.resize(x_small, (2 * n, 224, 224, 3), method='bilinear')
    patches = _im2col_16_nhwc(x224.astype(jnp.bfloat16)).reshape(2, n, 196, 768)

    # Both attention branches in ONE pallas_call, grid=(branch, batch).
    out, vis, att = pl.pallas_call(
        attention_branch_fused_kernel,
        out_shape=(jax.ShapeDtypeStruct((2, n, 1, 512), jnp.bfloat16),
                   jax.ShapeDtypeStruct((2, n, 196, 1), jnp.float32),
                   jax.ShapeDtypeStruct((2, n, 1, 2), jnp.float32)),
        grid=(2, n),
        in_specs=[
            pl.BlockSpec((None, None, 196, 768), lambda b, i: (b, i, 0, 0)),
            pl.BlockSpec((None, 768, 256), lambda b, i: (b, 0, 0)),
            pl.BlockSpec((None, 1024, 512), lambda b, i: (b, 0, 0)),
            pl.BlockSpec((None, 5, 512), lambda b, i: (b, 0, 0)),
            pl.BlockSpec((4, 196), lambda b, i: (0, 0)),
            pl.BlockSpec(memory_space=pltpu.MemorySpace.SMEM),
        ],
        out_specs=(
            pl.BlockSpec((None, None, 1, 512), lambda b, i: (b, i, 0, 0)),
            pl.BlockSpec((None, None, 196, 1), lambda b, i: (b, i, 0, 0)),
            pl.BlockSpec((None, None, 1, 2), lambda b, i: (b, i, 0, 0)),
        ),
        compiler_params=pltpu.CompilerParams(
            dimension_semantics=("parallel", "parallel")),
    )(patches, plan['w_pre'], plan['w_post'], plan['pack_att'],
      plan['s_mat'], plan['scal_att'])

    x_feat = out.reshape(2, n, 512)          # bf16 attention features (rgb, depth)

    parception_out = pl.pallas_call(
        parception_branch_kernel,
        out_shape=jax.ShapeDtypeStruct((n, 2), jnp.float32),
        in_specs=[pl.BlockSpec(memory_space=pltpu.MemorySpace.VMEM)
                  for _ in range(6)],
        out_specs=pl.BlockSpec(memory_space=pltpu.MemorySpace.VMEM),
    )(x_feat, plan['w12'], plan['wbal'], plan['wp1'], plan['wp23'],
      plan['pack_p'])

    # PyTorch's .squeeze() would also drop the batch axis when N == 1; use
    # explicit indexing so the result is always (N, 2).
    rgb_att_outputs = att[0, :, 0, :]
    depth_att_outputs = att[1, :, 0, :]
    rgb_visual = vis[0].reshape(n, 1, 14, 14)
    dep_visual = vis[1].reshape(n, 1, 14, 14)
    return ([rgb_att_outputs, depth_att_outputs],
            [parception_out],
            [rgb_visual, dep_visual])


# ----------------------------------------------------------------------------
# Offline parameter preparation (folds BNs, packs small operands, casts bf16).
# Called ONCE outside jit so no per-forward cast/fold cost.
# ----------------------------------------------------------------------------
def _prepare_branch(bp):
    # Fold BatchNorm2d(256) into the 256->1 extractor conv.
    w_ext_f = (bp['bn256_s'] * bp['w_ext'])[0]                       # (256,)
    b_ext_f = bp['b_ext'] + jnp.sum(bp['bn256_h'] * bp['w_ext'])
    # Fold Conv2d(1,1,1) + BatchNorm2d(1) into one scalar affine.
    w_am = bp['w_att'] * bp['bn1_s']
    b_am = bp['b_att'] * bp['bn1_s'] + bp['bn1_h']
    # Fold BatchNorm1d(512) into the resnet_post stand-in matmul.
    w_post_f = (bp['w_post'] * bp['bn512_s']).astype(jnp.bfloat16)   # (1024,512)
    b_post_f = (bp['b_post'] * bp['bn512_s'] + bp['bn512_h'])[0]     # (512,)

    pack = jnp.zeros((5, 512), jnp.float32)
    pack = pack.at[0, 0:256].set(bp['b_pre'][0])
    pack = pack.at[1, 0:256].set(w_ext_f)
    pack = pack.at[2, :].set(b_post_f)
    pack = pack.at[3, 0:2].set(bp['lin_w'][0])
    pack = pack.at[4, 0:2].set(bp['lin_b'][0])
    scal = jnp.zeros((8,), jnp.float32)
    scal = scal.at[0].set(b_ext_f).at[1].set(w_am).at[2].set(b_am)
    return bp['w_pre'].astype(jnp.bfloat16), w_post_f, pack, scal


def prepare_params(params):
    wpre_r, wpost_r, pack_r, scal_r = _prepare_branch(params['rgb_branch'])
    wpre_d, wpost_d, pack_d, scal_d = _prepare_branch(params['depth_branch'])

    # Constant (4,196) averaging matrix: offset (di,dj) strided mean, 1/49 each.
    pos = jnp.arange(196)
    ri = (pos // 14) % 2
    ci = (pos % 14) % 2
    off = jnp.arange(4)
    sel = (ri[None, :] == (off // 2)[:, None]) & (ci[None, :] == (off % 2)[:, None])
    s_mat = jnp.where(sel, 1.0 / 49.0, 0.0).astype(jnp.bfloat16)     # (4,196)

    pp = params['perception']
    # Stack the two Linear(512,256) weights; concat balancing weights along N.
    w12 = jnp.stack([pp['w21'], pp['w22']]).astype(jnp.bfloat16)     # (2,512,256)
    wbal = jnp.concatenate([pp['wbal_r'], pp['wbal_d']],
                           axis=1).astype(jnp.bfloat16)              # (256,512)
    # Fold BatchNorm1d(256) into Linear(256,256).
    wp1_f = jnp.transpose(pp['bn256_s']) * pp['wp1']                 # (256,256)
    bp1_f = pp['bp1'] + jnp.dot(pp['bn256_h'], pp['wp1'])            # (1,256)
    # Fold Linear(256,16) -> Linear(16,2) (no nonlinearity in between).
    wp23 = jnp.dot(pp['wp2'], pp['wp3'])                             # (256,2)
    bp23 = jnp.dot(pp['bp2'], pp['wp3']) + pp['bp3']                 # (1,2)

    pack_p = jnp.zeros((5, 512), jnp.float32)
    pack_p = pack_p.at[0, 0:256].set(pp['b21'][0])
    pack_p = pack_p.at[0, 256:512].set(pp['b22'][0])
    pack_p = pack_p.at[1, 0:256].set(pp['bbal_r'][0])
    pack_p = pack_p.at[1, 256:512].set(pp['bbal_d'][0])
    pack_p = pack_p.at[2, 0:256].set(pp['vbal_r'][0])
    pack_p = pack_p.at[2, 256:512].set(pp['vbal_d'][0])
    pack_p = pack_p.at[3, 0:256].set(bp1_f[0])
    pack_p = pack_p.at[4, 0:2].set(bp23[0])

    return dict(
        w_pre=jnp.stack([wpre_r, wpre_d]),            # (2,768,256)  bf16
        w_post=jnp.stack([wpost_r, wpost_d]),         # (2,1024,512) bf16
        pack_att=jnp.stack([pack_r, pack_d]),         # (2,5,512)    f32
        scal_att=jnp.stack([scal_r, scal_d]),         # (2,8)        f32 (SMEM)
        s_mat=s_mat,                                  # (4,196)      bf16
        w12=w12, wbal=wbal,
        wp1=wp1_f.astype(jnp.bfloat16),               # (256,256)    bf16
        wp23=wp23,                                    # (256,2)      f32
        pack_p=pack_p,                                # (5,512)      f32
    )


# ----------------------------------------------------------------------------
# Deterministic parameter initialization (synthetic, shapes from __init__)
# ----------------------------------------------------------------------------
def _nrm(key, shape, scale=0.05):
    return scale * jax.random.normal(key, shape, jnp.float32)


def _fold_bn(key, n, eps=1e-5):
    k1, k2, k3, k4 = jax.random.split(key, 4)
    gamma = 1.0 + 0.1 * jax.random.normal(k1, (n,), jnp.float32)
    beta = 0.05 * jax.random.normal(k2, (n,), jnp.float32)
    mean = 0.1 * jax.random.normal(k3, (n,), jnp.float32)
    var = 0.5 + jax.random.uniform(k4, (n,), jnp.float32)
    scale = gamma / jnp.sqrt(var + eps)
    shift = beta - mean * scale
    return scale.reshape(1, n), shift.reshape(1, n)


def init_attention_branch_params(key):
    ks = jax.random.split(key, 12)
    bn256_s, bn256_h = _fold_bn(ks[0], 256)
    bn1_s, bn1_h = _fold_bn(ks[1], 1)
    bn512_s, bn512_h = _fold_bn(ks[2], 512)
    return dict(
        w_pre=_nrm(ks[9], (768, 256)), b_pre=_nrm(ks[10], (1, 256), 0.01),
        bn256_s=bn256_s, bn256_h=bn256_h,
        w_ext=_nrm(ks[3], (1, 256), 0.1),     # extractor conv weight as a row
        b_ext=0.1 * jax.random.normal(ks[4], (), jnp.float32),
        w_att=1.0 + 0.1 * jax.random.normal(ks[5], (), jnp.float32),
        b_att=0.1 * jax.random.normal(ks[6], (), jnp.float32),
        bn1_s=bn1_s[0, 0], bn1_h=bn1_h[0, 0],
        lin_w=_nrm(ks[7], (1, 2), 0.5), lin_b=_nrm(ks[8], (1, 2), 0.1),
        w_post=_nrm(ks[11], (1024, 512)), b_post=jnp.zeros((1, 512), jnp.float32),
        bn512_s=bn512_s, bn512_h=bn512_h,
    )


def init_parception_params(key):
    ks = jax.random.split(key, 14)
    bn256_s, bn256_h = _fold_bn(ks[0], 256)
    return dict(
        w21=_nrm(ks[1], (512, 256)), b21=jnp.zeros((1, 256), jnp.float32),
        w22=_nrm(ks[2], (512, 256)), b22=jnp.zeros((1, 256), jnp.float32),
        wbal_r=_nrm(ks[3], (256, 256)), bbal_r=_nrm(ks[4], (1, 256), 0.01),
        vbal_r=_nrm(ks[5], (1, 256), 0.1),
        wbal_d=_nrm(ks[6], (256, 256)), bbal_d=_nrm(ks[7], (1, 256), 0.01),
        vbal_d=_nrm(ks[8], (1, 256), 0.1),
        bn256_s=bn256_s, bn256_h=bn256_h,
        wp1=_nrm(ks[9], (256, 256)), bp1=_nrm(ks[10], (1, 256), 0.01),
        wp2=_nrm(ks[11], (256, 16)), bp2=jnp.zeros((1, 16), jnp.float32),
        wp3=_nrm(ks[12], (16, 2)), bp3=jnp.zeros((1, 2), jnp.float32),
    )


# ----------------------------------------------------------------------------
# Main
# ----------------------------------------------------------------------------
if __name__ == "__main__":
    key = jax.random.PRNGKey(0)
    kp, kr, kd, km = jax.random.split(key, 4)
    kb1, kb2, kpc = jax.random.split(kp, 3)

    params = {
        'rgb_branch': init_attention_branch_params(kb1),
        'depth_branch': init_attention_branch_params(kb2),
        'perception': init_parception_params(kpc),
    }
    plan = prepare_params(params)   # fold / pack / bf16-cast ONCE, outside jit

    # Small NCHW inputs; ponnet upsamples them to 224x224 internally.
    input_rgb = jax.random.normal(kr, (2, 3, 16, 16), jnp.float32)
    input_depth = jax.random.normal(kd, (2, 3, 16, 16), jnp.float32)
    input_meta = jax.random.normal(km, (2, 8), jnp.float32)  # unused (NO-meta)

    fwd = jax.jit(ponnet_forward)
    out = fwd(plan, input_rgb, input_depth, input_meta)
    out = jax.block_until_ready(out)

    (att_list, perc_list, vis_list) = out
    assert att_list[0].shape == (2, 2) and att_list[1].shape == (2, 2)
    assert perc_list[0].shape == (2, 2)
    assert vis_list[0].shape == (2, 1, 14, 14) and vis_list[1].shape == (2, 1, 14, 14)
    assert bool(jnp.all(jnp.isfinite(perc_list[0])))
    assert bool(jnp.all(jnp.isfinite(att_list[0]))) and bool(jnp.all(jnp.isfinite(att_list[1])))
    assert bool(jnp.all(jnp.isfinite(vis_list[0]))) and bool(jnp.all(jnp.isfinite(vis_list[1])))

    print("KERNEL_OK")
</pallas_src>

<mosaic_0001>
module attributes {stable_mosaic.version = 11 : i64} {
  func.func @attention_branch_fused_kernel(%arg0: i32, %arg1: i32, %arg2: memref<1x1x196x768xbf16, #tpu.memory_space<vmem>>, %arg3: memref<1x768x256xbf16, #tpu.memory_space<vmem>>, %arg4: memref<1x1024x512xbf16, #tpu.memory_space<vmem>>, %arg5: memref<1x5x512xf32, #tpu.memory_space<vmem>>, %arg6: memref<4x196xbf16, #tpu.memory_space<vmem>>, %arg7: memref<2x8xf32, #tpu.memory_space<smem>>, %arg8: memref<1x1x1x512xbf16, #tpu.memory_space<vmem>>, %arg9: memref<1x1x196x1xf32, #tpu.memory_space<vmem>>, %arg10: memref<1x1x1x2xf32, #tpu.memory_space<vmem>>) attributes {dimension_semantics = [#tpu.dimension_semantics<parallel>, #tpu.dimension_semantics<parallel>], iteration_bounds = array<i64: 2, 2>, scalar_prefetch = 0 : i64, scratch_operands = 0 : i64, tpu.core_type = #tpu.core_type<tc>, window_params = [{transform_indices = @transform_0, window_bounds = array<i64: 1, 1, 196, 768>}, {transform_indices = @transform_1, window_bounds = array<i64: 1, 768, 256>}, {transform_indices = @transform_2, window_bounds = array<i64: 1, 1024, 512>}, {transform_indices = @transform_3, window_bounds = array<i64: 1, 5, 512>}, {pipeline_mode = #tpu.pipeline_mode<synchronous>, transform_indices = @transform_4, window_bounds = array<i64: 4, 196>}, {transform_indices = @transform_5, window_bounds = array<i64: 2, 8>}, {transform_indices = @transform_6, window_bounds = array<i64: 1, 1, 1, 512>}, {transform_indices = @transform_7, window_bounds = array<i64: 1, 1, 196, 1>}, {transform_indices = @transform_8, window_bounds = array<i64: 1, 1, 1, 2>}]} {
    %c0 = arith.constant 0 : index
    %c0_0 = arith.constant 0 : index
    %c0_1 = arith.constant 0 : index
    %c0_2 = arith.constant 0 : index
    %0 = vector.load %arg2[%c0, %c0_0, %c0_1, %c0_2] : memref<1x1x196x768xbf16, #tpu.memory_space<vmem>>, vector<1x1x196x768xbf16>
    %1 = vector.shape_cast %0 : vector<1x1x196x768xbf16> to vector<196x768xbf16>
    %c0_3 = arith.constant 0 : index
    %c0_4 = arith.constant 0 : index
    %c0_5 = arith.constant 0 : index
    %2 = vector.load %arg3[%c0_3, %c0_4, %c0_5] : memref<1x768x256xbf16, #tpu.memory_space<vmem>>, vector<1x768x256xbf16>
    %3 = vector.shape_cast %2 : vector<1x768x256xbf16> to vector<768x256xbf16>
    %cst = arith.constant dense<0.000000e+00> : vector<196x256xf32>
    %4 = tpu.matmul %1, %3, %cst {dimension_numbers = #tpu.dot_dimension_numbers<[1], [0], [0], [1], [0, 0, 1, 1], [], []>} : vector<196x768xbf16>, vector<768x256xbf16>, vector<196x256xf32> -> vector<196x256xf32>
    %c0_6 = arith.constant 0 : index
    %c0_7 = arith.constant 0 : index
    %c0_8 = arith.constant 0 : index
    %5 = vector.load %arg5[%c0_6, %c0_7, %c0_8] : memref<1x5x512xf32, #tpu.memory_space<vmem>>, vector<1x1x256xf32>
    %6 = vector.shape_cast %5 : vector<1x1x256xf32> to vector<1x256xf32>
    %7 = vector.broadcast %6 : vector<1x256xf32> to vector<196x256xf32>
    %8 = arith.addf %4, %7 : vector<196x256xf32>
    %c0_9 = arith.constant 0 : index
    %c1 = arith.constant 1 : index
    %c0_10 = arith.constant 0 : index
    %9 = vector.load %arg5[%c0_9, %c1, %c0_10] : memref<1x5x512xf32, #tpu.memory_space<vmem>>, vector<1x1x256xf32>
    %10 = vector.shape_cast %9 : vector<1x1x256xf32> to vector<1x256xf32>
    %11 = vector.broadcast %10 : vector<1x256xf32> to vector<196x256xf32>
    %12 = arith.mulf %8, %11 : vector<196x256xf32>
    %cst_11 = arith.constant dense<0.000000e+00> : vector<196xf32>
    %13 = vector.multi_reduction <add>, %12, %cst_11 [1] : vector<196x256xf32> to vector<196xf32>
    %14 = vector.shape_cast %13 : vector<196xf32> to vector<196x1xf32>
    %15 = arith.index_cast %arg0 : i32 to index
    %c0_12 = arith.constant 0 : index
    %16 = memref.load %arg7[%15, %c0_12] : memref<2x8xf32, #tpu.memory_space<smem>>
    %17 = vector.broadcast %16 : f32 to vector<196x1xf32>
    %18 = arith.addf %14, %17 : vector<196x1xf32>
    %cst_13 = arith.constant 0.000000e+00 : f32
    %19 = vector.broadcast %cst_13 : f32 to vector<196x1xf32>
    %20 = arith.maximumf %18, %19 : vector<196x1xf32>
    %21 = arith.index_cast %arg0 : i32 to index
    %c1_14 = arith.constant 1 : index
    %22 = memref.load %arg7[%21, %c1_14] : memref<2x8xf32, #tpu.memory_space<smem>>
    %23 = vector.broadcast %22 : f32 to vector<196x1xf32>
    %24 = arith.mulf %20, %23 : vector<196x1xf32>
    %25 = arith.index_cast %arg0 : i32 to index
    %c2 = arith.constant 2 : index
    %26 = memref.load %arg7[%25, %c2] : memref<2x8xf32, #tpu.memory_space<smem>>
    %27 = vector.broadcast %26 : f32 to vector<196x1xf32>
    %28 = arith.addf %24, %27 : vector<196x1xf32>
    %cst_15 = arith.constant 5.000000e-01 : f32
    %29 = vector.broadcast %cst_15 : f32 to vector<196x1xf32>
    %30 = arith.mulf %29, %28 : vector<196x1xf32>
    %31 = math.tanh %30 : vector<196x1xf32>
    %cst_16 = arith.constant 1.000000e+00 : f32
    %32 = vector.broadcast %cst_16 : f32 to vector<196x1xf32>
    %33 = arith.addf %31, %32 : vector<196x1xf32>
    %cst_17 = arith.constant 5.000000e-01 : f32
    %34 = vector.broadcast %cst_17 : f32 to vector<196x1xf32>
    %35 = arith.mulf %34, %33 : vector<196x1xf32>
    %c0_18 = arith.constant 0 : index
    %c0_19 = arith.constant 0 : index
    %c0_20 = arith.constant 0 : index
    %c0_21 = arith.constant 0 : index
    %36 = vector.load %arg9[%c0_18, %c0_19, %c0_20, %c0_21] : memref<1x1x196x1xf32, #tpu.memory_space<vmem>>, vector<1x1x196x1xf32>
    %37 = vector.shape_cast %36 : vector<1x1x196x1xf32> to vector<196x1xf32>
    %38 = vector.shape_cast %35 : vector<196x1xf32> to vector<1x1x196x1xf32>
    tpu.vector_store %arg9[%c0_18, %c0_19, %c0_20, %c0_21], %38 {strides = array<i32>} : memref<1x1x196x1xf32, #tpu.memory_space<vmem>>, vector<1x1x196x1xf32>,
    %39 = vector.broadcast %35 : vector<196x1xf32> to vector<196x256xf32>
    %40 = arith.mulf %39, %8 : vector<196x256xf32>
    %41 = arith.addf %40, %8 : vector<196x256xf32>
    %42 = vector.shape_cast %18 : vector<196x1xf32> to vector<1x196x1xf32>
    %cst_22 = arith.constant dense<0.000000e+00> : vector<1xf32>
    %43 = vector.multi_reduction <add>, %42, %cst_22 [1, 2] : vector<1x196x1xf32> to vector<1xf32>
    %44 = vector.shape_cast %43 : vector<1xf32> to vector<1x1x1xf32>
    %45 = vector.extract %44[0, 0, 0] : f32 from vector<1x1x1xf32>
    %46 = vector.broadcast %45 : f32 to vector<1x1xf32>
    %cst_23 = arith.constant 1.960000e+02 : f32
    %47 = vector.broadcast %cst_23 : f32 to vector<1x1xf32>
    %48 = arith.divf %46, %47 : vector<1x1xf32>
    %c0_24 = arith.constant 0 : index
    %c3 = arith.constant 3 : index
    %c0_25 = arith.constant 0 : index
    %49 = vector.load %arg5[%c0_24, %c3, %c0_25] : memref<1x5x512xf32, #tpu.memory_space<vmem>>, vector<1x1x2xf32>
    %50 = vector.shape_cast %49 : vector<1x1x2xf32> to vector<1x2xf32>
    %51 = vector.broadcast %48 : vector<1x1xf32> to vector<1x2xf32>
    %52 = arith.mulf %51, %50 : vector<1x2xf32>
    %c0_26 = arith.constant 0 : index
    %c4 = arith.constant 4 : index
    %c0_27 = arith.constant 0 : index
    %53 = vector.load %arg5[%c0_26, %c4, %c0_27] : memref<1x5x512xf32, #tpu.memory_space<vmem>>, vector<1x1x2xf32>
    %54 = vector.shape_cast %53 : vector<1x1x2xf32> to vector<1x2xf32>
    %55 = arith.addf %52, %54 : vector<1x2xf32>
    %cst_28 = arith.constant dense<0xFF800000> : vector<1xf32>
    %56 = vector.multi_reduction <maximumf>, %55, %cst_28 [1] : vector<1x2xf32> to vector<1xf32>
    %57 = vector.shape_cast %56 : vector<1xf32> to vector<1x1xf32>
    %58 = vector.broadcast %57 : vector<1x1xf32> to vector<1x2xf32>
    %59 = arith.subf %55, %58 : vector<1x2xf32>
    %60 = math.exp %59 : vector<1x2xf32>
    %cst_29 = arith.constant dense<0.000000e+00> : vector<1xf32>
    %61 = vector.multi_reduction <add>, %60, %cst_29 [1] : vector<1x2xf32> to vector<1xf32>
    %62 = vector.shape_cast %61 : vector<1xf32> to vector<1x1xf32>
    %63 = tpu.reciprocal %62 {approx = true} : vector<1x1xf32> -> vector<1x1xf32>
    %64 = vector.broadcast %63 : vector<1x1xf32> to vector<1x2xf32>
    %65 = arith.mulf %60, %64 : vector<1x2xf32>
    %c0_30 = arith.constant 0 : index
    %c0_31 = arith.constant 0 : index
    %c0_32 = arith.constant 0 : index
    %c0_33 = arith.constant 0 : index
    %66 = vector.load %arg10[%c0_30, %c0_31, %c0_32, %c0_33] : memref<1x1x1x2xf32, #tpu.memory_space<vmem>>, vector<1x1x1x2xf32>
    %67 = vector.shape_cast %66 : vector<1x1x1x2xf32> to vector<1x2xf32>
    %68 = vector.shape_cast %65 : vector<1x2xf32> to vector<1x1x1x2xf32>
    tpu.vector_store %arg10[%c0_30, %c0_31, %c0_32, %c0_33], %68 {strides = array<i32>} : memref<1x1x1x2xf32, #tpu.memory_space<vmem>>, vector<1x1x1x2xf32>,
    %c0_34 = arith.constant 0 : index
    %c0_35 = arith.constant 0 : index
    %69 = vector.load %arg6[%c0_34, %c0_35] : memref<4x196xbf16, #tpu.memory_space<vmem>>, vector<4x196xbf16>
    %70 = arith.truncf %41 : vector<196x256xf32> to vector<196x256xbf16>
    %cst_36 = arith.constant dense<0.000000e+00> : vector<4x256xf32>
    %71 = tpu.matmul %69, %70, %cst_36 {dimension_numbers = #tpu.dot_dimension_numbers<[1], [0], [0], [1], [0, 0, 1, 1], [], []>} : vector<4x196xbf16>, vector<196x256xbf16>, vector<4x256xf32> -> vector<4x256xf32>
    %72 = vector.extract_strided_slice %71 {offsets = [0, 0], sizes = [1, 256], strides = [1, 1]} : vector<4x256xf32> to vector<1x256xf32>
    %73 = vector.extract_strided_slice %71 {offsets = [1, 0], sizes = [1, 256], strides = [1, 1]} : vector<4x256xf32> to vector<1x256xf32>
    %74 = vector.extract_strided_slice %71 {offsets = [2, 0], sizes = [1, 256], strides = [1, 1]} : vector<4x256xf32> to vector<1x256xf32>
    %75 = vector.extract_strided_slice %71 {offsets = [3, 0], sizes = [1, 256], strides = [1, 1]} : vector<4x256xf32> to vector<1x256xf32>
    %76 = tpu.concatenate %72, %73, %74, %75 in 1 : vector<1x256xf32>, vector<1x256xf32>, vector<1x256xf32>, vector<1x256xf32> -> vector<1x1024xf32>
    %77 = arith.truncf %76 : vector<1x1024xf32> to vector<1x1024xbf16>
    %c0_37 = arith.constant 0 : index
    %c0_38 = arith.constant 0 : index
    %c0_39 = arith.constant 0 : index
    %78 = vector.load %arg4[%c0_37, %c0_38, %c0_39] : memref<1x1024x512xbf16, #tpu.memory_space<vmem>>, vector<1x1024x512xbf16>
    %79 = vector.shape_cast %78 : vector<1x1024x512xbf16> to vector<1024x512xbf16>
    %cst_40 = arith.constant dense<0.000000e+00> : vector<1x512xf32>
    %80 = tpu.matmul %77, %79, %cst_40 {dimension_numbers = #tpu.dot_dimension_numbers<[1], [0], [0], [1], [0, 0, 1, 1], [], []>} : vector<1x1024xbf16>, vector<1024x512xbf16>, vector<1x512xf32> -> vector<1x512xf32>
    %c0_41 = arith.constant 0 : index
    %c2_42 = arith.constant 2 : index
    %c0_43 = arith.constant 0 : index
    %81 = vector.load %arg5[%c0_41, %c2_42, %c0_43] : memref<1x5x512xf32, #tpu.memory_space<vmem>>, vector<1x1x512xf32>
    %82 = vector.shape_cast %81 : vector<1x1x512xf32> to vector<1x512xf32>
    %83 = arith.addf %80, %82 : vector<1x512xf32>
    %84 = arith.truncf %83 : vector<1x512xf32> to vector<1x512xbf16>
    %c0_44 = arith.constant 0 : index
    %c0_45 = arith.constant 0 : index
    %c0_46 = arith.constant 0 : index
    %c0_47 = arith.constant 0 : index
    %85 = vector.load %arg8[%c0_44, %c0_45, %c0_46, %c0_47] : memref<1x1x1x512xbf16, #tpu.memory_space<vmem>>, vector<1x1x1x512xbf16>
    %86 = vector.shape_cast %85 : vector<1x1x1x512xbf16> to vector<1x512xbf16>
    %87 = vector.shape_cast %84 : vector<1x512xbf16> to vector<1x1x1x512xbf16>
    tpu.vector_store %arg8[%c0_44, %c0_45, %c0_46, %c0_47], %87 {strides = array<i32>} : memref<1x1x1x512xbf16, #tpu.memory_space<vmem>>, vector<1x1x1x512xbf16>,
    return
  }
  func.func @transform_0(%arg0: i32, %arg1: i32) -> (i32, i32, i32, i32) {
    %c0_i32 = arith.constant 0 : i32
    %c0_i32_0 = arith.constant 0 : i32
    %c0_i32_1 = arith.constant 0 : i32
    return %arg0, %arg1, %c0_i32, %c0_i32_0 : i32, i32, i32, i32
  }
  func.func @transform_1(%arg0: i32, %arg1: i32) -> (i32, i32, i32) {
    %c0_i32 = arith.constant 0 : i32
    %c0_i32_0 = arith.constant 0 : i32
    %c0_i32_1 = arith.constant 0 : i32
    return %arg0, %c0_i32, %c0_i32_0 : i32, i32, i32
  }
  func.func @transform_2(%arg0: i32, %arg1: i32) -> (i32, i32, i32) {
    %c0_i32 = arith.constant 0 : i32
    %c0_i32_0 = arith.constant 0 : i32
    %c0_i32_1 = arith.constant 0 : i32
    return %arg0, %c0_i32, %c0_i32_0 : i32, i32, i32
  }
  func.func @transform_3(%arg0: i32, %arg1: i32) -> (i32, i32, i32) {
    %c0_i32 = arith.constant 0 : i32
    %c0_i32_0 = arith.constant 0 : i32
    %c0_i32_1 = arith.constant 0 : i32
    return %arg0, %c0_i32, %c0_i32_0 : i32, i32, i32
  }
  func.func @transform_4(%arg0: i32, %arg1: i32) -> (i32, i32) {
    %c0_i32 = arith.constant 0 : i32
    %c0_i32_0 = arith.constant 0 : i32
    %c0_i32_1 = arith.constant 0 : i32
    return %c0_i32, %c0_i32_0 : i32, i32
  }
  func.func @transform_5(%arg0: i32, %arg1: i32) -> (i32, i32) {
    %c0_i32 = arith.constant 0 : i32
    %c0_i32_0 = arith.constant 0 : i32
    %c0_i32_1 = arith.constant 0 : i32
    return %c0_i32, %c0_i32_0 : i32, i32
  }
  func.func @transform_6(%arg0: i32, %arg1: i32) -> (i32, i32, i32, i32) {
    %c0_i32 = arith.constant 0 : i32
    %c0_i32_0 = arith.constant 0 : i32
    %c0_i32_1 = arith.constant 0 : i32
    return %arg0, %arg1, %c0_i32, %c0_i32_0 : i32, i32, i32, i32
  }
  func.func @transform_7(%arg0: i32, %arg1: i32) -> (i32, i32, i32, i32) {
    %c0_i32 = arith.constant 0 : i32
    %c0_i32_0 = arith.constant 0 : i32
    %c0_i32_1 = arith.constant 0 : i32
    return %arg0, %arg1, %c0_i32, %c0_i32_0 : i32, i32, i32, i32
  }
  func.func @transform_8(%arg0: i32, %arg1: i32) -> (i32, i32, i32, i32) {
    %c0_i32 = arith.constant 0 : i32
    %c0_i32_0 = arith.constant 0 : i32
    %c0_i32_1 = arith.constant 0 : i32
    return %arg0, %arg1, %c0_i32, %c0_i32_0 : i32, i32, i32, i32
  }
}

module attributes {stable_mosaic.version = 11 : i64} {
  func.func @parception_branch_kernel(%arg0: memref<2x2x512xbf16, #tpu.memory_space<vmem>>, %arg1: memref<2x512x256xbf16, #tpu.memory_space<vmem>>, %arg2: memref<256x512xbf16, #tpu.memory_space<vmem>>, %arg3: memref<256x256xbf16, #tpu.memory_space<vmem>>, %arg4: memref<256x2xf32, #tpu.memory_space<vmem>>, %arg5: memref<5x512xf32, #tpu.memory_space<vmem>>, %arg6: memref<2x2xf32, #tpu.memory_space<vmem>>) attributes {dimension_semantics = [], scalar_prefetch = 0 : i64, scratch_operands = 0 : i64, tpu.core_type = #tpu.core_type<tc>} {
    %c0 = arith.constant 0 : index
    %c0_0 = arith.constant 0 : index
    %c0_1 = arith.constant 0 : index
    %0 = vector.load %arg0[%c0, %c0_0, %c0_1] : memref<2x2x512xbf16, #tpu.memory_space<vmem>>, vector<1x2x512xbf16>
    %1 = vector.shape_cast %0 : vector<1x2x512xbf16> to vector<2x512xbf16>
    %c0_2 = arith.constant 0 : index
    %c0_3 = arith.constant 0 : index
    %c0_4 = arith.constant 0 : index
    %2 = vector.load %arg1[%c0_2, %c0_3, %c0_4] : memref<2x512x256xbf16, #tpu.memory_space<vmem>>, vector<1x512x256xbf16>
    %3 = vector.shape_cast %2 : vector<1x512x256xbf16> to vector<512x256xbf16>
    %cst = arith.constant dense<0.000000e+00> : vector<2x256xf32>
    %4 = tpu.matmul %1, %3, %cst {dimension_numbers = #tpu.dot_dimension_numbers<[1], [0], [0], [1], [0, 0, 1, 1], [], []>} : vector<2x512xbf16>, vector<512x256xbf16>, vector<2x256xf32> -> vector<2x256xf32>
    %c0_5 = arith.constant 0 : index
    %c0_6 = arith.constant 0 : index
    %5 = vector.load %arg5[%c0_5, %c0_6] : memref<5x512xf32, #tpu.memory_space<vmem>>, vector<1x256xf32>
    %6 = vector.broadcast %5 : vector<1x256xf32> to vector<2x256xf32>
    %7 = arith.addf %4, %6 : vector<2x256xf32>
    %c1 = arith.constant 1 : index
    %c0_7 = arith.constant 0 : index
    %c0_8 = arith.constant 0 : index
    %8 = vector.load %arg0[%c1, %c0_7, %c0_8] : memref<2x2x512xbf16, #tpu.memory_space<vmem>>, vector<1x2x512xbf16>
    %9 = vector.shape_cast %8 : vector<1x2x512xbf16> to vector<2x512xbf16>
    %c1_9 = arith.constant 1 : index
    %c0_10 = arith.constant 0 : index
    %c0_11 = arith.constant 0 : index
    %10 = vector.load %arg1[%c1_9, %c0_10, %c0_11] : memref<2x512x256xbf16, #tpu.memory_space<vmem>>, vector<1x512x256xbf16>
    %11 = vector.shape_cast %10 : vector<1x512x256xbf16> to vector<512x256xbf16>
    %cst_12 = arith.constant dense<0.000000e+00> : vector<2x256xf32>
    %12 = tpu.matmul %9, %11, %cst_12 {dimension_numbers = #tpu.dot_dimension_numbers<[1], [0], [0], [1], [0, 0, 1, 1], [], []>} : vector<2x512xbf16>, vector<512x256xbf16>, vector<2x256xf32> -> vector<2x256xf32>
    %c0_13 = arith.constant 0 : index
    %c256 = arith.constant 256 : index
    %13 = vector.load %arg5[%c0_13, %c256] : memref<5x512xf32, #tpu.memory_space<vmem>>, vector<1x256xf32>
    %14 = vector.broadcast %13 : vector<1x256xf32> to vector<2x256xf32>
    %15 = arith.addf %12, %14 : vector<2x256xf32>
    %16 = tpu.concatenate %7, %15 in 0 : vector<2x256xf32>, vector<2x256xf32> -> vector<4x256xf32>
    %17 = arith.truncf %16 : vector<4x256xf32> to vector<4x256xbf16>
    %c0_14 = arith.constant 0 : index
    %c0_15 = arith.constant 0 : index
    %18 = vector.load %arg2[%c0_14, %c0_15] : memref<256x512xbf16, #tpu.memory_space<vmem>>, vector<256x512xbf16>
    %cst_16 = arith.constant dense<0.000000e+00> : vector<4x512xf32>
    %19 = tpu.matmul %17, %18, %cst_16 {dimension_numbers = #tpu.dot_dimension_numbers<[1], [0], [0], [1], [0, 0, 1, 1], [], []>} : vector<4x256xbf16>, vector<256x512xbf16>, vector<4x512xf32> -> vector<4x512xf32>
    %c1_17 = arith.constant 1 : index
    %c0_18 = arith.constant 0 : index
    %20 = vector.load %arg5[%c1_17, %c0_18] : memref<5x512xf32, #tpu.memory_space<vmem>>, vector<1x512xf32>
    %21 = vector.broadcast %20 : vector<1x512xf32> to vector<4x512xf32>
    %22 = arith.addf %19, %21 : vector<4x512xf32>
    %23 = math.tanh %22 : vector<4x512xf32>
    %24 = vector.extract_strided_slice %23 {offsets = [0, 0], sizes = [2, 256], strides = [1, 1]} : vector<4x512xf32> to vector<2x256xf32>
    %c2 = arith.constant 2 : index
    %c0_19 = arith.constant 0 : index
    %25 = vector.load %arg5[%c2, %c0_19] : memref<5x512xf32, #tpu.memory_space<vmem>>, vector<1x256xf32>
    %26 = vector.broadcast %25 : vector<1x256xf32> to vector<2x256xf32>
    %27 = arith.mulf %24, %26 : vector<2x256xf32>
    %cst_20 = arith.constant dense<0.000000e+00> : vector<2xf32>
    %28 = vector.multi_reduction <add>, %27, %cst_20 [1] : vector<2x256xf32> to vector<2xf32>
    %29 = vector.shape_cast %28 : vector<2xf32> to vector<2x1xf32>
    %30 = vector.extract_strided_slice %23 {offsets = [2, 256], sizes = [2, 256], strides = [1, 1]} : vector<4x512xf32> to vector<2x256xf32>
    %c2_21 = arith.constant 2 : index
    %c256_22 = arith.constant 256 : index
    %31 = vector.load %arg5[%c2_21, %c256_22] : memref<5x512xf32, #tpu.memory_space<vmem>>, vector<1x256xf32>
    %32 = vector.broadcast %31 : vector<1x256xf32> to vector<2x256xf32>
    %33 = arith.mulf %30, %32 : vector<2x256xf32>
    %cst_23 = arith.constant dense<0.000000e+00> : vector<2xf32>
    %34 = vector.multi_reduction <add>, %33, %cst_23 [1] : vector<2x256xf32> to vector<2xf32>
    %35 = vector.shape_cast %34 : vector<2xf32> to vector<2x1xf32>
    %36 = math.exp %29 : vector<2x1xf32>
    %37 = math.exp %35 : vector<2x1xf32>
    %38 = arith.addf %36, %37 : vector<2x1xf32>
    %39 = tpu.reciprocal %38 {approx = true} : vector<2x1xf32> -> vector<2x1xf32>
    %40 = arith.mulf %36, %39 : vector<2x1xf32>
    %41 = vector.broadcast %40 : vector<2x1xf32> to vector<2x256xf32>
    %42 = arith.mulf %41, %7 : vector<2x256xf32>
    %43 = arith.mulf %37, %39 : vector<2x1xf32>
    %44 = vector.broadcast %43 : vector<2x1xf32> to vector<2x256xf32>
    %45 = arith.mulf %44, %15 : vector<2x256xf32>
    %46 = arith.addf %42, %45 : vector<2x256xf32>
    %47 = arith.truncf %46 : vector<2x256xf32> to vector<2x256xbf16>
    %c0_24 = arith.constant 0 : index
    %c0_25 = arith.constant 0 : index
    %48 = vector.load %arg3[%c0_24, %c0_25] : memref<256x256xbf16, #tpu.memory_space<vmem>>, vector<256x256xbf16>
    %cst_26 = arith.constant dense<0.000000e+00> : vector<2x256xf32>
    %49 = tpu.matmul %47, %48, %cst_26 {dimension_numbers = #tpu.dot_dimension_numbers<[1], [0], [0], [1], [0, 0, 1, 1], [], []>} : vector<2x256xbf16>, vector<256x256xbf16>, vector<2x256xf32> -> vector<2x256xf32>
    %c3 = arith.constant 3 : index
    %c0_27 = arith.constant 0 : index
    %50 = vector.load %arg5[%c3, %c0_27] : memref<5x512xf32, #tpu.memory_space<vmem>>, vector<1x256xf32>
    %51 = vector.broadcast %50 : vector<1x256xf32> to vector<2x256xf32>
    %52 = arith.addf %49, %51 : vector<2x256xf32>
    %cst_28 = arith.constant 0.000000e+00 : f32
    %53 = vector.broadcast %cst_28 : f32 to vector<2x256xf32>
    %54 = arith.maximumf %52, %53 : vector<2x256xf32>
    %c0_29 = arith.constant 0 : index
    %c0_30 = arith.constant 0 : index
    %55 = vector.load %arg4[%c0_29, %c0_30] : memref<256x2xf32, #tpu.memory_space<vmem>>, vector<256x2xf32>
    %cst_31 = arith.constant dense<0.000000e+00> : vector<2x2xf32>
    %56 = tpu.matmul %54, %55, %cst_31 {dimension_numbers = #tpu.dot_dimension_numbers<[1], [0], [0], [1], [0, 0, 1, 1], [], []>} : vector<2x256xf32>, vector<256x2xf32>, vector<2x2xf32> -> vector<2x2xf32>
    %c4 = arith.constant 4 : index
    %c0_32 = arith.constant 0 : index
    %57 = vector.load %arg5[%c4, %c0_32] : memref<5x512xf32, #tpu.memory_space<vmem>>, vector<1x2xf32>
    %58 = vector.broadcast %57 : vector<1x2xf32> to vector<2x2xf32>
    %59 = arith.addf %56, %58 : vector<2x2xf32>
    %cst_33 = arith.constant dense<0xFF800000> : vector<2xf32>
    %60 = vector.multi_reduction <maximumf>, %59, %cst_33 [1] : vector<2x2xf32> to vector<2xf32>
    %61 = vector.shape_cast %60 : vector<2xf32> to vector<2x1xf32>
    %62 = vector.broadcast %61 : vector<2x1xf32> to vector<2x2xf32>
    %63 = arith.subf %59, %62 : vector<2x2xf32>
    %64 = math.exp %63 : vector<2x2xf32>
    %cst_34 = arith.constant dense<0.000000e+00> : vector<2xf32>
    %65 = vector.multi_reduction <add>, %64, %cst_34 [1] : vector<2x2xf32> to vector<2xf32>
    %66 = vector.shape_cast %65 : vector<2xf32> to vector<2x1xf32>
    %67 = tpu.reciprocal %66 {approx = true} : vector<2x1xf32> -> vector<2x1xf32>
    %68 = vector.broadcast %67 : vector<2x1xf32> to vector<2x2xf32>
    %69 = arith.mulf %64, %68 : vector<2x2xf32>
    %c0_35 = arith.constant 0 : index
    %c0_36 = arith.constant 0 : index
    %70 = vector.load %arg6[%c0_35, %c0_36] : memref<2x2xf32, #tpu.memory_space<vmem>>, vector<2x2xf32>
    tpu.vector_store %arg6[%c0_35, %c0_36], %69 {strides = array<i32>} : memref<2x2xf32, #tpu.memory_space<vmem>>, vector<2x2xf32>,
    return
  }
}

</mosaic_0001>

<llo_original>
// kernel: ponnet_forward.2
$region0: #{ponnet_forward.2}
  #allocation0 [shape = 'u32[]', space=smem, size = 0x4, offset = 0x4, fixed_abs, tag = 'smem constant byte address 0x4 - core index']
  #allocation1 [shape = 'u32[144,128]{1,0:T(1,128)}', space=vmem, size = 0x12000, scoped, tag = 'internal scratch']
  %s0 = inlined_call_operand.vmem [shape: bf16[2,2,196,768], index: 0, kind: input, shape index: {}]
  %s1 = inlined_call_operand.vmem [shape: bf16[2,768,256], index: 1, kind: input, shape index: {}]
  %s2 = inlined_call_operand.vmem [shape: bf16[2,1024,512], index: 2, kind: input, shape index: {}]
  %s3 = inlined_call_operand.vmem [shape: f32[2,5,512], index: 3, kind: input, shape index: {}]
  %s4 = inlined_call_operand.vmem [shape: bf16[4,196], index: 4, kind: input, shape index: {}]
  %s5 = inlined_call_operand.vmem [shape: f32[2,8], index: 5, kind: input, shape index: {}]
  %s6 = inlined_call_operand.vmem [shape: bf16[2,2,1,512], index: 6, kind: output, shape index: {0}]
  %s7 = inlined_call_operand.vmem [shape: f32[2,2,196,1], index: 7, kind: output, shape index: {1}]
  %s8 = inlined_call_operand.vmem [shape: f32[2,2,1,2], index: 8, kind: output, shape index: {2}]
  %9 = xla_tuple %s6, %s7, %s8
  %s10 = sld [smem:[#allocation0]]
  $region77: #{ponnet_forward.2} parent=0
    _
  %s12 = ssub.s32 1, %s10
  %s13 = scalar_select 0, %s12, %s10
  $region1: #{ponnet_forward.2} parent=0
    #allocation2 [shape = 'u8[1024]{0}', space=smem, size = 0x400, scoped, tag = 'input window, operand 5, single buffered']
    #allocation3 [shape = 's32[2]{0}', space=sflag, size = 0x8, scoped, tag = 'scoped memory for ponnet_forward.2']
    %14 = vsyncpa [#allocation3], 0
    loop: start=0, step=1, limit=6
    $region2: #{ponnet_forward.2} parent=1 // loop_pre_header
      _
    $region3: #{ponnet_forward.2} parent=1 // loop_header
      %s16 = sphi 0, %s20
      %p17 = scmp.ge.s32.totalorder %s16, 6
      %s23 = sphi 0, %s35
      %s24 = sphi 0, %s31
      %s25 = sphi 0, %s23
      %s26 = sphi 0, %s24
      %s27 = sphi 0, %s25
      %s28 = sphi 0, %s26
      %s40 = sphi 0, %s42
      %s43 = sphi 0, %s40
      %s44 = sphi 0, %s43
      %s60 = sphi 0, %s44
      %s66 = sphi 0, %s68
      %s69 = sphi 0, %s66
      %s70 = sphi 0, %s69
      %s86 = sphi 0, %s70
      %s92 = sphi 0, %s94
      %s95 = sphi 0, %s92
      %s96 = sphi 0, %s95
      %s112 = sphi 0, %s96
      %s118 = sphi 0, %s120
      %s121 = sphi 0, %s118
      %s122 = sphi 0, %s121
      %s138 = sphi 0, %s122
      %s142 = sphi 0, %s142
      %s144 = sphi 0, %s142
      %s145 = sphi 0, %s144
      %s159 = sphi 0, %s145
      %s163 = sphi 0, %s163
      %s165 = sphi 0, %s163
      %s166 = sphi 0, %s165
      %s180 = sphi 0, %s166
      %s188 = sphi 0, %s190
      %s191 = sphi 0, %s188
      %s192 = sphi 0, %s191
      %s208 = sphi 0, %s192
      %s216 = sphi 0, %s218
      %s219 = sphi 0, %s216
      %s220 = sphi 0, %s219
      %s236 = sphi 0, %s220
      %s244 = sphi 0, %s246
      %s247 = sphi 0, %s244
      %s248 = sphi 0, %s247
      %s264 = sphi 0, %s248
    $region4: #{ponnet_forward.2} parent=1 // loop_header_branch
      %19 = sbr.rel (%p17) target = $region8
    $region5: #{ponnet_forward.2} parent=1 // loop_body
      %s21 = ssub.s32 %s16, 1
      %s22 = ssub.s32 %s16, 2
      %s29 = sadd.s32 1, %s24
      %p30 = scmp.ge.s32.totalorder %s29, 2
      %s31 = scalar_select %p30, 0, %s29
      %s32 = sadd.s32 1, %s23
      %s33 = scalar_select %p30, %s32, %s23
      %p34 = scmp.ge.s32.totalorder %s33, 2
      %s35 = scalar_select %p34, 0, %s33
      %s36 = ssub.s32 %s23, %s35
      %s37 = ssub.s32 %s24, %s31
      %s38 = sor.u32 %s36, %s37
      %p39 = scmp.eq.s32.totalorder %s38, 0
      %s41 = sadd.s32 %s40, 1
      %s42 = scalar_select %p39, %s40, %s41
      %p45 = pneg %p39
      %p46 = scmp.eq.s32.totalorder %s16, 3
      %p47 = por %p45, %p46
      %p48 = scmp.ne.s32.totalorder %s40, %s43
      %p49 = scmp.eq.s32.totalorder %s16, 0
      %p50 = por %p48, %p49
      %p51 = scmp.ne.s32.totalorder %s40, %s43
      %p52 = scmp.eq.s32.totalorder %s21, 3
      %p53 = por %p51, %p52
      %p54 = scmp.ne.s32.totalorder %s43, %s44
      %p55 = scmp.eq.s32.totalorder %s21, 0
      %p56 = por %p54, %p55
      %p57 = scmp.ne.s32.totalorder %s43, %s44
      %p58 = scmp.eq.s32.totalorder %s22, 3
      %p59 = por %p57, %p58
      %p61 = scmp.ne.s32.totalorder %s44, %s60
      %p62 = scmp.eq.s32.totalorder %s22, 0
      %p63 = por %p61, %p62
      %s64 = ssub.s32 %s23, %s35
      %p65 = scmp.eq.s32.totalorder %s64, 0
      %s67 = sadd.s32 %s66, 1
      %s68 = scalar_select %p65, %s66, %s67
      %p71 = pneg %p65
      %p72 = scmp.eq.s32.totalorder %s16, 3
      %p73 = por %p71, %p72
      %p74 = scmp.ne.s32.totalorder %s66, %s69
      %p75 = scmp.eq.s32.totalorder %s16, 0
      %p76 = por %p74, %p75
      %p77 = scmp.ne.s32.totalorder %s66, %s69
      %p78 = scmp.eq.s32.totalorder %s21, 3
      %p79 = por %p77, %p78
      %p80 = scmp.ne.s32.totalorder %s69, %s70
      %p81 = scmp.eq.s32.totalorder %s21, 0
      %p82 = por %p80, %p81
      %p83 = scmp.ne.s32.totalorder %s69, %s70
      %p84 = scmp.eq.s32.totalorder %s22, 3
      %p85 = por %p83, %p84
      %p87 = scmp.ne.s32.totalorder %s70, %s86
      %p88 = scmp.eq.s32.totalorder %s22, 0
      %p89 = por %p87, %p88
      %s90 = ssub.s32 %s23, %s35
      %p91 = scmp.eq.s32.totalorder %s90, 0
      %s93 = sadd.s32 %s92, 1
      %s94 = scalar_select %p91, %s92, %s93
      %p97 = pneg %p91
      %p98 = scmp.eq.s32.totalorder %s16, 3
      %p99 = por %p97, %p98
      %p100 = scmp.ne.s32.totalorder %s92, %s95
      %p101 = scmp.eq.s32.totalorder %s16, 0
      %p102 = por %p100, %p101
      %p103 = scmp.ne.s32.totalorder %s92, %s95
      %p104 = scmp.eq.s32.totalorder %s21, 3
      %p105 = por %p103, %p104
      %p106 = scmp.ne.s32.totalorder %s95, %s96
      %p107 = scmp.eq.s32.totalorder %s21, 0
      %p108 = por %p106, %p107
      %p109 = scmp.ne.s32.totalorder %s95, %s96
      %p110 = scmp.eq.s32.totalorder %s22, 3
      %p111 = por %p109, %p110
      %p113 = scmp.ne.s32.totalorder %s96, %s112
      %p114 = scmp.eq.s32.totalorder %s22, 0
      %p115 = por %p113, %p114
      %s116 = ssub.s32 %s23, %s35
      %p117 = scmp.eq.s32.totalorder %s116, 0
      %s119 = sadd.s32 %s118, 1
      %s120 = scalar_select %p117, %s118, %s119
      %p123 = pneg %p117
      %p124 = scmp.eq.s32.totalorder %s16, 3
      %p125 = por %p123, %p124
      %p126 = scmp.ne.s32.totalorder %s118, %s121
      %p127 = scmp.eq.s32.totalorder %s16, 0
      %p128 = por %p126, %p127
      %p129 = scmp.ne.s32.totalorder %s118, %s121
      %p130 = scmp.eq.s32.totalorder %s21, 3
      %p131 = por %p129, %p130
      %p132 = scmp.ne.s32.totalorder %s121, %s122
      %p133 = scmp.eq.s32.totalorder %s21, 0
      %p134 = por %p132, %p133
      %p135 = scmp.ne.s32.totalorder %s121, %s122
      %p136 = scmp.eq.s32.totalorder %s22, 3
      %p137 = por %p135, %p136
      %p139 = scmp.ne.s32.totalorder %s122, %s138
      %p140 = scmp.eq.s32.totalorder %s22, 0
      %p141 = por %p139, %p140
      %s143 = sadd.s32 %s142, 1
      %p146 = scmp.eq.s32.totalorder %s16, 3
      %p147 = scmp.ne.s32.totalorder %s142, %s144
      %p148 = scmp.eq.s32.totalorder %s16, 0
      %p149 = por %p147, %p148
      %p150 = scmp.ne.s32.totalorder %s142, %s144
      %p151 = scmp.eq.s32.totalorder %s21, 3
      %p152 = por %p150, %p151
      %p153 = scmp.ne.s32.totalorder %s144, %s145
      %p154 = scmp.eq.s32.totalorder %s21, 0
      %p155 = por %p153, %p154
      %p156 = scmp.ne.s32.totalorder %s144, %s145
      %p157 = scmp.eq.s32.totalorder %s22, 3
      %p158 = por %p156, %p157
      %p160 = scmp.ne.s32.totalorder %s145, %s159
      %p161 = scmp.eq.s32.totalorder %s22, 0
      %p162 = por %p160, %p161
      %s164 = sadd.s32 %s163, 1
      %p167 = scmp.eq.s32.totalorder %s16, 3
      %p168 = scmp.ne.s32.totalorder %s163, %s165
      %p169 = scmp.eq.s32.totalorder %s16, 0
      %p170 = por %p168, %p169
      %p171 = scmp.ne.s32.totalorder %s163, %s165
      %p172 = scmp.eq.s32.totalorder %s21, 3
      %p173 = por %p171, %p172
      %p174 = scmp.ne.s32.totalorder %s165, %s166
      %p175 = scmp.eq.s32.totalorder %s21, 0
      %p176 = por %p174, %p175
      %p177 = scmp.ne.s32.totalorder %s165, %s166
      %p178 = scmp.eq.s32.totalorder %s22, 3
      %p179 = por %p177, %p178
      %p181 = scmp.ne.s32.totalorder %s166, %s180
      %p182 = scmp.eq.s32.totalorder %s22, 0
      %p183 = por %p181, %p182
      %s184 = ssub.s32 %s23, %s35
      %s185 = ssub.s32 %s24, %s31
      %s186 = sor.u32 %s184, %s185
      %p187 = scmp.eq.s32.totalorder %s186, 0
      %s189 = sadd.s32 %s188, 1
      %s190 = scalar_select %p187, %s188, %s189
      %p193 = pneg %p187
      %p194 = scmp.eq.s32.totalorder %s16, 3
      %p195 = por %p193, %p194
      %p196 = scmp.ne.s32.totalorder %s188, %s191
      %p197 = scmp.eq.s32.totalorder %s16, 0
      %p198 = por %p196, %p197
      %p199 = scmp.ne.s32.totalorder %s188, %s191
      %p200 = scmp.eq.s32.totalorder %s21, 3
      %p201 = por %p199, %p200
      %p202 = scmp.ne.s32.totalorder %s191, %s192
      %p203 = scmp.eq.s32.totalorder %s21, 0
      %p204 = por %p202, %p203
      %p205 = scmp.ne.s32.totalorder %s191, %s192
      %p206 = scmp.eq.s32.totalorder %s22, 3
      %p207 = por %p205, %p206
      %p209 = scmp.ne.s32.totalorder %s192, %s208
      %p210 = scmp.eq.s32.totalorder %s22, 0
      %p211 = por %p209, %p210
      %s212 = ssub.s32 %s23, %s35
      %s213 = ssub.s32 %s24, %s31
      %s214 = sor.u32 %s212, %s213
      %p215 = scmp.eq.s32.totalorder %s214, 0
      %s217 = sadd.s32 %s216, 1
      %s218 = scalar_select %p215, %s216, %s217
      %p221 = pneg %p215
      %p222 = scmp.eq.s32.totalorder %s16, 3
      %p223 = por %p221, %p222
      %p224 = scmp.ne.s32.totalorder %s216, %s219
      %p225 = scmp.eq.s32.totalorder %s16, 0
      %p226 = por %p224, %p225
      %p227 = scmp.ne.s32.totalorder %s216, %s219
      %p228 = scmp.eq.s32.totalorder %s21, 3
      %p229 = por %p227, %p228
      %p230 = scmp.ne.s32.totalorder %s219, %s220
      %p231 = scmp.eq.s32.totalorder %s21, 0
      %p232 = por %p230, %p231
      %p233 = scmp.ne.s32.totalorder %s219, %s220
      %p234 = scmp.eq.s32.totalorder %s22, 3
      %p235 = por %p233, %p234
      %p237 = scmp.ne.s32.totalorder %s220, %s236
      %p238 = scmp.eq.s32.totalorder %s22, 0
      %p239 = por %p237, %p238
      %s240 = ssub.s32 %s23, %s35
      %s241 = ssub.s32 %s24, %s31
      %s242 = sor.u32 %s240, %s241
      %p243 = scmp.eq.s32.totalorder %s242, 0
      %s245 = sadd.s32 %s244, 1
      %s246 = scalar_select %p243, %s244, %s245
      %p249 = pneg %p243
      %p250 = scmp.eq.s32.totalorder %s16, 3
      %p251 = por %p249, %p250
      %p252 = scmp.ne.s32.totalorder %s244, %s247
      %p253 = scmp.eq.s32.totalorder %s16, 0
      %p254 = por %p252, %p253
      %p255 = scmp.ne.s32.totalorder %s244, %s247
      %p256 = scmp.eq.s32.totalorder %s21, 3
      %p257 = por %p255, %p256
      %p258 = scmp.ne.s32.totalorder %s247, %s248
      %p259 = scmp.eq.s32.totalorder %s21, 0
      %p260 = por %p258, %p259
      %p261 = scmp.ne.s32.totalorder %s247, %s248
      %p262 = scmp.eq.s32.totalorder %s22, 3
      %p263 = por %p261, %p262
      %p265 = scmp.ne.s32.totalorder %s248, %s264
      %p266 = scmp.eq.s32.totalorder %s22, 0
      %p267 = por %p265, %p266
      %p268 = scmp.le.s32.totalorder 1, %s16
      %p269 = scmp.lt.s32.totalorder %s16, 5
      %p270 = pnand %p268, %p269
      %p271 = pneg %p270
      // Predicated region
      $region9: #{ponnet_forward.2} parent=5 // pred_check
        _
      $region10: #{ponnet_forward.2} parent=5 // pred_check_branch
        %273 = sbr.rel (%p270) target = $region12
      $region11: #{ponnet_forward.2} parent=5 // pred_region
        %s274 = ssub.s32 %s16, 1
        // Predicated region
        $region13: #{ponnet_forward.2} parent=11 // pred_check
          %p275 = pneg %p155
        $region14: #{ponnet_forward.2} parent=11 // pred_check_branch
          %277 = sbr.rel (%p275) target = $region16
        $region15: #{ponnet_forward.2} parent=11 // pred_region
          _
        $region16: #{ponnet_forward.2} parent=11 // pred_fallthru
          _
        // Predicated region
        $region17: #{ponnet_forward.2} parent=11 // pred_check
          %p278 = pneg %p176
        $region18: #{ponnet_forward.2} parent=11 // pred_check_branch
          %280 = sbr.rel (%p278) target = $region20
        $region19: #{ponnet_forward.2} parent=11 // pred_region
          %s282 = ssub.s32 32, 32
          %283 = vsyncadd [#allocation3], %s282
          %s285 = sshll.u32 %s5, 4
          %s286 = int_to_ptr.vmem [resolvable:$true] %s285
          %288 = dma.vmem_to_smem %s286, 32, [#allocation2], [#allocation3]
        $region20: #{ponnet_forward.2} parent=11 // pred_fallthru
          _
      $region12: #{ponnet_forward.2} parent=5 // pred_fallthru
        _
      %p289 = scmp.lt.s32.totalorder %s16, 4
      // Predicated region
      $region21: #{ponnet_forward.2} parent=5 // pred_check
        %p290 = pneg %p289
      $region22: #{ponnet_forward.2} parent=5 // pred_check_branch
        %292 = sbr.rel (%p290) target = $region24
      $region23: #{ponnet_forward.2} parent=5 // pred_region
        // Predicated region
        $region25: #{ponnet_forward.2} parent=23 // pred_check
          %p293 = pneg %p50
        $region26: #{ponnet_forward.2} parent=23 // pred_check_branch
          %295 = sbr.rel (%p293) target = $region28
        $region27: #{ponnet_forward.2} parent=23 // pred_region
          %p296 = scmp.lt.s32.totalorder %s23, 1
          %s297 = scalar_select %p296, %s23, 1
          %p298 = scmp.lt.s32.totalorder %s24, 1
          %s299 = scalar_select %p298, %s24, 1
          %s300 = smul.addr %s299, 150
          %s301 = smul.addr %s297, 300
          %s302 = sadd.s32 %s300, %s301
          %s303 = smul.addr %s302, 4
          %s304 = scalar_lea.vmem %s0, %s303
        $region28: #{ponnet_forward.2} parent=23 // pred_fallthru
          _
        // Predicated region
        $region29: #{ponnet_forward.2} parent=23 // pred_check
          %p305 = pneg %p76
        $region30: #{ponnet_forward.2} parent=23 // pred_check_branch
          %307 = sbr.rel (%p305) target = $region32
        $region31: #{ponnet_forward.2} parent=23 // pred_region
          %p308 = scmp.lt.s32.totalorder %s23, 1
          %s309 = scalar_select %p308, %s23, 1
          %s310 = smul.addr %s309, 192
          %s311 = smul.addr %s310, 4
          %s312 = scalar_lea.vmem %s1, %s311
        $region32: #{ponnet_forward.2} parent=23 // pred_fallthru
          _
        // Predicated region
        $region33: #{ponnet_forward.2} parent=23 // pred_check
          %p313 = pneg %p102
        $region34: #{ponnet_forward.2} parent=23 // pred_check_branch
          %315 = sbr.rel (%p313) target = $region36
        $region35: #{ponnet_forward.2} parent=23 // pred_region
          %p316 = scmp.lt.s32.totalorder %s23, 1
          %s317 = scalar_select %p316, %s23, 1
          %s318 = smul.addr %s317, 512
          %s319 = smul.addr %s318, 4
          %s320 = scalar_lea.vmem %s2, %s319
        $region36: #{ponnet_forward.2} parent=23 // pred_fallthru
          _
        // Predicated region
        $region37: #{ponnet_forward.2} parent=23 // pred_check
          %p321 = pneg %p128
        $region38: #{ponnet_forward.2} parent=23 // pred_check_branch
          %323 = sbr.rel (%p321) target = $region40
        $region39: #{ponnet_forward.2} parent=23 // pred_region
          %p324 = scmp.lt.s32.totalorder %s23, 1
          %s325 = scalar_select %p324, %s23, 1
          %s326 = smul.addr %s325, 4
          %s327 = smul.addr %s326, 8
          %s328 = scalar_lea.vmem %s3, %s327
        $region40: #{ponnet_forward.2} parent=23 // pred_fallthru
          _
      $region24: #{ponnet_forward.2} parent=5 // pred_fallthru
        _
      %p329 = scmp.le.s32.totalorder 1, %s16
      %p330 = scmp.lt.s32.totalorder %s16, 5
      %p331 = pnand %p329, %p330
      %p332 = pneg %p331
      // Predicated region
      $region41: #{ponnet_forward.2} parent=5 // pred_check
        _
      $region42: #{ponnet_forward.2} parent=5 // pred_check_branch
        %334 = sbr.rel (%p331) target = $region44
      $region43: #{ponnet_forward.2} parent=5 // pred_region
        %s335 = ssub.s32 %s16, 1
        // Predicated region
        $region45: #{ponnet_forward.2} parent=43 // pred_check
          %p336 = pneg %p176
        $region46: #{ponnet_forward.2} parent=43 // pred_check_branch
          %338 = sbr.rel (%p336) target = $region48
        $region47: #{ponnet_forward.2} parent=43 // pred_region
          %339 = dma.done [#allocation3], 32
        $region48: #{ponnet_forward.2} parent=43 // pred_fallthru
          _
        %340 = sfence
        %p341 = scmp.lt.s32.totalorder %s25, 1
        %s342 = scalar_select %p341, %s25, 1
        %p343 = scmp.lt.s32.totalorder %s26, 1
        %s344 = scalar_select %p343, %s26, 1
        %s345 = smul.addr %s344, 150
        %s346 = smul.addr %s342, 300
        %s347 = sadd.s32 %s345, %s346
        %s348 = smul.addr %s347, 4
        %s349 = scalar_lea.vmem %s0, %s348
        %p350 = pneg %p56
        %p351 = pneg %p53
        %p352 = scmp.lt.s32.totalorder %s25, 1
        %s353 = scalar_select %p352, %s25, 1
        %s354 = smul.addr %s353, 192
        %s355 = smul.addr %s354, 4
        %s356 = scalar_lea.vmem %s1, %s355
        %p357 = pneg %p82
        %p358 = pneg %p79
        %p359 = scmp.lt.s32.totalorder %s25, 1
        %s360 = scalar_select %p359, %s25, 1
        %s361 = smul.addr %s360, 512
        %s362 = smul.addr %s361, 4
        %s363 = scalar_lea.vmem %s2, %s362
        %p364 = pneg %p108
        %p365 = pneg %p105
        %p366 = scmp.lt.s32.totalorder %s25, 1
        %s367 = scalar_select %p366, %s25, 1
        %s368 = smul.addr %s367, 4
        %s369 = smul.addr %s368, 8
        %s370 = scalar_lea.vmem %s3, %s369
        %p371 = pneg %p134
        %p372 = pneg %p131
        %p373 = pneg %p155
        %p374 = pneg %p152
        %p375 = pneg %p176
        %p376 = pneg %p173
        %p377 = pneg %p204
        %p378 = pneg %p201
        %p379 = scmp.lt.s32.totalorder %s25, 1
        %s380 = scalar_select %p379, %s25, 1
        %p381 = scmp.lt.s32.totalorder %s26, 1
        %s382 = scalar_select %p381, %s26, 1
        %s383 = smul.addr %s382, 4
        %s384 = smul.addr %s380, 8
        %s385 = sadd.s32 %s383, %s384
        %s386 = scalar_lea.vmem %s6, %s385
        %p387 = pneg %p232
        %p388 = pneg %p229
        %p389 = scmp.lt.s32.totalorder %s25, 1
        %s390 = scalar_select %p389, %s25, 1
        %p391 = scmp.lt.s32.totalorder %s26, 1
        %s392 = scalar_select %p391, %s26, 1
        %s393 = smul.addr %s392, 25
        %s394 = smul.addr %s390, 50
        %s395 = sadd.s32 %s393, %s394
        %s396 = smul.addr %s395, 8
        %s397 = scalar_lea.vmem %s7, %s396
        %p398 = pneg %p260
        %p399 = pneg %p257
        %p400 = scmp.lt.s32.totalorder %s25, 1
        %s401 = scalar_select %p400, %s25, 1
        %p402 = scmp.lt.s32.totalorder %s26, 1
        %s403 = scalar_select %p402, %s26, 1
        %s404 = smul.addr %s401, 2
        %s405 = sadd.s32 %s403, %s404
        %s406 = scalar_lea.vmem %s8, %s405
        %p407 = scmp.lt.s32.totalorder %s25, 1
        %s408 = scalar_select %p407, %s25, 1
        %p409 = scmp.lt.s32.totalorder %s26, 1
        %s410 = scalar_select %p409, %s26, 1
        %s411 = smul.addr %s410, 150
        %s412 = smul.addr %s408, 300
        %s413 = sadd.s32 %s411, %s412
        %s414 = smul.addr %s413, 4
        %s415 = scalar_lea.vmem %s0, %s414
        %p416 = scmp.lt.s32.totalorder %s25, 1
        %s417 = scalar_select %p416, %s25, 1
        %s418 = smul.addr %s417, 192
        %s419 = smul.addr %s418, 4
        %s420 = scalar_lea.vmem %s1, %s419
        %p421 = scmp.lt.s32.totalorder %s25, 1
        %s422 = scalar_select %p421, %s25, 1
        %s423 = smul.addr %s422, 512
        %s424 = smul.addr %s423, 4
        %s425 = scalar_lea.vmem %s2, %s424
        %p426 = scmp.lt.s32.totalorder %s25, 1
        %s427 = scalar_select %p426, %s25, 1
        %s428 = smul.addr %s427, 4
        %s429 = smul.addr %s428, 8
        %s430 = scalar_lea.vmem %s3, %s429
        %p431 = scmp.lt.s32.totalorder %s25, 1
        %s432 = scalar_select %p431, %s25, 1
        %p433 = scmp.lt.s32.totalorder %s26, 1
        %s434 = scalar_select %p433, %s26, 1
        %s435 = smul.addr %s434, 4
        %s436 = smul.addr %s432, 8
        %s437 = sadd.s32 %s435, %s436
        %s438 = scalar_lea.vmem %s6, %s437
        %p439 = scmp.lt.s32.totalorder %s25, 1
        %s440 = scalar_select %p439, %s25, 1
        %p441 = scmp.lt.s32.totalorder %s26, 1
        %s442 = scalar_select %p441, %s26, 1
        %s443 = smul.addr %s442, 25
        %s444 = smul.addr %s440, 50
        %s445 = sadd.s32 %s443, %s444
        %s446 = smul.addr %s445, 8
        %s447 = scalar_lea.vmem %s7, %s446
        %p448 = scmp.lt.s32.totalorder %s25, 1
        %s449 = scalar_select %p448, %s25, 1
        %p450 = scmp.lt.s32.totalorder %s26, 1
        %s451 = scalar_select %p450, %s26, 1
        %s452 = smul.addr %s449, 2
        %s453 = sadd.s32 %s451, %s452
        %s454 = scalar_lea.vmem %s8, %s453
        %v456 = vld [vmem:[%s415] sm:$0xff]
        %v457 = vld [vmem:[%s415 + $0x8] sm:$0xff]
        %v458 = vld [vmem:[%s415 + $0x10] sm:$0xff]
        %v459 = vld [vmem:[%s415 + $0x18] sm:$0xff]
        %v460 = vld [vmem:[%s415 + $0x20] sm:$0xff]
        %v461 = vld [vmem:[%s415 + $0x28] sm:$0xff]
        %v462 = vld [vmem:[%s415 + $0x30] sm:$0xff]
        %v463 = vld [vmem:[%s415 + $0x38] sm:$0xff]
        %v464 = vld [vmem:[%s415 + $0x40] sm:$0xff]
        %v465 = vld [vmem:[%s415 + $0x48] sm:$0xff]
        %v466 = vld [vmem:[%s415 + $0x50] sm:$0xff]
        %v467 = vld [vmem:[%s415 + $0x58] sm:$0xff]
        %v468 = vld [vmem:[%s415 + $0x60] sm:$0xff]
        %v469 = vld [vmem:[%s415 + $0x68] sm:$0xff]
        %v470 = vld [vmem:[%s415 + $0x70] sm:$0xff]
        %v471 = vld [vmem:[%s415 + $0x78] sm:$0xff]
        %v472 = vld [vmem:[%s415 + $0x80] sm:$0xff]
        %v473 = vld [vmem:[%s415 + $0x88] sm:$0xff]
        %v474 = vld [vmem:[%s415 + $0x90] sm:$0xff]
        %v475 = vld [vmem:[%s415 + $0x98] sm:$0xff]
        %v476 = vld [vmem:[%s415 + $0xa0] sm:$0xff]
        %v477 = vld [vmem:[%s415 + $0xa8] sm:$0xff]
        %v478 = vld [vmem:[%s415 + $0xb0] sm:$0xff]
        %v479 = vld [vmem:[%s415 + $0xb8] sm:$0xff]
        %v480 = vld [vmem:[%s415 + $0xc0] sm:$0xff]
        %v481 = vld [vmem:[%s415 + $0xc8] sm:$0xff]
        %v482 = vld [vmem:[%s415 + $0xd0] sm:$0xff]
        %v483 = vld [vmem:[%s415 + $0xd8] sm:$0xff]
        %v484 = vld [vmem:[%s415 + $0xe0] sm:$0xff]
        %v485 = vld [vmem:[%s415 + $0xe8] sm:$0xff]
        %v486 = vld [vmem:[%s415 + $0xf0] sm:$0xff]
        %v487 = vld [vmem:[%s415 + $0xf8] sm:$0xff]
        %v488 = vld [vmem:[%s415 + $0x100] sm:$0xff]
        %v489 = vld [vmem:[%s415 + $0x108] sm:$0xff]
        %v490 = vld [vmem:[%s415 + $0x110] sm:$0xff]
        %v491 = vld [vmem:[%s415 + $0x118] sm:$0xff]
        %v492 = vld [vmem:[%s415 + $0x120] sm:$0xff]
        %v493 = vld [vmem:[%s415 + $0x128] sm:$0xff]
        %v494 = vld [vmem:[%s415 + $0x130] sm:$0xff]
        %v495 = vld [vmem:[%s415 + $0x138] sm:$0xff]
        %v496 = vld [vmem:[%s415 + $0x140] sm:$0xff]
        %v497 = vld [vmem:[%s415 + $0x148] sm:$0xff]
        %v498 = vld [vmem:[%s415 + $0x150] sm:$0xff]
        %v499 = vld [vmem:[%s415 + $0x158] sm:$0xff]
        %v500 = vld [vmem:[%s415 + $0x160] sm:$0xff]
        %v501 = vld [vmem:[%s415 + $0x168] sm:$0xff]
        %v502 = vld [vmem:[%s415 + $0x170] sm:$0xff]
        %v503 = vld [vmem:[%s415 + $0x178] sm:$0xff]
        %v504 = vld [vmem:[%s415 + $0x180] sm:$0xff]
        %v505 = vld [vmem:[%s415 + $0x188] sm:$0xff]
        %v506 = vld [vmem:[%s415 + $0x190] sm:$0xff]
        %v507 = vld [vmem:[%s415 + $0x198] sm:$0xff]
        %v508 = vld [vmem:[%s415 + $0x1a0] sm:$0xff]
        %v509 = vld [vmem:[%s415 + $0x1a8] sm:$0xff]
        %v510 = vld [vmem:[%s415 + $0x1b0] sm:$0xff]
        %v511 = vld [vmem:[%s415 + $0x1b8] sm:$0xff]
        %v512 = vld [vmem:[%s415 + $0x1c0] sm:$0xff]
        %v513 = vld [vmem:[%s415 + $0x1c8] sm:$0xff]
        %v514 = vld [vmem:[%s415 + $0x1d0] sm:$0xff]
        %v515 = vld [vmem:[%s415 + $0x1d8] sm:$0xff]
        %v516 = vld [vmem:[%s415 + $0x1e0] sm:$0xff]
        %v517 = vld [vmem:[%s415 + $0x1e8] sm:$0xff]
        %v518 = vld [vmem:[%s415 + $0x1f0] sm:$0xff]
        %v519 = vld [vmem:[%s415 + $0x1f8] sm:$0xff]
        %v520 = vld [vmem:[%s415 + $0x200] sm:$0xff]
        %v521 = vld [vmem:[%s415 + $0x208] sm:$0xff]
        %v522 = vld [vmem:[%s415 + $0x210] sm:$0xff]
        %v523 = vld [vmem:[%s415 + $0x218] sm:$0xff]
        %v524 = vld [vmem:[%s415 + $0x220] sm:$0xff]
        %v525 = vld [vmem:[%s415 + $0x228] sm:$0xff]
        %v526 = vld [vmem:[%s415 + $0x230] sm:$0xff]
        %v527 = vld [vmem:[%s415 + $0x238] sm:$0xff]
        %v528 = vld [vmem:[%s415 + $0x240] sm:$0x33]
        %v529 = vld [vmem:[%s415 + $0x248] sm:$0x33]
        %v530 = vld [vmem:[%s415 + $0x250] sm:$0x33]
        %v531 = vld [vmem:[%s420] sm:$0xff]
        %v532 = vld [vmem:[%s420 + $0x8] sm:$0xff]
        %v533 = vld [vmem:[%s420 + $0x10] sm:$0xff]
        %v534 = vld [vmem:[%s420 + $0x18] sm:$0xff]
        %v535 = vld [vmem:[%s420 + $0x20] sm:$0xff]
        %v536 = vld [vmem:[%s420 + $0x28] sm:$0xff]
        %v537 = vld [vmem:[%s420 + $0x30] sm:$0xff]
        %v538 = vld [vmem:[%s420 + $0x38] sm:$0xff]
        %v539 = vld [vmem:[%s420 + $0x40] sm:$0xff]
        %v540 = vld [vmem:[%s420 + $0x48] sm:$0xff]
        %v541 = vld [vmem:[%s420 + $0x50] sm:$0xff]
        %v542 = vld [vmem:[%s420 + $0x58] sm:$0xff]
        %v543 = vld [vmem:[%s420 + $0x60] sm:$0xff]
        %v544 = vld [vmem:[%s420 + $0x68] sm:$0xff]
        %v545 = vld [vmem:[%s420 + $0x70] sm:$0xff]
        %v546 = vld [vmem:[%s420 + $0x78] sm:$0xff]
        %v547 = vld [vmem:[%s420 + $0x80] sm:$0xff]
        %v548 = vld [vmem:[%s420 + $0x88] sm:$0xff]
        %v549 = vld [vmem:[%s420 + $0x90] sm:$0xff]
        %v550 = vld [vmem:[%s420 + $0x98] sm:$0xff]
        %v551 = vld [vmem:[%s420 + $0xa0] sm:$0xff]
        %v552 = vld [vmem:[%s420 + $0xa8] sm:$0xff]
        %v553 = vld [vmem:[%s420 + $0xb0] sm:$0xff]
        %v554 = vld [vmem:[%s420 + $0xb8] sm:$0xff]
        %v555 = vld [vmem:[%s420 + $0xc0] sm:$0xff]
        %v556 = vld [vmem:[%s420 + $0xc8] sm:$0xff]
        %v557 = vld [vmem:[%s420 + $0xd0] sm:$0xff]
        %v558 = vld [vmem:[%s420 + $0xd8] sm:$0xff]
        %v559 = vld [vmem:[%s420 + $0xe0] sm:$0xff]
        %v560 = vld [vmem:[%s420 + $0xe8] sm:$0xff]
        %v561 = vld [vmem:[%s420 + $0xf0] sm:$0xff]
        %v562 = vld [vmem:[%s420 + $0xf8] sm:$0xff]
        %v563 = vld [vmem:[%s420 + $0x100] sm:$0xff]
        %v564 = vld [vmem:[%s420 + $0x108] sm:$0xff]
        %v565 = vld [vmem:[%s420 + $0x110] sm:$0xff]
        %v566 = vld [vmem:[%s420 + $0x118] sm:$0xff]
        %v567 = vld [vmem:[%s420 + $0x120] sm:$0xff]
        %v568 = vld [vmem:[%s420 + $0x128] sm:$0xff]
        %v569 = vld [vmem:[%s420 + $0x130] sm:$0xff]
        %v570 = vld [vmem:[%s420 + $0x138] sm:$0xff]
        %v571 = vld [vmem:[%s420 + $0x140] sm:$0xff]
        %v572 = vld [vmem:[%s420 + $0x148] sm:$0xff]
        %v573 = vld [vmem:[%s420 + $0x150] sm:$0xff]
        %v574 = vld [vmem:[%s420 + $0x158] sm:$0xff]
        %v575 = vld [vmem:[%s420 + $0x160] sm:$0xff]
        %v576 = vld [vmem:[%s420 + $0x168] sm:$0xff]
        %v577 = vld [vmem:[%s420 + $0x170] sm:$0xff]
        %v578 = vld [vmem:[%s420 + $0x178] sm:$0xff]
        %v579 = vld [vmem:[%s420 + $0x180] sm:$0xff]
        %v580 = vld [vmem:[%s420 + $0x188] sm:$0xff]
        %v581 = vld [vmem:[%s420 + $0x190] sm:$0xff]
        %v582 = vld [vmem:[%s420 + $0x198] sm:$0xff]
        %v583 = vld [vmem:[%s420 + $0x1a0] sm:$0xff]
        %v584 = vld [vmem:[%s420 + $0x1a8] sm:$0xff]
        %v585 = vld [vmem:[%s420 + $0x1b0] sm:$0xff]
        %v586 = vld [vmem:[%s420 + $0x1b8] sm:$0xff]
        %v587 = vld [vmem:[%s420 + $0x1c0] sm:$0xff]
        %v588 = vld [vmem:[%s420 + $0x1c8] sm:$0xff]
        %v589 = vld [vmem:[%s420 + $0x1d0] sm:$0xff]
        %v590 = vld [vmem:[%s420 + $0x1d8] sm:$0xff]
        %v591 = vld [vmem:[%s420 + $0x1e0] sm:$0xff]
        %v592 = vld [vmem:[%s420 + $0x1e8] sm:$0xff]
        %v593 = vld [vmem:[%s420 + $0x1f0] sm:$0xff]
        %v594 = vld [vmem:[%s420 + $0x1f8] sm:$0xff]
        %v595 = vld [vmem:[%s420 + $0x200] sm:$0xff]
        %v596 = vld [vmem:[%s420 + $0x208] sm:$0xff]
        %v597 = vld [vmem:[%s420 + $0x210] sm:$0xff]
        %v598 = vld [vmem:[%s420 + $0x218] sm:$0xff]
        %v599 = vld [vmem:[%s420 + $0x220] sm:$0xff]
        %v600 = vld [vmem:[%s420 + $0x228] sm:$0xff]
        %v601 = vld [vmem:[%s420 + $0x230] sm:$0xff]
        %v602 = vld [vmem:[%s420 + $0x238] sm:$0xff]
        %v603 = vld [vmem:[%s420 + $0x240] sm:$0xff]
        %v604 = vld [vmem:[%s420 + $0x248] sm:$0xff]
        %v605 = vld [vmem:[%s420 + $0x250] sm:$0xff]
        %v606 = vld [vmem:[%s420 + $0x258] sm:$0xff]
        %v607 = vld [vmem:[%s420 + $0x260] sm:$0xff]
        %v608 = vld [vmem:[%s420 + $0x268] sm:$0xff]
        %v609 = vld [vmem:[%s420 + $0x270] sm:$0xff]
        %v610 = vld [vmem:[%s420 + $0x278] sm:$0xff]
        %v611 = vld [vmem:[%s420 + $0x280] sm:$0xff]
        %v612 = vld [vmem:[%s420 + $0x288] sm:$0xff]
        %v613 = vld [vmem:[%s420 + $0x290] sm:$0xff]
        %v614 = vld [vmem:[%s420 + $0x298] sm:$0xff]
        %v615 = vld [vmem:[%s420 + $0x2a0] sm:$0xff]
        %v616 = vld [vmem:[%s420 + $0x2a8] sm:$0xff]
        %v617 = vld [vmem:[%s420 + $0x2b0] sm:$0xff]
        %v618 = vld [vmem:[%s420 + $0x2b8] sm:$0xff]
        %v619 = vld [vmem:[%s420 + $0x2c0] sm:$0xff]
        %v620 = vld [vmem:[%s420 + $0x2c8] sm:$0xff]
        %v621 = vld [vmem:[%s420 + $0x2d0] sm:$0xff]
        %v622 = vld [vmem:[%s420 + $0x2d8] sm:$0xff]
        %v623 = vld [vmem:[%s420 + $0x2e0] sm:$0xff]
        %v624 = vld [vmem:[%s420 + $0x2e8] sm:$0xff]
        %v625 = vld [vmem:[%s420 + $0x2f0] sm:$0xff]
        %v626 = vld [vmem:[%s420 + $0x2f8] sm:$0xff]
        %v627 = vld [vmem:[%s430] ss:$8 sm:$0x3]
        %v629 = vlaneseq
        %v630 = vshrl.u32 %v629, 7
        %v631 = vsub.s32 0, %v630
        %v632 = vrot.slane %v627, %v631
        %v633 = vlaneseq
        %v634 = vshrl.u32 %v633, 7
        %v635 = vsub.s32 1, %v634
        %v636 = vrot.slane %v627, %v635
        %v714 = vunpack.c.l.b16 %v456
        %v715 = vunpack.c.h.b16 %v456
        %v716 = vunpack.c.l.b16 %v457
        %v717 = vunpack.c.h.b16 %v457
        %v718 = vunpack.c.l.b16 %v458
        %v719 = vunpack.c.h.b16 %v458
        %v720 = vunpack.c.l.b16 %v459
        %v721 = vunpack.c.h.b16 %v459
        %v722 = vunpack.c.l.b16 %v460
        %v723 = vunpack.c.h.b16 %v460
        %v724 = vunpack.c.l.b16 %v461
        %v725 = vunpack.c.h.b16 %v461
        %v726 = vunpack.c.l.b16 %v462
        %v727 = vunpack.c.h.b16 %v462
        %v728 = vunpack.c.l.b16 %v463
        %v729 = vunpack.c.h.b16 %v463
        %v730 = vunpack.c.l.b16 %v464
        %v731 = vunpack.c.h.b16 %v464
        %v732 = vunpack.c.l.b16 %v465
        %v733 = vunpack.c.h.b16 %v465
        %v734 = vunpack.c.l.b16 %v466
        %v735 = vunpack.c.h.b16 %v466
        %v736 = vunpack.c.l.b16 %v467
        %v737 = vunpack.c.h.b16 %v467
        %v738 = vunpack.c.l.b16 %v468
        %v739 = vunpack.c.h.b16 %v468
        %v740 = vunpack.c.l.b16 %v469
        %v741 = vunpack.c.h.b16 %v469
        %v742 = vunpack.c.l.b16 %v470
        %v743 = vunpack.c.h.b16 %v470
        %v744 = vunpack.c.l.b16 %v471
        %v745 = vunpack.c.h.b16 %v471
        %v746 = vunpack.c.l.b16 %v472
        %v747 = vunpack.c.h.b16 %v472
        %v748 = vunpack.c.l.b16 %v473
        %v749 = vunpack.c.h.b16 %v473
        %v750 = vunpack.c.l.b16 %v474
        %v751 = vunpack.c.h.b16 %v474
        %v752 = vunpack.c.l.b16 %v475
        %v753 = vunpack.c.h.b16 %v475
        %v754 = vunpack.c.l.b16 %v476
        %v755 = vunpack.c.h.b16 %v476
        %v756 = vunpack.c.l.b16 %v477
        %v757 = vunpack.c.h.b16 %v477
        %v758 = vunpack.c.l.b16 %v478
        %v759 = vunpack.c.h.b16 %v478
        %v760 = vunpack.c.l.b16 %v479
        %v761 = vunpack.c.h.b16 %v479
        %v762 = vunpack.c.l.b16 %v480
        %v763 = vunpack.c.h.b16 %v480
        %v764 = vunpack.c.l.b16 %v481
        %v765 = vunpack.c.h.b16 %v481
        %v766 = vunpack.c.l.b16 %v482
        %v767 = vunpack.c.h.b16 %v482
        %v768 = vunpack.c.l.b16 %v483
        %v769 = vunpack.c.h.b16 %v483
        %v770 = vunpack.c.l.b16 %v484
        %v771 = vunpack.c.h.b16 %v484
        %v772 = vunpack.c.l.b16 %v485
        %v773 = vunpack.c.h.b16 %v485
        %v774 = vunpack.c.l.b16 %v486
        %v775 = vunpack.c.h.b16 %v486
        %v776 = vunpack.c.l.b16 %v487
        %v777 = vunpack.c.h.b16 %v487
        %v778 = vunpack.c.l.b16 %v488
        %v779 = vunpack.c.h.b16 %v488
        %v780 = vunpack.c.l.b16 %v489
        %v781 = vunpack.c.h.b16 %v489
        %v782 = vunpack.c.l.b16 %v490
        %v783 = vunpack.c.h.b16 %v490
        %v784 = vunpack.c.l.b16 %v491
        %v785 = vunpack.c.h.b16 %v491
        %v786 = vunpack.c.l.b16 %v492
        %v787 = vunpack.c.h.b16 %v492
        %v788 = vunpack.c.l.b16 %v493
        %v789 = vunpack.c.h.b16 %v493
        %v790 = vunpack.c.l.b16 %v494
        %v791 = vunpack.c.h.b16 %v494
        %v792 = vunpack.c.l.b16 %v495
        %v793 = vunpack.c.h.b16 %v495
        %v794 = vunpack.c.l.b16 %v496
        %v795 = vunpack.c.h.b16 %v496
        %v796 = vunpack.c.l.b16 %v497
        %v797 = vunpack.c.h.b16 %v497
        %v798 = vunpack.c.l.b16 %v498
        %v799 = vunpack.c.h.b16 %v498
        %v800 = vunpack.c.l.b16 %v499
        %v801 = vunpack.c.h.b16 %v499
        %v802 = vunpack.c.l.b16 %v500
        %v803 = vunpack.c.h.b16 %v500
        %v804 = vunpack.c.l.b16 %v501
        %v805 = vunpack.c.h.b16 %v501
        %v806 = vunpack.c.l.b16 %v502
        %v807 = vunpack.c.h.b16 %v502
        %v808 = vunpack.c.l.b16 %v503
        %v809 = vunpack.c.h.b16 %v503
        %v810 = vunpack.c.l.b16 %v504
        %v811 = vunpack.c.h.b16 %v504
        %v812 = vunpack.c.l.b16 %v505
        %v813 = vunpack.c.h.b16 %v505
        %v814 = vunpack.c.l.b16 %v506
        %v815 = vunpack.c.h.b16 %v506
        %v816 = vunpack.c.l.b16 %v507
        %v817 = vunpack.c.h.b16 %v507
        %v818 = vunpack.c.l.b16 %v508
        %v819 = vunpack.c.h.b16 %v508
        %v820 = vunpack.c.l.b16 %v509
        %v821 = vunpack.c.h.b16 %v509
        %v822 = vunpack.c.l.b16 %v510
        %v823 = vunpack.c.h.b16 %v510
        %v824 = vunpack.c.l.b16 %v511
        %v825 = vunpack.c.h.b16 %v511
        %v826 = vunpack.c.l.b16 %v512
        %v827 = vunpack.c.h.b16 %v512
        %v828 = vunpack.c.l.b16 %v513
        %v829 = vunpack.c.h.b16 %v513
        %v830 = vunpack.c.l.b16 %v514
        %v831 = vunpack.c.h.b16 %v514
        %v832 = vunpack.c.l.b16 %v515
        %v833 = vunpack.c.h.b16 %v515
        %v834 = vunpack.c.l.b16 %v516
        %v835 = vunpack.c.h.b16 %v516
        %v836 = vunpack.c.l.b16 %v517
        %v837 = vunpack.c.h.b16 %v517
        %v838 = vunpack.c.l.b16 %v518
        %v839 = vunpack.c.h.b16 %v518
        %v840 = vunpack.c.l.b16 %v519
        %v841 = vunpack.c.h.b16 %v519
        %v842 = vunpack.c.l.b16 %v520
        %v843 = vunpack.c.h.b16 %v520
        %v844 = vunpack.c.l.b16 %v521
        %v845 = vunpack.c.h.b16 %v521
        %v846 = vunpack.c.l.b16 %v522
        %v847 = vunpack.c.h.b16 %v522
        %v848 = vunpack.c.l.b16 %v523
        %v849 = vunpack.c.h.b16 %v523
        %v850 = vunpack.c.l.b16 %v524
        %v851 = vunpack.c.h.b16 %v524
        %v852 = vunpack.c.l.b16 %v525
        %v853 = vunpack.c.h.b16 %v525
        %v854 = vunpack.c.l.b16 %v526
        %v855 = vunpack.c.h.b16 %v526
        %v856 = vunpack.c.l.b16 %v527
        %v857 = vunpack.c.h.b16 %v527
        %v858 = vunpack.c.l.b16 %v528
        %v859 = vunpack.c.h.b16 %v528
        %v860 = vunpack.c.l.b16 %v529
        %v861 = vunpack.c.h.b16 %v529
        %v862 = vunpack.c.l.b16 %v530
        %v863 = vunpack.c.h.b16 %v530
        %v864 = vpack.c.b16 %v720, %v714
        %v865 = vpack.c.b16 %v721, %v715
        %v866 = vpack.c.b16 %v722, %v716
        %v867 = vpack.c.b16 %v723, %v717
        %v868 = vpack.c.b16 %v724, %v718
        %v869 = vpack.c.b16 %v725, %v719
        %v870 = vpack.c.b16 %v732, %v726
        %v871 = vpack.c.b16 %v733, %v727
        %v872 = vpack.c.b16 %v734, %v728
        %v873 = vpack.c.b16 %v735, %v729
        %v874 = vpack.c.b16 %v736, %v730
        %v875 = vpack.c.b16 %v737, %v731
        %v876 = vpack.c.b16 %v744, %v738
        %v877 = vpack.c.b16 %v745, %v739
        %v878 = vpack.c.b16 %v746, %v740
        %v879 = vpack.c.b16 %v747, %v741
        %v880 = vpack.c.b16 %v748, %v742
        %v881 = vpack.c.b16 %v749, %v743
        %v882 = vpack.c.b16 %v756, %v750
        %v883 = vpack.c.b16 %v757, %v751
        %v884 = vpack.c.b16 %v758, %v752
        %v885 = vpack.c.b16 %v759, %v753
        %v886 = vpack.c.b16 %v760, %v754
        %v887 = vpack.c.b16 %v761, %v755
        %v888 = vpack.c.b16 %v768, %v762
        %v889 = vpack.c.b16 %v769, %v763
        %v890 = vpack.c.b16 %v770, %v764
        %v891 = vpack.c.b16 %v771, %v765
        %v892 = vpack.c.b16 %v772, %v766
        %v893 = vpack.c.b16 %v773, %v767
        %v894 = vpack.c.b16 %v780, %v774
        %v895 = vpack.c.b16 %v781, %v775
        %v896 = vpack.c.b16 %v782, %v776
        %v897 = vpack.c.b16 %v783, %v777
        %v898 = vpack.c.b16 %v784, %v778
        %v899 = vpack.c.b16 %v785, %v779
        %v900 = vpack.c.b16 %v792, %v786
        %v901 = vpack.c.b16 %v793, %v787
        %v902 = vpack.c.b16 %v794, %v788
        %v903 = vpack.c.b16 %v795, %v789
        %v904 = vpack.c.b16 %v796, %v790
        %v905 = vpack.c.b16 %v797, %v791
        %v906 = vpack.c.b16 %v804, %v798
        %v907 = vpack.c.b16 %v805, %v799
        %v908 = vpack.c.b16 %v806, %v800
        %v909 = vpack.c.b16 %v807, %v801
        %v910 = vpack.c.b16 %v808, %v802
        %v911 = vpack.c.b16 %v809, %v803
        %v912 = vpack.c.b16 %v816, %v810
        %v913 = vpack.c.b16 %v817, %v811
        %v914 = vpack.c.b16 %v818, %v812
        %v915 = vpack.c.b16 %v819, %v813
        %v916 = vpack.c.b16 %v820, %v814
        %v917 = vpack.c.b16 %v821, %v815
        %v918 = vpack.c.b16 %v828, %v822
        %v919 = vpack.c.b16 %v829, %v823
        %v920 = vpack.c.b16 %v830, %v824
        %v921 = vpack.c.b16 %v831, %v825
        %v922 = vpack.c.b16 %v832, %v826
        %v923 = vpack.c.b16 %v833, %v827
        %v924 = vpack.c.b16 %v840, %v834
        %v925 = vpack.c.b16 %v841, %v835
        %v926 = vpack.c.b16 %v842, %v836
        %v927 = vpack.c.b16 %v843, %v837
        %v928 = vpack.c.b16 %v844, %v838
        %v929 = vpack.c.b16 %v845, %v839
        %v930 = vpack.c.b16 %v852, %v846
        %v931 = vpack.c.b16 %v853, %v847
        %v932 = vpack.c.b16 %v854, %v848
        %v933 = vpack.c.b16 %v855, %v849
        %v934 = vpack.c.b16 %v856, %v850
        %v935 = vpack.c.b16 %v857, %v851
        %v936 = vpack.c.b16 %v858, %v858
        %v937 = vpack.c.b16 %v859, %v859
        %v938 = vpack.c.b16 %v860, %v860
        %v939 = vpack.c.b16 %v861, %v861
        %v940 = vpack.c.b16 %v862, %v862
        %v941 = vpack.c.b16 %v863, %v863
        %v1116 = vunpack.c.l.b16 %v531
        %v1117 = vunpack.c.h.b16 %v531
        %v1118 = vunpack.c.l.b16 %v532
        %v1119 = vunpack.c.h.b16 %v532
        %v1120 = vunpack.c.l.b16 %v533
        %v1121 = vunpack.c.h.b16 %v533
        %v1122 = vunpack.c.l.b16 %v534
        %v1123 = vunpack.c.h.b16 %v534
        %v1124 = vunpack.c.l.b16 %v535
        %v1125 = vunpack.c.h.b16 %v535
        %v1126 = vunpack.c.l.b16 %v536
        %v1127 = vunpack.c.h.b16 %v536
        %v1128 = vunpack.c.l.b16 %v537
        %v1129 = vunpack.c.h.b16 %v537
        %v1130 = vunpack.c.l.b16 %v538
        %v1131 = vunpack.c.h.b16 %v538
        %v1132 = vunpack.c.l.b16 %v539
        %v1133 = vunpack.c.h.b16 %v539
        %v1134 = vunpack.c.l.b16 %v540
        %v1135 = vunpack.c.h.b16 %v540
        %v1136 = vunpack.c.l.b16 %v541
        %v1137 = vunpack.c.h.b16 %v541
        %v1138 = vunpack.c.l.b16 %v542
        %v1139 = vunpack.c.h.b16 %v542
        %v1140 = vunpack.c.l.b16 %v543
        %v1141 = vunpack.c.h.b16 %v543
        %v1142 = vunpack.c.l.b16 %v544
        %v1143 = vunpack.c.h.b16 %v544
        %v1144 = vunpack.c.l.b16 %v545
        %v1145 = vunpack.c.h.b16 %v545
        %v1146 = vunpack.c.l.b16 %v546
        %v1147 = vunpack.c.h.b16 %v546
        %v1148 = vunpack.c.l.b16 %v547
        %v1149 = vunpack.c.h.b16 %v547
        %v1150 = vunpack.c.l.b16 %v548
        %v1151 = vunpack.c.h.b16 %v548
        %v1152 = vunpack.c.l.b16 %v549
        %v1153 = vunpack.c.h.b16 %v549
        %v1154 = vunpack.c.l.b16 %v550
        %v1155 = vunpack.c.h.b16 %v550
        %v1156 = vunpack.c.l.b16 %v551
        %v1157 = vunpack.c.h.b16 %v551
        %v1158 = vunpack.c.l.b16 %v552
        %v1159 = vunpack.c.h.b16 %v552
        %v1160 = vunpack.c.l.b16 %v553
        %v1161 = vunpack.c.h.b16 %v553
        %v1162 = vunpack.c.l.b16 %v554
        %v1163 = vunpack.c.h.b16 %v554
        %v1164 = vunpack.c.l.b16 %v555
        %v1165 = vunpack.c.h.b16 %v555
        %v1166 = vunpack.c.l.b16 %v556
        %v1167 = vunpack.c.h.b16 %v556
        %v1168 = vunpack.c.l.b16 %v557
        %v1169 = vunpack.c.h.b16 %v557
        %v1170 = vunpack.c.l.b16 %v558
        %v1171 = vunpack.c.h.b16 %v558
        %v1172 = vunpack.c.l.b16 %v559
        %v1173 = vunpack.c.h.b16 %v559
        %v1174 = vunpack.c.l.b16 %v560
        %v1175 = vunpack.c.h.b16 %v560
        %v1176 = vunpack.c.l.b16 %v561
        %v1177 = vunpack.c.h.b16 %v561
        %v1178 = vunpack.c.l.b16 %v562
        %v1179 = vunpack.c.h.b16 %v562
        %v1180 = vunpack.c.l.b16 %v563
        %v1181 = vunpack.c.h.b16 %v563
        %v1182 = vunpack.c.l.b16 %v564
        %v1183 = vunpack.c.h.b16 %v564
        %v1184 = vunpack.c.l.b16 %v565
        %v1185 = vunpack.c.h.b16 %v565
        %v1186 = vunpack.c.l.b16 %v566
        %v1187 = vunpack.c.h.b16 %v566
        %v1188 = vunpack.c.l.b16 %v567
        %v1189 = vunpack.c.h.b16 %v567
        %v1190 = vunpack.c.l.b16 %v568
        %v1191 = vunpack.c.h.b16 %v568
        %v1192 = vunpack.c.l.b16 %v569
        %v1193 = vunpack.c.h.b16 %v569
        %v1194 = vunpack.c.l.b16 %v570
        %v1195 = vunpack.c.h.b16 %v570
        %v1196 = vunpack.c.l.b16 %v571
        %v1197 = vunpack.c.h.b16 %v571
        %v1198 = vunpack.c.l.b16 %v572
        %v1199 = vunpack.c.h.b16 %v572
        %v1200 = vunpack.c.l.b16 %v573
        %v1201 = vunpack.c.h.b16 %v573
        %v1202 = vunpack.c.l.b16 %v574
        %v1203 = vunpack.c.h.b16 %v574
        %v1204 = vunpack.c.l.b16 %v575
        %v1205 = vunpack.c.h.b16 %v575
        %v1206 = vunpack.c.l.b16 %v576
        %v1207 = vunpack.c.h.b16 %v576
        %v1208 = vunpack.c.l.b16 %v577
        %v1209 = vunpack.c.h.b16 %v577
        %v1210 = vunpack.c.l.b16 %v578
        %v1211 = vunpack.c.h.b16 %v578
        %v1212 = vunpack.c.l.b16 %v579
        %v1213 = vunpack.c.h.b16 %v579
        %v1214 = vunpack.c.l.b16 %v580
        %v1215 = vunpack.c.h.b16 %v580
        %v1216 = vunpack.c.l.b16 %v581
        %v1217 = vunpack.c.h.b16 %v581
        %v1218 = vunpack.c.l.b16 %v582
        %v1219 = vunpack.c.h.b16 %v582
        %v1220 = vunpack.c.l.b16 %v583
        %v1221 = vunpack.c.h.b16 %v583
        %v1222 = vunpack.c.l.b16 %v584
        %v1223 = vunpack.c.h.b16 %v584
        %v1224 = vunpack.c.l.b16 %v585
        %v1225 = vunpack.c.h.b16 %v585
        %v1226 = vunpack.c.l.b16 %v586
        %v1227 = vunpack.c.h.b16 %v586
        %v1228 = vunpack.c.l.b16 %v587
        %v1229 = vunpack.c.h.b16 %v587
        %v1230 = vunpack.c.l.b16 %v588
        %v1231 = vunpack.c.h.b16 %v588
        %v1232 = vunpack.c.l.b16 %v589
        %v1233 = vunpack.c.h.b16 %v589
        %v1234 = vunpack.c.l.b16 %v590
        %v1235 = vunpack.c.h.b16 %v590
        %v1236 = vunpack.c.l.b16 %v591
        %v1237 = vunpack.c.h.b16 %v591
        %v1238 = vunpack.c.l.b16 %v592
        %v1239 = vunpack.c.h.b16 %v592
        %v1240 = vunpack.c.l.b16 %v593
        %v1241 = vunpack.c.h.b16 %v593
        %v1242 = vunpack.c.l.b16 %v594
        %v1243 = vunpack.c.h.b16 %v594
        %v1244 = vunpack.c.l.b16 %v595
        %v1245 = vunpack.c.h.b16 %v595
        %v1246 = vunpack.c.l.b16 %v596
        %v1247 = vunpack.c.h.b16 %v596
        %v1248 = vunpack.c.l.b16 %v597
        %v1249 = vunpack.c.h.b16 %v597
        %v1250 = vunpack.c.l.b16 %v598
        %v1251 = vunpack.c.h.b16 %v598
        %v1252 = vunpack.c.l.b16 %v599
        %v1253 = vunpack.c.h.b16 %v599
        %v1254 = vunpack.c.l.b16 %v600
        %v1255 = vunpack.c.h.b16 %v600
        %v1256 = vunpack.c.l.b16 %v601
        %v1257 = vunpack.c.h.b16 %v601
        %v1258 = vunpack.c.l.b16 %v602
        %v1259 = vunpack.c.h.b16 %v602
        %v1260 = vunpack.c.l.b16 %v603
        %v1261 = vunpack.c.h.b16 %v603
        %v1262 = vunpack.c.l.b16 %v604
        %v1263 = vunpack.c.h.b16 %v604
        %v1264 = vunpack.c.l.b16 %v605
        %v1265 = vunpack.c.h.b16 %v605
        %v1266 = vunpack.c.l.b16 %v606
        %v1267 = vunpack.c.h.b16 %v606
        %v1268 = vunpack.c.l.b16 %v607
        %v1269 = vunpack.c.h.b16 %v607
        %v1270 = vunpack.c.l.b16 %v608
        %v1271 = vunpack.c.h.b16 %v608
        %v1272 = vunpack.c.l.b16 %v609
        %v1273 = vunpack.c.h.b16 %v609
        %v1274 = vunpack.c.l.b16 %v610
        %v1275 = vunpack.c.h.b16 %v610
        %v1276 = vunpack.c.l.b16 %v611
        %v1277 = vunpack.c.h.b16 %v611
        %v1278 = vunpack.c.l.b16 %v612
        %v1279 = vunpack.c.h.b16 %v612
        %v1280 = vunpack.c.l.b16 %v613
        %v1281 = vunpack.c.h.b16 %v613
        %v1282 = vunpack.c.l.b16 %v614
        %v1283 = vunpack.c.h.b16 %v614
        %v1284 = vunpack.c.l.b16 %v615
        %v1285 = vunpack.c.h.b16 %v615
        %v1286 = vunpack.c.l.b16 %v616
        %v1287 = vunpack.c.h.b16 %v616
        %v1288 = vunpack.c.l.b16 %v617
        %v1289 = vunpack.c.h.b16 %v617
        %v1290 = vunpack.c.l.b16 %v618
        %v1291 = vunpack.c.h.b16 %v618
        %v1292 = vunpack.c.l.b16 %v619
        %v1293 = vunpack.c.h.b16 %v619
        %v1294 = vunpack.c.l.b16 %v620
        %v1295 = vunpack.c.h.b16 %v620
        %v1296 = vunpack.c.l.b16 %v621
        %v1297 = vunpack.c.h.b16 %v621
        %v1298 = vunpack.c.l.b16 %v622
        %v1299 = vunpack.c.h.b16 %v622
        %v1300 = vunpack.c.l.b16 %v623
        %v1301 = vunpack.c.h.b16 %v623
        %v1302 = vunpack.c.l.b16 %v624
        %v1303 = vunpack.c.h.b16 %v624
        %v1304 = vunpack.c.l.b16 %v625
        %v1305 = vunpack.c.h.b16 %v625
        %v1306 = vunpack.c.l.b16 %v626
        %v1307 = vunpack.c.h.b16 %v626
        %v1308 = vpack.c.b16 %v1118, %v1116
        %v1309 = vpack.c.b16 %v1119, %v1117
        %v1310 = vpack.c.b16 %v1122, %v1120
        %v1311 = vpack.c.b16 %v1123, %v1121
        %v1312 = vpack.c.b16 %v1126, %v1124
        %v1313 = vpack.c.b16 %v1127, %v1125
        %v1314 = vpack.c.b16 %v1130, %v1128
        %v1315 = vpack.c.b16 %v1131, %v1129
        %v1316 = vpack.c.b16 %v1134, %v1132
        %v1317 = vpack.c.b16 %v1135, %v1133
        %v1318 = vpack.c.b16 %v1138, %v1136
        %v1319 = vpack.c.b16 %v1139, %v1137
        %v1320 = vpack.c.b16 %v1142, %v1140
        %v1321 = vpack.c.b16 %v1143, %v1141
        %v1322 = vpack.c.b16 %v1146, %v1144
        %v1323 = vpack.c.b16 %v1147, %v1145
        %v1324 = vpack.c.b16 %v1150, %v1148
        %v1325 = vpack.c.b16 %v1151, %v1149
        %v1326 = vpack.c.b16 %v1154, %v1152
        %v1327 = vpack.c.b16 %v1155, %v1153
        %v1328 = vpack.c.b16 %v1158, %v1156
        %v1329 = vpack.c.b16 %v1159, %v1157
        %v1330 = vpack.c.b16 %v1162, %v1160
        %v1331 = vpack.c.b16 %v1163, %v1161
        %v1332 = vpack.c.b16 %v1166, %v1164
        %v1333 = vpack.c.b16 %v1167, %v1165
        %v1334 = vpack.c.b16 %v1170, %v1168
        %v1335 = vpack.c.b16 %v1171, %v1169
        %v1336 = vpack.c.b16 %v1174, %v1172
        %v1337 = vpack.c.b16 %v1175, %v1173
        %v1338 = vpack.c.b16 %v1178, %v1176
        %v1339 = vpack.c.b16 %v1179, %v1177
        %v1340 = vpack.c.b16 %v1182, %v1180
        %v1341 = vpack.c.b16 %v1183, %v1181
        %v1342 = vpack.c.b16 %v1186, %v1184
        %v1343 = vpack.c.b16 %v1187, %v1185
        %v1344 = vpack.c.b16 %v1190, %v1188
        %v1345 = vpack.c.b16 %v1191, %v1189
        %v1346 = vpack.c.b16 %v1194, %v1192
        %v1347 = vpack.c.b16 %v1195, %v1193
        %v1348 = vpack.c.b16 %v1198, %v1196
        %v1349 = vpack.c.b16 %v1199, %v1197
        %v1350 = vpack.c.b16 %v1202, %v1200
        %v1351 = vpack.c.b16 %v1203, %v1201
        %v1352 = vpack.c.b16 %v1206, %v1204
        %v1353 = vpack.c.b16 %v1207, %v1205
        %v1354 = vpack.c.b16 %v1210, %v1208
        %v1355 = vpack.c.b16 %v1211, %v1209
        %v1356 = vpack.c.b16 %v1214, %v1212
        %v1357 = vpack.c.b16 %v1215, %v1213
        %v1358 = vpack.c.b16 %v1218, %v1216
        %v1359 = vpack.c.b16 %v1219, %v1217
        %v1360 = vpack.c.b16 %v1222, %v1220
        %v1361 = vpack.c.b16 %v1223, %v1221
        %v1362 = vpack.c.b16 %v1226, %v1224
        %v1363 = vpack.c.b16 %v1227, %v1225
        %v1364 = vpack.c.b16 %v1230, %v1228
        %v1365 = vpack.c.b16 %v1231, %v1229
        %v1366 = vpack.c.b16 %v1234, %v1232
        %v1367 = vpack.c.b16 %v1235, %v1233
        %v1368 = vpack.c.b16 %v1238, %v1236
        %v1369 = vpack.c.b16 %v1239, %v1237
        %v1370 = vpack.c.b16 %v1242, %v1240
        %v1371 = vpack.c.b16 %v1243, %v1241
        %v1372 = vpack.c.b16 %v1246, %v1244
        %v1373 = vpack.c.b16 %v1247, %v1245
        %v1374 = vpack.c.b16 %v1250, %v1248
        %v1375 = vpack.c.b16 %v1251, %v1249
        %v1376 = vpack.c.b16 %v1254, %v1252
        %v1377 = vpack.c.b16 %v1255, %v1253
        %v1378 = vpack.c.b16 %v1258, %v1256
        %v1379 = vpack.c.b16 %v1259, %v1257
        %v1380 = vpack.c.b16 %v1262, %v1260
        %v1381 = vpack.c.b16 %v1263, %v1261
        %v1382 = vpack.c.b16 %v1266, %v1264
        %v1383 = vpack.c.b16 %v1267, %v1265
        %v1384 = vpack.c.b16 %v1270, %v1268
        %v1385 = vpack.c.b16 %v1271, %v1269
        %v1386 = vpack.c.b16 %v1274, %v1272
        %v1387 = vpack.c.b16 %v1275, %v1273
        %v1388 = vpack.c.b16 %v1278, %v1276
        %v1389 = vpack.c.b16 %v1279, %v1277
        %v1390 = vpack.c.b16 %v1282, %v1280
        %v1391 = vpack.c.b16 %v1283, %v1281
        %v1392 = vpack.c.b16 %v1286, %v1284
        %v1393 = vpack.c.b16 %v1287, %v1285
        %v1394 = vpack.c.b16 %v1290, %v1288
        %v1395 = vpack.c.b16 %v1291, %v1289
        %v1396 = vpack.c.b16 %v1294, %v1292
        %v1397 = vpack.c.b16 %v1295, %v1293
        %v1398 = vpack.c.b16 %v1298, %v1296
        %v1399 = vpack.c.b16 %v1299, %v1297
        %v1400 = vpack.c.b16 %v1302, %v1300
        %v1401 = vpack.c.b16 %v1303, %v1301
        %v1402 = vpack.c.b16 %v1306, %v1304
        %v1403 = vpack.c.b16 %v1307, %v1305
        %1500 = vmatprep.subr.bf16.mxu0 %v1309
        %1501 = vmatpush1.bf16.msra.mxu0 %v1308
        %1502 = vmatprep.subr.bf16.mxu0 %v1311
        %1503 = vmatpush1.bf16.msra.mxu0 %v1310
        %1504 = vmatprep.subr.bf16.mxu0 %v1313
        %1505 = vmatpush1.bf16.msra.mxu0 %v1312
        %1506 = vmatprep.subr.bf16.mxu0 %v1315
        %1507 = vmatpush1.bf16.msra.mxu0 %v1314
        %1508 = vmatprep.subr.bf16.mxu0 %v1317
        %1509 = vmatpush1.bf16.msra.mxu0 %v1316
        %1510 = vmatprep.subr.bf16.mxu0 %v1319
        %1511 = vmatpush1.bf16.msra.mxu0 %v1318
        %1512 = vmatprep.subr.bf16.mxu0 %v1321
        %1513 = vmatpush1.bf16.msra.mxu0 %v1320
        %1514 = vmatprep.subr.bf16.mxu0 %v1323
        %1515 = vmatpush1.bf16.msra.mxu0 %v1322
        %1516 = vmatprep.subr.bf16.mxu0 %v1325
        %1517 = vmatpush1.bf16.msra.mxu0 %v1324
        %1518 = vmatprep.subr.bf16.mxu0 %v1327
        %1519 = vmatpush1.bf16.msra.mxu0 %v1326
        %1520 = vmatprep.subr.bf16.mxu0 %v1329
        %1521 = vmatpush1.bf16.msra.mxu0 %v1328
        %1522 = vmatprep.subr.bf16.mxu0 %v1331
        %1523 = vmatpush1.bf16.msra.mxu0 %v1330
        %1524 = vmatprep.subr.bf16.mxu0 %v1333
        %1525 = vmatpush1.bf16.msra.mxu0 %v1332
        %1526 = vmatprep.subr.bf16.mxu0 %v1335
        %1527 = vmatpush1.bf16.msra.mxu0 %v1334
        %1528 = vmatprep.subr.bf16.mxu0 %v1337
        %1529 = vmatpush1.bf16.msra.mxu0 %v1336
        %1530 = vmatprep.subr.bf16.mxu0 %v1339
        %1531 = vmatpush1.bf16.msra.mxu0 %v1338
        %1532 = vmatprep.mubr.bf16.mxu0 %v865
        %1533 = vmatmul.mubr.bf16.gmra.mrb[0].mxu0 %v864
        %v1534 = vpop.f32.mrb[0].mxu0
        %v1535 = vadd.f32 %v632, %v1534
        %v1536 = vpop.f32.mrb[0].mxu0
        %v1537 = vadd.f32 %v636, %v1536
        %v1538 = vpop.f32.mrb[0].mxu0
        %v1539 = vadd.f32 %v632, %v1538
        %v1540 = vpop.f32.mrb[0].mxu0
        %v1541 = vadd.f32 %v636, %v1540
        %1542 = vmatprep.mubr.bf16.mxu0 %v871
        %1543 = vmatmul.mubr.bf16.gmra.mrb[0].mxu0 %v870
        %v1544 = vpop.f32.mrb[0].mxu0
        %v1545 = vadd.f32 %v632, %v1544
        %v1546 = vpop.f32.mrb[0].mxu0
        %v1547 = vadd.f32 %v636, %v1546
        %v1548 = vpop.f32.mrb[0].mxu0
        %v1549 = vadd.f32 %v632, %v1548
        %v1550 = vpop.f32.mrb[0].mxu0
        %v1551 = vadd.f32 %v636, %v1550
        %1552 = vmatprep.mubr.bf16.mxu0 %v877
        %1553 = vmatmul.mubr.bf16.gmra.mrb[0].mxu0 %v876
        %v1554 = vpop.f32.mrb[0].mxu0
        %v1555 = vadd.f32 %v632, %v1554
        %v1556 = vpop.f32.mrb[0].mxu0
        %v1557 = vadd.f32 %v636, %v1556
        %v1558 = vpop.f32.mrb[0].mxu0
        %v1559 = vadd.f32 %v632, %v1558
        %v1560 = vpop.f32.mrb[0].mxu0
        %v1561 = vadd.f32 %v636, %v1560
        %1562 = vmatprep.mubr.bf16.mxu0 %v883
        %1563 = vmatmul.mubr.bf16.gmra.mrb[0].mxu0 %v882
        %v1564 = vpop.f32.mrb[0].mxu0
        %v1565 = vadd.f32 %v632, %v1564
        %v1566 = vpop.f32.mrb[0].mxu0
        %v1567 = vadd.f32 %v636, %v1566
        %v1568 = vpop.f32.mrb[0].mxu0
        %v1569 = vadd.f32 %v632, %v1568
        %v1570 = vpop.f32.mrb[0].mxu0
        %v1571 = vadd.f32 %v636, %v1570
        %1572 = vmatprep.mubr.bf16.mxu0 %v889
        %1573 = vmatmul.mubr.bf16.gmra.mrb[0].mxu0 %v888
        %v1574 = vpop.f32.mrb[0].mxu0
        %v1575 = vadd.f32 %v632, %v1574
        %v1576 = vpop.f32.mrb[0].mxu0
        %v1577 = vadd.f32 %v636, %v1576
        %v1578 = vpop.f32.mrb[0].mxu0
        %v1579 = vadd.f32 %v632, %v1578
        %v1580 = vpop.f32.mrb[0].mxu0
        %v1581 = vadd.f32 %v636, %v1580
        %1582 = vmatprep.mubr.bf16.mxu0 %v895
        %1583 = vmatmul.mubr.bf16.gmra.mrb[0].mxu0 %v894
        %v1584 = vpop.f32.mrb[0].mxu0
        %v1585 = vadd.f32 %v632, %v1584
        %v1586 = vpop.f32.mrb[0].mxu0
        %v1587 = vadd.f32 %v636, %v1586
        %v1588 = vpop.f32.mrb[0].mxu0
        %v1589 = vadd.f32 %v632, %v1588
        %v1590 = vpop.f32.mrb[0].mxu0
        %v1591 = vadd.f32 %v636, %v1590
        %1592 = vmatprep.mubr.bf16.mxu0 %v901
        %1593 = vmatmul.mubr.bf16.gmra.mrb[0].mxu0 %v900
        %v1594 = vpop.f32.mrb[0].mxu0
        %v1595 = vadd.f32 %v632, %v1594
        %v1596 = vpop.f32.mrb[0].mxu0
        %v1597 = vadd.f32 %v636, %v1596
        %v1598 = vpop.f32.mrb[0].mxu0
        %v1599 = vadd.f32 %v632, %v1598
        %v1600 = vpop.f32.mrb[0].mxu0
        %v1601 = vadd.f32 %v636, %v1600
        %1602 = vmatprep.mubr.bf16.mxu0 %v907
        %1603 = vmatmul.mubr.bf16.gmra.mrb[0].mxu0 %v906
        %v1604 = vpop.f32.mrb[0].mxu0
        %v1605 = vadd.f32 %v632, %v1604
        %v1606 = vpop.f32.mrb[0].mxu0
        %v1607 = vadd.f32 %v636, %v1606
        %v1608 = vpop.f32.mrb[0].mxu0
        %v1609 = vadd.f32 %v632, %v1608
        %v1610 = vpop.f32.mrb[0].mxu0
        %v1611 = vadd.f32 %v636, %v1610
        %1612 = vmatprep.mubr.bf16.mxu0 %v913
        %1613 = vmatmul.mubr.bf16.gmra.mrb[0].mxu0 %v912
        %v1614 = vpop.f32.mrb[0].mxu0
        %v1615 = vadd.f32 %v632, %v1614
        %v1616 = vpop.f32.mrb[0].mxu0
        %v1617 = vadd.f32 %v636, %v1616
        %v1618 = vpop.f32.mrb[0].mxu0
        %v1619 = vadd.f32 %v632, %v1618
        %v1620 = vpop.f32.mrb[0].mxu0
        %v1621 = vadd.f32 %v636, %v1620
        %1622 = vmatprep.mubr.bf16.mxu0 %v919
        %1623 = vmatmul.mubr.bf16.gmra.mrb[0].mxu0 %v918
        %v1624 = vpop.f32.mrb[0].mxu0
        %v1625 = vadd.f32 %v632, %v1624
        %v1626 = vpop.f32.mrb[0].mxu0
        %v1627 = vadd.f32 %v636, %v1626
        %v1628 = vpop.f32.mrb[0].mxu0
        %v1629 = vadd.f32 %v632, %v1628
        %v1630 = vpop.f32.mrb[0].mxu0
        %v1631 = vadd.f32 %v636, %v1630
        %1632 = vmatprep.mubr.bf16.mxu0 %v925
        %1633 = vmatmul.mubr.bf16.gmra.mrb[0].mxu0 %v924
        %v1634 = vpop.f32.mrb[0].mxu0
        %v1635 = vadd.f32 %v632, %v1634
        %v1636 = vpop.f32.mrb[0].mxu0
        %v1637 = vadd.f32 %v636, %v1636
        %v1638 = vpop.f32.mrb[0].mxu0
        %v1639 = vadd.f32 %v632, %v1638
        %v1640 = vpop.f32.mrb[0].mxu0
        %v1641 = vadd.f32 %v636, %v1640
        %1642 = vmatprep.mubr.bf16.mxu0 %v931
        %1643 = vmatmul.mubr.bf16.gmra.mrb[0].mxu0 %v930
        %v1644 = vpop.f32.mrb[0].mxu0
        %v1645 = vadd.f32 %v632, %v1644
        %v1646 = vpop.f32.mrb[0].mxu0
        %v1647 = vadd.f32 %v636, %v1646
        %v1648 = vpop.f32.mrb[0].mxu0
        %v1649 = vadd.f32 %v632, %v1648
        %v1650 = vpop.f32.mrb[0].mxu0
        %v1651 = vadd.f32 %v636, %v1650
        %1652 = vmatprep.mubr.bf16.mxu0 %v937
        %1653 = vmatmul.mubr.bf16.gmra.mrb[0].mxu0 %v936
        %v1654 = vpop.f32.mrb[0].mxu0
        %v1655 = vadd.f32 %v632, %v1654
        %v1656 = vpop.f32.mrb[0].mxu0
        %v1657 = vadd.f32 %v636, %v1656
        %v1658 = vpop.f32.mrb[0].mxu0
        %v1659 = vpop.f32.mrb[0].mxu0
        %1660 = vdwg.mxu0
        %1661 = vmatprep.subr.bf16.mxu0 %v1341
        %1662 = vmatpush1.bf16.msra.mxu0 %v1340
        %1663 = vmatprep.subr.bf16.mxu0 %v1343
        %1664 = vmatpush1.bf16.msra.mxu0 %v1342
        %1665 = vmatprep.subr.bf16.mxu0 %v1345
        %1666 = vmatpush1.bf16.msra.mxu0 %v1344
        %1667 = vmatprep.subr.bf16.mxu0 %v1347
        %1668 = vmatpush1.bf16.msra.mxu0 %v1346
        %1669 = vmatprep.subr.bf16.mxu0 %v1349
        %1670 = vmatpush1.bf16.msra.mxu0 %v1348
        %1671 = vmatprep.subr.bf16.mxu0 %v1351
        %1672 = vmatpush1.bf16.msra.mxu0 %v1350
        %1673 = vmatprep.subr.bf16.mxu0 %v1353
        %1674 = vmatpush1.bf16.msra.mxu0 %v1352
        %1675 = vmatprep.subr.bf16.mxu0 %v1355
        %1676 = vmatpush1.bf16.msra.mxu0 %v1354
        %1677 = vmatprep.subr.bf16.mxu0 %v1357
        %1678 = vmatpush1.bf16.msra.mxu0 %v1356
        %1679 = vmatprep.subr.bf16.mxu0 %v1359
        %1680 = vmatpush1.bf16.msra.mxu0 %v1358
        %1681 = vmatprep.subr.bf16.mxu0 %v1361
        %1682 = vmatpush1.bf16.msra.mxu0 %v1360
        %1683 = vmatprep.subr.bf16.mxu0 %v1363
        %1684 = vmatpush1.bf16.msra.mxu0 %v1362
        %1685 = vmatprep.subr.bf16.mxu0 %v1365
        %1686 = vmatpush1.bf16.msra.mxu0 %v1364
        %1687 = vmatprep.subr.bf16.mxu0 %v1367
        %1688 = vmatpush1.bf16.msra.mxu0 %v1366
        %1689 = vmatprep.subr.bf16.mxu0 %v1369
        %1690 = vmatpush1.bf16.msra.mxu0 %v1368
        %1691 = vmatprep.subr.bf16.mxu0 %v1371
        %1692 = vmatpush1.bf16.msra.mxu0 %v1370
        %1693 = vmatprep.mubr.bf16.mxu0 %v867
        %1694 = vmatmul.mubr.bf16.gmra.mrb[0].mxu0 %v866
        %v1695 = vpop.f32.mrb[0].mxu0
        %v1696 = vadd.f32 %v1535, %v1695
        %v1697 = vpop.f32.mrb[0].mxu0
        %v1698 = vadd.f32 %v1537, %v1697
        %v1699 = vpop.f32.mrb[0].mxu0
        %v1700 = vadd.f32 %v1539, %v1699
        %v1701 = vpop.f32.mrb[0].mxu0
        %v1702 = vadd.f32 %v1541, %v1701
        %1703 = vmatprep.mubr.bf16.mxu0 %v873
        %1704 = vmatmul.mubr.bf16.gmra.mrb[0].mxu0 %v872
        %v1705 = vpop.f32.mrb[0].mxu0
        %v1706 = vadd.f32 %v1545, %v1705
        %v1707 = vpop.f32.mrb[0].mxu0
        %v1708 = vadd.f32 %v1547, %v1707
        %v1709 = vpop.f32.mrb[0].mxu0
        %v1710 = vadd.f32 %v1549, %v1709
        %v1711 = vpop.f32.mrb[0].mxu0
        %v1712 = vadd.f32 %v1551, %v1711
        %1713 = vmatprep.mubr.bf16.mxu0 %v879
        %1714 = vmatmul.mubr.bf16.gmra.mrb[0].mxu0 %v878
        %v1715 = vpop.f32.mrb[0].mxu0
        %v1716 = vadd.f32 %v1555, %v1715
        %v1717 = vpop.f32.mrb[0].mxu0
        %v1718 = vadd.f32 %v1557, %v1717
        %v1719 = vpop.f32.mrb[0].mxu0
        %v1720 = vadd.f32 %v1559, %v1719
        %v1721 = vpop.f32.mrb[0].mxu0
        %v1722 = vadd.f32 %v1561, %v1721
        %1723 = vmatprep.mubr.bf16.mxu0 %v885
        %1724 = vmatmul.mubr.bf16.gmra.mrb[0].mxu0 %v884
        %v1725 = vpop.f32.mrb[0].mxu0
        %v1726 = vadd.f32 %v1565, %v1725
        %v1727 = vpop.f32.mrb[0].mxu0
        %v1728 = vadd.f32 %v1567, %v1727
        %v1729 = vpop.f32.mrb[0].mxu0
        %v1730 = vadd.f32 %v1569, %v1729
        %v1731 = vpop.f32.mrb[0].mxu0
        %v1732 = vadd.f32 %v1571, %v1731
        %1733 = vmatprep.mubr.bf16.mxu0 %v891
        %1734 = vmatmul.mubr.bf16.gmra.mrb[0].mxu0 %v890
        %v1735 = vpop.f32.mrb[0].mxu0
        %v1736 = vadd.f32 %v1575, %v1735
        %v1737 = vpop.f32.mrb[0].mxu0
        %v1738 = vadd.f32 %v1577, %v1737
        %v1739 = vpop.f32.mrb[0].mxu0
        %v1740 = vadd.f32 %v1579, %v1739
        %v1741 = vpop.f32.mrb[0].mxu0
        %v1742 = vadd.f32 %v1581, %v1741
        %1743 = vmatprep.mubr.bf16.mxu0 %v897
        %1744 = vmatmul.mubr.bf16.gmra.mrb[0].mxu0 %v896
        %v1745 = vpop.f32.mrb[0].mxu0
        %v1746 = vadd.f32 %v1585, %v1745
        %v1747 = vpop.f32.mrb[0].mxu0
        %v1748 = vadd.f32 %v1587, %v1747
        %v1749 = vpop.f32.mrb[0].mxu0
        %v1750 = vadd.f32 %v1589, %v1749
        %v1751 = vpop.f32.mrb[0].mxu0
        %v1752 = vadd.f32 %v1591, %v1751
        %1753 = vmatprep.mubr.bf16.mxu0 %v903
        %1754 = vmatmul.mubr.bf16.gmra.mrb[0].mxu0 %v902
        %v1755 = vpop.f32.mrb[0].mxu0
        %v1756 = vadd.f32 %v1595, %v1755
        %v1757 = vpop.f32.mrb[0].mxu0
        %v1758 = vadd.f32 %v1597, %v1757
        %v1759 = vpop.f32.mrb[0].mxu0
        %v1760 = vadd.f32 %v1599, %v1759
        %v1761 = vpop.f32.mrb[0].mxu0
        %v1762 = vadd.f32 %v1601, %v1761
        %1763 = vmatprep.mubr.bf16.mxu0 %v909
        %1764 = vmatmul.mubr.bf16.gmra.mrb[0].mxu0 %v908
        %v1765 = vpop.f32.mrb[0].mxu0
        %v1766 = vadd.f32 %v1605, %v1765
        %v1767 = vpop.f32.mrb[0].mxu0
        %v1768 = vadd.f32 %v1607, %v1767
        %v1769 = vpop.f32.mrb[0].mxu0
        %v1770 = vadd.f32 %v1609, %v1769
        %v1771 = vpop.f32.mrb[0].mxu0
        %v1772 = vadd.f32 %v1611, %v1771
        %1773 = vmatprep.mubr.bf16.mxu0 %v915
        %1774 = vmatmul.mubr.bf16.gmra.mrb[0].mxu0 %v914
        %v1775 = vpop.f32.mrb[0].mxu0
        %v1776 = vadd.f32 %v1615, %v1775
        %v1777 = vpop.f32.mrb[0].mxu0
        %v1778 = vadd.f32 %v1617, %v1777
        %v1779 = vpop.f32.mrb[0].mxu0
        %v1780 = vadd.f32 %v1619, %v1779
        %v1781 = vpop.f32.mrb[0].mxu0
        %v1782 = vadd.f32 %v1621, %v1781
        %1783 = vmatprep.mubr.bf16.mxu0 %v921
        %1784 = vmatmul.mubr.bf16.gmra.mrb[0].mxu0 %v920
        %v1785 = vpop.f32.mrb[0].mxu0
        %v1786 = vadd.f32 %v1625, %v1785
        %v1787 = vpop.f32.mrb[0].mxu0
        %v1788 = vadd.f32 %v1627, %v1787
        %v1789 = vpop.f32.mrb[0].mxu0
        %v1790 = vadd.f32 %v1629, %v1789
        %v1791 = vpop.f32.mrb[0].mxu0
        %v1792 = vadd.f32 %v1631, %v1791
        %1793 = vmatprep.mubr.bf16.mxu0 %v927
        %1794 = vmatmul.mubr.bf16.gmra.mrb[0].mxu0 %v926
        %v1795 = vpop.f32.mrb[0].mxu0
        %v1796 = vadd.f32 %v1635, %v1795
        %v1797 = vpop.f32.mrb[0].mxu0
        %v1798 = vadd.f32 %v1637, %v1797
        %v1799 = vpop.f32.mrb[0].mxu0
        %v1800 = vadd.f32 %v1639, %v1799
        %v1801 = vpop.f32.mrb[0].mxu0
        %v1802 = vadd.f32 %v1641, %v1801
        %1803 = vmatprep.mubr.bf16.mxu0 %v933
        %1804 = vmatmul.mubr.bf16.gmra.mrb[0].mxu0 %v932
        %v1805 = vpop.f32.mrb[0].mxu0
        %v1806 = vadd.f32 %v1645, %v1805
        %v1807 = vpop.f32.mrb[0].mxu0
        %v1808 = vadd.f32 %v1647, %v1807
        %v1809 = vpop.f32.mrb[0].mxu0
        %v1810 = vadd.f32 %v1649, %v1809
        %v1811 = vpop.f32.mrb[0].mxu0
        %v1812 = vadd.f32 %v1651, %v1811
        %1813 = vmatprep.mubr.bf16.mxu0 %v939
        %1814 = vmatmul.mubr.bf16.gmra.mrb[0].mxu0 %v938
        %v1815 = vpop.f32.mrb[0].mxu0
        %v1816 = vadd.f32 %v1655, %v1815
        %v1817 = vpop.f32.mrb[0].mxu0
        %v1818 = vadd.f32 %v1657, %v1817
        %v1819 = vpop.f32.mrb[0].mxu0
        %v1820 = vpop.f32.mrb[0].mxu0
        %1821 = vdwg.mxu0
        %1822 = vmatprep.subr.bf16.mxu0 %v1373
        %1823 = vmatpush1.bf16.msra.mxu0 %v1372
        %1824 = vmatprep.subr.bf16.mxu0 %v1375
        %1825 = vmatpush1.bf16.msra.mxu0 %v1374
        %1826 = vmatprep.subr.bf16.mxu0 %v1377
        %1827 = vmatpush1.bf16.msra.mxu0 %v1376
        %1828 = vmatprep.subr.bf16.mxu0 %v1379
        %1829 = vmatpush1.bf16.msra.mxu0 %v1378
        %1830 = vmatprep.subr.bf16.mxu0 %v1381
        %1831 = vmatpush1.bf16.msra.mxu0 %v1380
        %1832 = vmatprep.subr.bf16.mxu0 %v1383
        %1833 = vmatpush1.bf16.msra.mxu0 %v1382
        %1834 = vmatprep.subr.bf16.mxu0 %v1385
        %1835 = vmatpush1.bf16.msra.mxu0 %v1384
        %1836 = vmatprep.subr.bf16.mxu0 %v1387
        %1837 = vmatpush1.bf16.msra.mxu0 %v1386
        %1838 = vmatprep.subr.bf16.mxu0 %v1389
        %1839 = vmatpush1.bf16.msra.mxu0 %v1388
        %1840 = vmatprep.subr.bf16.mxu0 %v1391
        %1841 = vmatpush1.bf16.msra.mxu0 %v1390
        %1842 = vmatprep.subr.bf16.mxu0 %v1393
        %1843 = vmatpush1.bf16.msra.mxu0 %v1392
        %1844 = vmatprep.subr.bf16.mxu0 %v1395
        %1845 = vmatpush1.bf16.msra.mxu0 %v1394
        %1846 = vmatprep.subr.bf16.mxu0 %v1397
        %1847 = vmatpush1.bf16.msra.mxu0 %v1396
        %1848 = vmatprep.subr.bf16.mxu0 %v1399
        %1849 = vmatpush1.bf16.msra.mxu0 %v1398
        %1850 = vmatprep.subr.bf16.mxu0 %v1401
        %1851 = vmatpush1.bf16.msra.mxu0 %v1400
        %1852 = vmatprep.subr.bf16.mxu0 %v1403
        %1853 = vmatpush1.bf16.msra.mxu0 %v1402
        %1854 = vmatprep.mubr.bf16.mxu0 %v869
        %1855 = vmatmul.mubr.bf16.gmra.mrb[0].mxu0 %v868
        %v1856 = vpop.f32.mrb[0].mxu0
        %v1857 = vadd.f32 %v1696, %v1856
        %v1858 = vpop.f32.mrb[0].mxu0
        %v1859 = vadd.f32 %v1698, %v1858
        %v1860 = vpop.f32.mrb[0].mxu0
        %v1861 = vadd.f32 %v1700, %v1860
        %v1862 = vpop.f32.mrb[0].mxu0
        %v1863 = vadd.f32 %v1702, %v1862
        %1864 = vmatprep.mubr.bf16.mxu0 %v875
        %1865 = vmatmul.mubr.bf16.gmra.mrb[0].mxu0 %v874
        %v1866 = vpop.f32.mrb[0].mxu0
        %v1867 = vadd.f32 %v1706, %v1866
        %v1868 = vpop.f32.mrb[0].mxu0
        %v1869 = vadd.f32 %v1708, %v1868
        %v1870 = vpop.f32.mrb[0].mxu0
        %v1871 = vadd.f32 %v1710, %v1870
        %v1872 = vpop.f32.mrb[0].mxu0
        %v1873 = vadd.f32 %v1712, %v1872
        %1874 = vmatprep.mubr.bf16.mxu0 %v881
        %1875 = vmatmul.mubr.bf16.gmra.mrb[0].mxu0 %v880
        %v1876 = vpop.f32.mrb[0].mxu0
        %v1877 = vadd.f32 %v1716, %v1876
        %v1878 = vpop.f32.mrb[0].mxu0
        %v1879 = vadd.f32 %v1718, %v1878
        %v1880 = vpop.f32.mrb[0].mxu0
        %v1881 = vadd.f32 %v1720, %v1880
        %v1882 = vpop.f32.mrb[0].mxu0
        %v1883 = vadd.f32 %v1722, %v1882
        %1884 = vmatprep.mubr.bf16.mxu0 %v887
        %1885 = vmatmul.mubr.bf16.gmra.mrb[0].mxu0 %v886
        %v1886 = vpop.f32.mrb[0].mxu0
        %v1887 = vadd.f32 %v1726, %v1886
        %v1888 = vpop.f32.mrb[0].mxu0
        %v1889 = vadd.f32 %v1728, %v1888
        %v1890 = vpop.f32.mrb[0].mxu0
        %v1891 = vadd.f32 %v1730, %v1890
        %v1892 = vpop.f32.mrb[0].mxu0
        %v1893 = vadd.f32 %v1732, %v1892
        %1894 = vmatprep.mubr.bf16.mxu0 %v893
        %1895 = vmatmul.mubr.bf16.gmra.mrb[0].mxu0 %v892
        %v1896 = vpop.f32.mrb[0].mxu0
        %v1897 = vadd.f32 %v1736, %v1896
        %v1898 = vpop.f32.mrb[0].mxu0
        %v1899 = vadd.f32 %v1738, %v1898
        %v1900 = vpop.f32.mrb[0].mxu0
        %v1901 = vadd.f32 %v1740, %v1900
        %v1902 = vpop.f32.mrb[0].mxu0
        %v1903 = vadd.f32 %v1742, %v1902
        %1904 = vmatprep.mubr.bf16.mxu0 %v899
        %1905 = vmatmul.mubr.bf16.gmra.mrb[0].mxu0 %v898
        %v1906 = vpop.f32.mrb[0].mxu0
        %v1907 = vadd.f32 %v1746, %v1906
        %v1908 = vpop.f32.mrb[0].mxu0
        %v1909 = vadd.f32 %v1748, %v1908
        %v1910 = vpop.f32.mrb[0].mxu0
        %v1911 = vadd.f32 %v1750, %v1910
        %v1912 = vpop.f32.mrb[0].mxu0
        %v1913 = vadd.f32 %v1752, %v1912
        %1914 = vmatprep.mubr.bf16.mxu0 %v905
        %1915 = vmatmul.mubr.bf16.gmra.mrb[0].mxu0 %v904
        %v1916 = vpop.f32.mrb[0].mxu0
        %v1917 = vadd.f32 %v1756, %v1916
        %v1918 = vpop.f32.mrb[0].mxu0
        %v1919 = vadd.f32 %v1758, %v1918
        %v1920 = vpop.f32.mrb[0].mxu0
        %v1921 = vadd.f32 %v1760, %v1920
        %v1922 = vpop.f32.mrb[0].mxu0
        %v1923 = vadd.f32 %v1762, %v1922
        %1924 = vmatprep.mubr.bf16.mxu0 %v911
        %1925 = vmatmul.mubr.bf16.gmra.mrb[0].mxu0 %v910
        %v1926 = vpop.f32.mrb[0].mxu0
        %v1927 = vadd.f32 %v1766, %v1926
        %v1928 = vpop.f32.mrb[0].mxu0
        %v1929 = vadd.f32 %v1768, %v1928
        %v1930 = vpop.f32.mrb[0].mxu0
        %v1931 = vadd.f32 %v1770, %v1930
        %v1932 = vpop.f32.mrb[0].mxu0
        %v1933 = vadd.f32 %v1772, %v1932
        %1934 = vmatprep.mubr.bf16.mxu0 %v917
        %1935 = vmatmul.mubr.bf16.gmra.mrb[0].mxu0 %v916
        %v1936 = vpop.f32.mrb[0].mxu0
        %v1937 = vadd.f32 %v1776, %v1936
        %v1938 = vpop.f32.mrb[0].mxu0
        %v1939 = vadd.f32 %v1778, %v1938
        %v1940 = vpop.f32.mrb[0].mxu0
        %v1941 = vadd.f32 %v1780, %v1940
        %v1942 = vpop.f32.mrb[0].mxu0
        %v1943 = vadd.f32 %v1782, %v1942
        %1944 = vmatprep.mubr.bf16.mxu0 %v923
        %1945 = vmatmul.mubr.bf16.gmra.mrb[0].mxu0 %v922
        %v1946 = vpop.f32.mrb[0].mxu0
        %v1947 = vadd.f32 %v1786, %v1946
        %v1948 = vpop.f32.mrb[0].mxu0
        %v1949 = vadd.f32 %v1788, %v1948
        %v1950 = vpop.f32.mrb[0].mxu0
        %v1951 = vadd.f32 %v1790, %v1950
        %v1952 = vpop.f32.mrb[0].mxu0
        %v1953 = vadd.f32 %v1792, %v1952
        %1954 = vmatprep.mubr.bf16.mxu0 %v929
        %1955 = vmatmul.mubr.bf16.gmra.mrb[0].mxu0 %v928
        %v1956 = vpop.f32.mrb[0].mxu0
        %v1957 = vadd.f32 %v1796, %v1956
        %v1958 = vpop.f32.mrb[0].mxu0
        %v1959 = vadd.f32 %v1798, %v1958
        %v1960 = vpop.f32.mrb[0].mxu0
        %v1961 = vadd.f32 %v1800, %v1960
        %v1962 = vpop.f32.mrb[0].mxu0
        %v1963 = vadd.f32 %v1802, %v1962
        %1964 = vmatprep.mubr.bf16.mxu0 %v935
        %1965 = vmatmul.mubr.bf16.gmra.mrb[0].mxu0 %v934
        %v1966 = vpop.f32.mrb[0].mxu0
        %v1967 = vadd.f32 %v1806, %v1966
        %v1968 = vpop.f32.mrb[0].mxu0
        %v1969 = vadd.f32 %v1808, %v1968
        %v1970 = vpop.f32.mrb[0].mxu0
        %v1971 = vadd.f32 %v1810, %v1970
        %v1972 = vpop.f32.mrb[0].mxu0
        %v1973 = vadd.f32 %v1812, %v1972
        %1974 = vmatprep.mubr.bf16.mxu0 %v941
        %1975 = vmatmul.mubr.bf16.gmra.mrb[0].mxu0 %v940
        %v1976 = vpop.f32.mrb[0].mxu0
        %v1977 = vadd.f32 %v1816, %v1976
        %v1978 = vpop.f32.mrb[0].mxu0
        %v1979 = vadd.f32 %v1818, %v1978
        %v1980 = vpop.f32.mrb[0].mxu0
        %v1981 = vpop.f32.mrb[0].mxu0
        %1982 = vdwg.mxu0
        %s1983 = scalar_lea.vmem %s430, 1
        %v1984 = vld [vmem:[%s1983] ss:$8 sm:$0x3]
        %v1986 = vlaneseq
        %v1987 = vshrl.u32 %v1986, 7
        %v1988 = vsub.s32 0, %v1987
        %v1989 = vrot.slane %v1984, %v1988
        %v1990 = vlaneseq
        %v1991 = vshrl.u32 %v1990, 7
        %v1992 = vsub.s32 1, %v1991
        %v1993 = vrot.slane %v1984, %v1992
        %v1996 = vmul.f32 %v1857, %v1989
        %v1997 = vmul.f32 %v1859, %v1993
        %v1998 = vmul.f32 %v1861, %v1989
        %v1999 = vmul.f32 %v1863, %v1993
        %v2000 = vmul.f32 %v1867, %v1989
        %v2001 = vmul.f32 %v1869, %v1993
        %v2002 = vmul.f32 %v1871, %v1989
        %v2003 = vmul.f32 %v1873, %v1993
        %v2004 = vmul.f32 %v1877, %v1989
        %v2005 = vmul.f32 %v1879, %v1993
        %v2006 = vmul.f32 %v1881, %v1989
        %v2007 = vmul.f32 %v1883, %v1993
        %v2008 = vmul.f32 %v1887, %v1989
        %v2009 = vmul.f32 %v1889, %v1993
        %v2010 = vmul.f32 %v1891, %v1989
        %v2011 = vmul.f32 %v1893, %v1993
        %v2012 = vmul.f32 %v1897, %v1989
        %v2013 = vmul.f32 %v1899, %v1993
        %v2014 = vmul.f32 %v1901, %v1989
        %v2015 = vmul.f32 %v1903, %v1993
        %v2016 = vmul.f32 %v1907, %v1989
        %v2017 = vmul.f32 %v1909, %v1993
        %v2018 = vmul.f32 %v1911, %v1989
        %v2019 = vmul.f32 %v1913, %v1993
        %v2020 = vmul.f32 %v1917, %v1989
        %v2021 = vmul.f32 %v1919, %v1993
        %v2022 = vmul.f32 %v1921, %v1989
        %v2023 = vmul.f32 %v1923, %v1993
        %v2024 = vmul.f32 %v1927, %v1989
        %v2025 = vmul.f32 %v1929, %v1993
        %v2026 = vmul.f32 %v1931, %v1989
        %v2027 = vmul.f32 %v1933, %v1993
        %v2028 = vmul.f32 %v1937, %v1989
        %v2029 = vmul.f32 %v1939, %v1993
        %v2030 = vmul.f32 %v1941, %v1989
        %v2031 = vmul.f32 %v1943, %v1993
        %v2032 = vmul.f32 %v1947, %v1989
        %v2033 = vmul.f32 %v1949, %v1993
        %v2034 = vmul.f32 %v1951, %v1989
        %v2035 = vmul.f32 %v1953, %v1993
        %v2036 = vmul.f32 %v1957, %v1989
        %v2037 = vmul.f32 %v1959, %v1993
        %v2038 = vmul.f32 %v1961, %v1989
        %v2039 = vmul.f32 %v1963, %v1993
        %v2040 = vmul.f32 %v1967, %v1989
        %v2041 = vmul.f32 %v1969, %v1993
        %v2042 = vmul.f32 %v1971, %v1989
        %v2043 = vmul.f32 %v1973, %v1993
        %v2044 = vmul.f32 %v1977, %v1989
        %v2045 = vmul.f32 %v1979, %v1993
        %v2046 = vadd.f32 %v1996, %v1997
        %2047 = vadd.xlane.f32.xlu0 %v2046
        %v2048 = vpop.xlane.xlu0 %2047
        %v2049 = vadd.f32 %v1998, %v1999
        %2050 = vadd.xlane.f32.xlu0 %v2049
        %v2051 = vpop.xlane.xlu0 %2050
        %v2052 = vadd.f32 %v2000, %v2001
        %2053 = vadd.xlane.f32.xlu0 %v2052
        %v2054 = vpop.xlane.xlu0 %2053
        %v2055 = vadd.f32 %v2002, %v2003
        %2056 = vadd.xlane.f32.xlu0 %v2055
        %v2057 = vpop.xlane.xlu0 %2056
        %v2058 = vadd.f32 %v2004, %v2005
        %2059 = vadd.xlane.f32.xlu0 %v2058
        %v2060 = vpop.xlane.xlu0 %2059
        %v2061 = vadd.f32 %v2006, %v2007
        %2062 = vadd.xlane.f32.xlu0 %v2061
        %v2063 = vpop.xlane.xlu0 %2062
        %v2064 = vadd.f32 %v2008, %v2009
        %2065 = vadd.xlane.f32.xlu0 %v2064
        %v2066 = vpop.xlane.xlu0 %2065
        %v2067 = vadd.f32 %v2010, %v2011
        %2068 = vadd.xlane.f32.xlu0 %v2067
        %v2069 = vpop.xlane.xlu0 %2068
        %v2070 = vadd.f32 %v2012, %v2013
        %2071 = vadd.xlane.f32.xlu0 %v2070
        %v2072 = vpop.xlane.xlu0 %2071
        %v2073 = vadd.f32 %v2014, %v2015
        %2074 = vadd.xlane.f32.xlu0 %v2073
        %v2075 = vpop.xlane.xlu0 %2074
        %v2076 = vadd.f32 %v2016, %v2017
        %2077 = vadd.xlane.f32.xlu0 %v2076
        %v2078 = vpop.xlane.xlu0 %2077
        %v2079 = vadd.f32 %v2018, %v2019
        %2080 = vadd.xlane.f32.xlu0 %v2079
        %v2081 = vpop.xlane.xlu0 %2080
        %v2082 = vadd.f32 %v2020, %v2021
        %2083 = vadd.xlane.f32.xlu0 %v2082
        %v2084 = vpop.xlane.xlu0 %2083
        %v2085 = vadd.f32 %v2022, %v2023
        %2086 = vadd.xlane.f32.xlu0 %v2085
        %v2087 = vpop.xlane.xlu0 %2086
        %v2088 = vadd.f32 %v2024, %v2025
        %2089 = vadd.xlane.f32.xlu0 %v2088
        %v2090 = vpop.xlane.xlu0 %2089
        %v2091 = vadd.f32 %v2026, %v2027
        %2092 = vadd.xlane.f32.xlu0 %v2091
        %v2093 = vpop.xlane.xlu0 %2092
        %v2094 = vadd.f32 %v2028, %v2029
        %2095 = vadd.xlane.f32.xlu0 %v2094
        %v2096 = vpop.xlane.xlu0 %2095
        %v2097 = vadd.f32 %v2030, %v2031
        %2098 = vadd.xlane.f32.xlu0 %v2097
        %v2099 = vpop.xlane.xlu0 %2098
        %v2100 = vadd.f32 %v2032, %v2033
        %2101 = vadd.xlane.f32.xlu0 %v2100
        %v2102 = vpop.xlane.xlu0 %2101
        %v2103 = vadd.f32 %v2034, %v2035
        %2104 = vadd.xlane.f32.xlu0 %v2103
        %v2105 = vpop.xlane.xlu0 %2104
        %v2106 = vadd.f32 %v2036, %v2037
        %2107 = vadd.xlane.f32.xlu0 %v2106
        %v2108 = vpop.xlane.xlu0 %2107
        %v2109 = vadd.f32 %v2038, %v2039
        %2110 = vadd.xlane.f32.xlu0 %v2109
        %v2111 = vpop.xlane.xlu0 %2110
        %v2112 = vadd.f32 %v2040, %v2041
        %2113 = vadd.xlane.f32.xlu0 %v2112
        %v2114 = vpop.xlane.xlu0 %2113
        %v2115 = vadd.f32 %v2042, %v2043
        %2116 = vadd.xlane.f32.xlu0 %v2115
        %v2117 = vpop.xlane.xlu0 %2116
        %vm2118 = vcmask 1043456
        %v2119 = vsel %vm2118, %v2044, 0.0
        %v2120 = vsel %vm2118, %v2045, 0.0
        %v2121 = vadd.f32 %v2119, %v2120
        %2122 = vadd.xlane.f32.xlu0 %v2121
        %v2123 = vpop.xlane.xlu0 %2122
        %s2124 = smul.u32 %s25, 128
        %s2125 = sld [smem:[#allocation2 + %s2124]]
        %v2126 = vstv %s2125
        %v2127 = vadd.f32 %v2048, %v2126
        %v2128 = vadd.f32 %v2051, %v2126
        %v2129 = vadd.f32 %v2054, %v2126
        %v2130 = vadd.f32 %v2057, %v2126
        %v2131 = vadd.f32 %v2060, %v2126
        %v2132 = vadd.f32 %v2063, %v2126
        %v2133 = vadd.f32 %v2066, %v2126
        %v2134 = vadd.f32 %v2069, %v2126
        %v2135 = vadd.f32 %v2072, %v2126
        %v2136 = vadd.f32 %v2075, %v2126
        %v2137 = vadd.f32 %v2078, %v2126
        %v2138 = vadd.f32 %v2081, %v2126
        %v2139 = vadd.f32 %v2084, %v2126
        %v2140 = vadd.f32 %v2087, %v2126
        %v2141 = vadd.f32 %v2090, %v2126
        %v2142 = vadd.f32 %v2093, %v2126
        %v2143 = vadd.f32 %v2096, %v2126
        %v2144 = vadd.f32 %v2099, %v2126
        %v2145 = vadd.f32 %v2102, %v2126
        %v2146 = vadd.f32 %v2105, %v2126
        %v2147 = vadd.f32 %v2108, %v2126
        %v2148 = vadd.f32 %v2111, %v2126
        %v2149 = vadd.f32 %v2114, %v2126
        %v2150 = vadd.f32 %v2117, %v2126
        %v2151 = vadd.f32 %v2123, %v2126
        %v2152 = vmax.f32 %v2127, 0.0
        %v2153 = vmax.f32 %v2128, 0.0
        %v2154 = vmax.f32 %v2129, 0.0
        %v2155 = vmax.f32 %v2130, 0.0
        %v2156 = vmax.f32 %v2131, 0.0
        %v2157 = vmax.f32 %v2132, 0.0
        %v2158 = vmax.f32 %v2133, 0.0
        %v2159 = vmax.f32 %v2134, 0.0
        %v2160 = vmax.f32 %v2135, 0.0
        %v2161 = vmax.f32 %v2136, 0.0
        %v2162 = vmax.f32 %v2137, 0.0
        %v2163 = vmax.f32 %v2138, 0.0
        %v2164 = vmax.f32 %v2139, 0.0
        %v2165 = vmax.f32 %v2140, 0.0
        %v2166 = vmax.f32 %v2141, 0.0
        %v2167 = vmax.f32 %v2142, 0.0
        %v2168 = vmax.f32 %v2143, 0.0
        %v2169 = vmax.f32 %v2144, 0.0
        %v2170 = vmax.f32 %v2145, 0.0
        %v2171 = vmax.f32 %v2146, 0.0
        %v2172 = vmax.f32 %v2147, 0.0
        %v2173 = vmax.f32 %v2148, 0.0
        %v2174 = vmax.f32 %v2149, 0.0
        %v2175 = vmax.f32 %v2150, 0.0
        %v2176 = vmax.f32 %v2151, 0.0
        %s2177 = sadd.s32 %s2124, 1
        %s2178 = sld [smem:[#allocation2 + %s2177]]
        %v2179 = vstv %s2178
        %v2180 = vmul.f32 %v2152, %v2179
        %v2181 = vmul.f32 %v2153, %v2179
        %v2182 = vmul.f32 %v2154, %v2179
        %v2183 = vmul.f32 %v2155, %v2179
        %v2184 = vmul.f32 %v2156, %v2179
        %v2185 = vmul.f32 %v2157, %v2179
        %v2186 = vmul.f32 %v2158, %v2179
        %v2187 = vmul.f32 %v2159, %v2179
        %v2188 = vmul.f32 %v2160, %v2179
        %v2189 = vmul.f32 %v2161, %v2179
        %v2190 = vmul.f32 %v2162, %v2179
        %v2191 = vmul.f32 %v2163, %v2179
        %v2192 = vmul.f32 %v2164, %v2179
        %v2193 = vmul.f32 %v2165, %v2179
        %v2194 = vmul.f32 %v2166, %v2179
        %v2195 = vmul.f32 %v2167, %v2179
        %v2196 = vmul.f32 %v2168, %v2179
        %v2197 = vmul.f32 %v2169, %v2179
        %v2198 = vmul.f32 %v2170, %v2179
        %v2199 = vmul.f32 %v2171, %v2179
        %v2200 = vmul.f32 %v2172, %v2179
        %v2201 = vmul.f32 %v2173, %v2179
        %v2202 = vmul.f32 %v2174, %v2179
        %v2203 = vmul.f32 %v2175, %v2179
        %v2204 = vmul.f32 %v2176, %v2179
        %s2205 = sadd.s32 %s2124, 2
        %s2206 = sld [smem:[#allocation2 + %s2205]]
        %v2207 = vstv %s2206
        %v2208 = vadd.f32 %v2180, %v2207
        %v2209 = vadd.f32 %v2181, %v2207
        %v2210 = vadd.f32 %v2182, %v2207
        %v2211 = vadd.f32 %v2183, %v2207
        %v2212 = vadd.f32 %v2184, %v2207
        %v2213 = vadd.f32 %v2185, %v2207
        %v2214 = vadd.f32 %v2186, %v2207
        %v2215 = vadd.f32 %v2187, %v2207
        %v2216 = vadd.f32 %v2188, %v2207
        %v2217 = vadd.f32 %v2189, %v2207
        %v2218 = vadd.f32 %v2190, %v2207
        %v2219 = vadd.f32 %v2191, %v2207
        %v2220 = vadd.f32 %v2192, %v2207
        %v2221 = vadd.f32 %v2193, %v2207
        %v2222 = vadd.f32 %v2194, %v2207
        %v2223 = vadd.f32 %v2195, %v2207
        %v2224 = vadd.f32 %v2196, %v2207
        %v2225 = vadd.f32 %v2197, %v2207
        %v2226 = vadd.f32 %v2198, %v2207
        %v2227 = vadd.f32 %v2199, %v2207
        %v2228 = vadd.f32 %v2200, %v2207
        %v2229 = vadd.f32 %v2201, %v2207
        %v2230 = vadd.f32 %v2202, %v2207
        %v2231 = vadd.f32 %v2203, %v2207
        %v2232 = vadd.f32 %v2204, %v2207
        %v2233 = vmul.f32 %v2208, 0.5
        %v2234 = vmul.f32 %v2209, 0.5
        %v2235 = vmul.f32 %v2210, 0.5
        %v2236 = vmul.f32 %v2211, 0.5
        %v2237 = vmul.f32 %v2212, 0.5
        %v2238 = vmul.f32 %v2213, 0.5
        %v2239 = vmul.f32 %v2214, 0.5
        %v2240 = vmul.f32 %v2215, 0.5
        %v2241 = vmul.f32 %v2216, 0.5
        %v2242 = vmul.f32 %v2217, 0.5
        %v2243 = vmul.f32 %v2218, 0.5
        %v2244 = vmul.f32 %v2219, 0.5
        %v2245 = vmul.f32 %v2220, 0.5
        %v2246 = vmul.f32 %v2221, 0.5
        %v2247 = vmul.f32 %v2222, 0.5
        %v2248 = vmul.f32 %v2223, 0.5
        %v2249 = vmul.f32 %v2224, 0.5
        %v2250 = vmul.f32 %v2225, 0.5
        %v2251 = vmul.f32 %v2226, 0.5
        %v2252 = vmul.f32 %v2227, 0.5
        %v2253 = vmul.f32 %v2228, 0.5
        %v2254 = vmul.f32 %v2229, 0.5
        %v2255 = vmul.f32 %v2230, 0.5
        %v2256 = vmul.f32 %v2231, 0.5
        %v2257 = vmul.f32 %v2232, 0.5
        %v2258 = vtanh.pop %v2233
        %v2259 = vtanh.pop %v2234
        %v2260 = vtanh.pop %v2235
        %v2261 = vtanh.pop %v2236
        %v2262 = vtanh.pop %v2237
        %v2263 = vtanh.pop %v2238
        %v2264 = vtanh.pop %v2239
        %v2265 = vtanh.pop %v2240
        %v2266 = vtanh.pop %v2241
        %v2267 = vtanh.pop %v2242
        %v2268 = vtanh.pop %v2243
        %v2269 = vtanh.pop %v2244
        %v2270 = vtanh.pop %v2245
        %v2271 = vtanh.pop %v2246
        %v2272 = vtanh.pop %v2247
        %v2273 = vtanh.pop %v2248
        %v2274 = vtanh.pop %v2249
        %v2275 = vtanh.pop %v2250
        %v2276 = vtanh.pop %v2251
        %v2277 = vtanh.pop %v2252
        %v2278 = vtanh.pop %v2253
        %v2279 = vtanh.pop %v2254
        %v2280 = vtanh.pop %v2255
        %v2281 = vtanh.pop %v2256
        %v2282 = vtanh.pop %v2257
        %v2283 = vadd.f32 %v2258, 1.0
        %v2284 = vadd.f32 %v2259, 1.0
        %v2285 = vadd.f32 %v2260, 1.0
        %v2286 = vadd.f32 %v2261, 1.0
        %v2287 = vadd.f32 %v2262, 1.0
        %v2288 = vadd.f32 %v2263, 1.0
        %v2289 = vadd.f32 %v2264, 1.0
        %v2290 = vadd.f32 %v2265, 1.0
        %v2291 = vadd.f32 %v2266, 1.0
        %v2292 = vadd.f32 %v2267, 1.0
        %v2293 = vadd.f32 %v2268, 1.0
        %v2294 = vadd.f32 %v2269, 1.0
        %v2295 = vadd.f32 %v2270, 1.0
        %v2296 = vadd.f32 %v2271, 1.0
        %v2297 = vadd.f32 %v2272, 1.0
        %v2298 = vadd.f32 %v2273, 1.0
        %v2299 = vadd.f32 %v2274, 1.0
        %v2300 = vadd.f32 %v2275, 1.0
        %v2301 = vadd.f32 %v2276, 1.0
        %v2302 = vadd.f32 %v2277, 1.0
        %v2303 = vadd.f32 %v2278, 1.0
        %v2304 = vadd.f32 %v2279, 1.0
        %v2305 = vadd.f32 %v2280, 1.0
        %v2306 = vadd.f32 %v2281, 1.0
        %v2307 = vadd.f32 %v2282, 1.0
        %v2308 = vmul.f32 %v2283, 0.5
        %v2309 = vmul.f32 %v2284, 0.5
        %v2310 = vmul.f32 %v2285, 0.5
        %v2311 = vmul.f32 %v2286, 0.5
        %v2312 = vmul.f32 %v2287, 0.5
        %v2313 = vmul.f32 %v2288, 0.5
        %v2314 = vmul.f32 %v2289, 0.5
        %v2315 = vmul.f32 %v2290, 0.5
        %v2316 = vmul.f32 %v2291, 0.5
        %v2317 = vmul.f32 %v2292, 0.5
        %v2318 = vmul.f32 %v2293, 0.5
        %v2319 = vmul.f32 %v2294, 0.5
        %v2320 = vmul.f32 %v2295, 0.5
        %v2321 = vmul.f32 %v2296, 0.5
        %v2322 = vmul.f32 %v2297, 0.5
        %v2323 = vmul.f32 %v2298, 0.5
        %v2324 = vmul.f32 %v2299, 0.5
        %v2325 = vmul.f32 %v2300, 0.5
        %v2326 = vmul.f32 %v2301, 0.5
        %v2327 = vmul.f32 %v2302, 0.5
        %v2328 = vmul.f32 %v2303, 0.5
        %v2329 = vmul.f32 %v2304, 0.5
        %v2330 = vmul.f32 %v2305, 0.5
        %v2331 = vmul.f32 %v2306, 0.5
        %v2332 = vmul.f32 %v2307, 0.5
        %vm2333 = vcmask 7168
        %2334 = vst.msk [vmem:[%s447] sm:$0xff] %vm2333, %v2308
        %2335 = vst.msk [vmem:[%s447 + $0x8] sm:$0xff] %vm2333, %v2309
        %2336 = vst.msk [vmem:[%s447 + $0x10] sm:$0xff] %vm2333, %v2310
        %2337 = vst.msk [vmem:[%s447 + $0x18] sm:$0xff] %vm2333, %v2311
        %2338 = vst.msk [vmem:[%s447 + $0x20] sm:$0xff] %vm2333, %v2312
        %2339 = vst.msk [vmem:[%s447 + $0x28] sm:$0xff] %vm2333, %v2313
        %2340 = vst.msk [vmem:[%s447 + $0x30] sm:$0xff] %vm2333, %v2314
        %2341 = vst.msk [vmem:[%s447 + $0x38] sm:$0xff] %vm2333, %v2315
        %2342 = vst.msk [vmem:[%s447 + $0x40] sm:$0xff] %vm2333, %v2316
        %2343 = vst.msk [vmem:[%s447 + $0x48] sm:$0xff] %vm2333, %v2317
        %2344 = vst.msk [vmem:[%s447 + $0x50] sm:$0xff] %vm2333, %v2318
        %2345 = vst.msk [vmem:[%s447 + $0x58] sm:$0xff] %vm2333, %v2319
        %2346 = vst.msk [vmem:[%s447 + $0x60] sm:$0xff] %vm2333, %v2320
        %2347 = vst.msk [vmem:[%s447 + $0x68] sm:$0xff] %vm2333, %v2321
        %2348 = vst.msk [vmem:[%s447 + $0x70] sm:$0xff] %vm2333, %v2322
        %2349 = vst.msk [vmem:[%s447 + $0x78] sm:$0xff] %vm2333, %v2323
        %2350 = vst.msk [vmem:[%s447 + $0x80] sm:$0xff] %vm2333, %v2324
        %2351 = vst.msk [vmem:[%s447 + $0x88] sm:$0xff] %vm2333, %v2325
        %2352 = vst.msk [vmem:[%s447 + $0x90] sm:$0xff] %vm2333, %v2326
        %2353 = vst.msk [vmem:[%s447 + $0x98] sm:$0xff] %vm2333, %v2327
        %2354 = vst.msk [vmem:[%s447 + $0xa0] sm:$0xff] %vm2333, %v2328
        %2355 = vst.msk [vmem:[%s447 + $0xa8] sm:$0xff] %vm2333, %v2329
        %2356 = vst.msk [vmem:[%s447 + $0xb0] sm:$0xff] %vm2333, %v2330
        %2357 = vst.msk [vmem:[%s447 + $0xb8] sm:$0xff] %vm2333, %v2331
        %vm2358 = vcmask 3072
        %2359 = vst.msk [vmem:[%s447 + $0xc0] sm:$0xf] %vm2358, %v2332
        %v2360 = vmul.f32 %v2308, %v1857
        %v2361 = vmul.f32 %v2308, %v1859
        %v2362 = vmul.f32 %v2309, %v1861
        %v2363 = vmul.f32 %v2309, %v1863
        %v2364 = vmul.f32 %v2310, %v1867
        %v2365 = vmul.f32 %v2310, %v1869
        %v2366 = vmul.f32 %v2311, %v1871
        %v2367 = vmul.f32 %v2311, %v1873
        %v2368 = vmul.f32 %v2312, %v1877
        %v2369 = vmul.f32 %v2312, %v1879
        %v2370 = vmul.f32 %v2313, %v1881
        %v2371 = vmul.f32 %v2313, %v1883
        %v2372 = vmul.f32 %v2314, %v1887
        %v2373 = vmul.f32 %v2314, %v1889
        %v2374 = vmul.f32 %v2315, %v1891
        %v2375 = vmul.f32 %v2315, %v1893
        %v2376 = vmul.f32 %v2316, %v1897
        %v2377 = vmul.f32 %v2316, %v1899
        %v2378 = vmul.f32 %v2317, %v1901
        %v2379 = vmul.f32 %v2317, %v1903
        %v2380 = vmul.f32 %v2318, %v1907
        %v2381 = vmul.f32 %v2318, %v1909
        %v2382 = vmul.f32 %v2319, %v1911
        %v2383 = vmul.f32 %v2319, %v1913
        %v2384 = vmul.f32 %v2320, %v1917
        %v2385 = vmul.f32 %v2320, %v1919
        %v2386 = vmul.f32 %v2321, %v1921
        %v2387 = vmul.f32 %v2321, %v1923
        %v2388 = vmul.f32 %v2322, %v1927
        %v2389 = vmul.f32 %v2322, %v1929
        %v2390 = vmul.f32 %v2323, %v1931
        %v2391 = vmul.f32 %v2323, %v1933
        %v2392 = vmul.f32 %v2324, %v1937
        %v2393 = vmul.f32 %v2324, %v1939
        %v2394 = vmul.f32 %v2325, %v1941
        %v2395 = vmul.f32 %v2325, %v1943
        %v2396 = vmul.f32 %v2326, %v1947
        %v2397 = vmul.f32 %v2326, %v1949
        %v2398 = vmul.f32 %v2327, %v1951
        %v2399 = vmul.f32 %v2327, %v1953
        %v2400 = vmul.f32 %v2328, %v1957
        %v2401 = vmul.f32 %v2328, %v1959
        %v2402 = vmul.f32 %v2329, %v1961
        %v2403 = vmul.f32 %v2329, %v1963
        %v2404 = vmul.f32 %v2330, %v1967
        %v2405 = vmul.f32 %v2330, %v1969
        %v2406 = vmul.f32 %v2331, %v1971
        %v2407 = vmul.f32 %v2331, %v1973
        %v2408 = vmul.f32 %v2332, %v1977
        %v2409 = vmul.f32 %v2332, %v1979
        %v2410 = vadd.f32 %v2360, %v1857
        %v2411 = vadd.f32 %v2361, %v1859
        %v2412 = vadd.f32 %v2362, %v1861
        %v2413 = vadd.f32 %v2363, %v1863
        %v2414 = vadd.f32 %v2364, %v1867
        %v2415 = vadd.f32 %v2365, %v1869
        %v2416 = vadd.f32 %v2366, %v1871
        %v2417 = vadd.f32 %v2367, %v1873
        %v2418 = vadd.f32 %v2368, %v1877
        %v2419 = vadd.f32 %v2369, %v1879
        %v2420 = vadd.f32 %v2370, %v1881
        %v2421 = vadd.f32 %v2371, %v1883
        %v2422 = vadd.f32 %v2372, %v1887
        %v2423 = vadd.f32 %v2373, %v1889
        %v2424 = vadd.f32 %v2374, %v1891
        %v2425 = vadd.f32 %v2375, %v1893
        %v2426 = vadd.f32 %v2376, %v1897
        %v2427 = vadd.f32 %v2377, %v1899
        %v2428 = vadd.f32 %v2378, %v1901
        %v2429 = vadd.f32 %v2379, %v1903
        %v2430 = vadd.f32 %v2380, %v1907
        %v2431 = vadd.f32 %v2381, %v1909
        %v2432 = vadd.f32 %v2382, %v1911
        %v2433 = vadd.f32 %v2383, %v1913
        %v2434 = vadd.f32 %v2384, %v1917
        %v2435 = vadd.f32 %v2385, %v1919
        %v2436 = vadd.f32 %v2386, %v1921
        %v2437 = vadd.f32 %v2387, %v1923
        %v2438 = vadd.f32 %v2388, %v1927
        %v2439 = vadd.f32 %v2389, %v1929
        %v2440 = vadd.f32 %v2390, %v1931
        %v2441 = vadd.f32 %v2391, %v1933
        %v2442 = vadd.f32 %v2392, %v1937
        %v2443 = vadd.f32 %v2393, %v1939
        %v2444 = vadd.f32 %v2394, %v1941
        %v2445 = vadd.f32 %v2395, %v1943
        %v2446 = vadd.f32 %v2396, %v1947
        %v2447 = vadd.f32 %v2397, %v1949
        %v2448 = vadd.f32 %v2398, %v1951
        %v2449 = vadd.f32 %v2399, %v1953
        %v2450 = vadd.f32 %v2400, %v1957
        %v2451 = vadd.f32 %v2401, %v1959
        %v2452 = vadd.f32 %v2402, %v1961
        %v2453 = vadd.f32 %v2403, %v1963
        %v2454 = vadd.f32 %v2404, %v1967
        %v2455 = vadd.f32 %v2405, %v1969
        %v2456 = vadd.f32 %v2406, %v1971
        %v2457 = vadd.f32 %v2407, %v1973
        %v2458 = vadd.f32 %v2408, %v1977
        %v2459 = vadd.f32 %v2409, %v1979
        %v2460 = vsel %vm2333, %v2127, 0.0
        %v2461 = vsel %vm2333, %v2128, 0.0
        %v2462 = vadd.f32 %v2460, %v2461
        %v2463 = vsel %vm2333, %v2129, 0.0
        %v2464 = vadd.f32 %v2462, %v2463
        %v2465 = vsel %vm2333, %v2130, 0.0
        %v2466 = vadd.f32 %v2464, %v2465
        %v2467 = vsel %vm2333, %v2131, 0.0
        %v2468 = vadd.f32 %v2466, %v2467
        %v2469 = vsel %vm2333, %v2132, 0.0
        %v2470 = vadd.f32 %v2468, %v2469
        %v2471 = vsel %vm2333, %v2133, 0.0
        %v2472 = vadd.f32 %v2470, %v2471
        %v2473 = vsel %vm2333, %v2134, 0.0
        %v2474 = vadd.f32 %v2472, %v2473
        %v2475 = vsel %vm2333, %v2135, 0.0
        %v2476 = vadd.f32 %v2474, %v2475
        %v2477 = vsel %vm2333, %v2136, 0.0
        %v2478 = vadd.f32 %v2476, %v2477
        %v2479 = vsel %vm2333, %v2137, 0.0
        %v2480 = vadd.f32 %v2478, %v2479
        %v2481 = vsel %vm2333, %v2138, 0.0
        %v2482 = vadd.f32 %v2480, %v2481
        %v2483 = vsel %vm2333, %v2139, 0.0
        %v2484 = vadd.f32 %v2482, %v2483
        %v2485 = vsel %vm2333, %v2140, 0.0
        %v2486 = vadd.f32 %v2484, %v2485
        %v2487 = vsel %vm2333, %v2141, 0.0
        %v2488 = vadd.f32 %v2486, %v2487
        %v2489 = vsel %vm2333, %v2142, 0.0
        %v2490 = vadd.f32 %v2488, %v2489
        %v2491 = vsel %vm2333, %v2143, 0.0
        %v2492 = vadd.f32 %v2490, %v2491
        %v2493 = vsel %vm2333, %v2144, 0.0
        %v2494 = vadd.f32 %v2492, %v2493
        %v2495 = vsel %vm2333, %v2145, 0.0
        %v2496 = vadd.f32 %v2494, %v2495
        %v2497 = vsel %vm2333, %v2146, 0.0
        %v2498 = vadd.f32 %v2496, %v2497
        %v2499 = vsel %vm2333, %v2147, 0.0
        %v2500 = vadd.f32 %v2498, %v2499
        %v2501 = vsel %vm2333, %v2148, 0.0
        %v2502 = vadd.f32 %v2500, %v2501
        %v2503 = vsel %vm2333, %v2149, 0.0
        %v2504 = vadd.f32 %v2502, %v2503
        %v2505 = vsel %vm2333, %v2150, 0.0
        %v2506 = vadd.f32 %v2504, %v2505
        %v2507 = vsel %vm2358, %v2151, 0.0
        %v2508 = vadd.f32 %v2506, %v2507
        %2509 = vadd.xlane.f32.xlu0 %v2508
        %v2510 = vpop.xlane.xlu0 %2509
        %v2511 = vrot.slane %v2510, 4
        %v2512 = vadd.f32 %v2510, %v2511
        %v2513 = vrot.slane %v2512, 2
        %v2514 = vadd.f32 %v2512, %v2513
        %v2515 = vrot.slane %v2514, 1
        %v2516 = vadd.f32 %v2514, %v2515
        %s2517 = vtos %v2516
        %v2518 = vstv %s2517
        %v2519 = vrcp.pop 196.0
        %v2520 = vmul.f32 %v2518, %v2519
        %v2521 = vld [vmem:[%s430 + $0x3] ss:$0 sm:$0xff]
        %v2522 = vmul.f32 %v2520, %v2521
        %v2523 = vld [vmem:[%s430 + $0x4] ss:$0 sm:$0xff]
        %v2524 = vadd.f32 %v2522, %v2523
        %vm2525 = vcmask 15360
        %v2526 = vsel %vm2525, %v2524, -inf
        %2527 = vmax.xlane.f32.xlu0 %v2526
        %v2528 = vpop.xlane.xlu0 %2527
        %v2529 = vsub.f32 %v2524, %v2528
        %v2530 = vmul.f32 %v2529, 1.442695
        %v2531 = vpow.pop %v2530
        %v2532 = vsel %vm2525, %v2531, 0.0
        %2533 = vadd.xlane.f32.xlu0 %v2532
        %v2534 = vpop.xlane.xlu0 %2533
        %v2535 = vrcp.pop %v2534
        %v2536 = vmul.f32 %v2531, %v2535
        %vm2537 = vcmask 8192
        %2538 = vst.msk [vmem:[%s454] sm:$0x1] %vm2537, %v2536
        %v2539 = vld [vmem:[%s4] sm:$0xf]
        %v2540 = vpack.c.bf16 %v2412, %v2410
        %v2541 = vpack.c.bf16 %v2413, %v2411
        %v2542 = vpack.c.bf16 %v2416, %v2414
        %v2543 = vpack.c.bf16 %v2417, %v2415
        %v2544 = vpack.c.bf16 %v2420, %v2418
        %v2545 = vpack.c.bf16 %v2421, %v2419
        %v2546 = vpack.c.bf16 %v2424, %v2422
        %v2547 = vpack.c.bf16 %v2425, %v2423
        %v2548 = vpack.c.bf16 %v2428, %v2426
        %v2549 = vpack.c.bf16 %v2429, %v2427
        %v2550 = vpack.c.bf16 %v2432, %v2430
        %v2551 = vpack.c.bf16 %v2433, %v2431
        %v2552 = vpack.c.bf16 %v2436, %v2434
        %v2553 = vpack.c.bf16 %v2437, %v2435
        %v2554 = vpack.c.bf16 %v2440, %v2438
        %v2555 = vpack.c.bf16 %v2441, %v2439
        %v2556 = vpack.c.bf16 %v2444, %v2442
        %v2557 = vpack.c.bf16 %v2445, %v2443
        %v2558 = vpack.c.bf16 %v2448, %v2446
        %v2559 = vpack.c.bf16 %v2449, %v2447
        %v2560 = vpack.c.bf16 %v2452, %v2450
        %v2561 = vpack.c.bf16 %v2453, %v2451
        %v2562 = vpack.c.bf16 %v2456, %v2454
        %v2563 = vpack.c.bf16 %v2457, %v2455
        %v2564 = vpack.c.bf16 %v2458, %v2458
        %v2565 = vpack.c.bf16 %v2459, %v2459
        %v2568 = vunpack.c.l.s4 1983009808
        %v2569 = vunpack.c.0.s8 %v2568
        %v2570 = vlaneseq
        %v2571 = vshrl.u32 %v2570, 7
        %v2572 = vsub.s32 %v2569, %v2571
        %v2573 = vrot.slane %v2539, %v2572
        %v2574 = vcombine.high %v2573, %v2573
        %vm2576 = vcmask 556032
        %v2578 = vsel %vm2576, %v2574, 0
        %vm2580 = vcmask 1041408
        %v2582 = vsel %vm2580, %v2564, 0
        %v2585 = vsel %vm2580, %v2565, 0
        %2587 = vmatprep.subr.bf16.mxu0 %v2541
        %2588 = vmatpush1.bf16.msra.mxu0 %v2540
        %2589 = vmatprep.subr.bf16.mxu0 %v2543
        %2590 = vmatpush1.bf16.msra.mxu0 %v2542
        %2591 = vmatprep.subr.bf16.mxu0 %v2545
        %2592 = vmatpush1.bf16.msra.mxu0 %v2544
        %2593 = vmatprep.subr.bf16.mxu0 %v2547
        %2594 = vmatpush1.bf16.msra.mxu0 %v2546
        %2595 = vmatprep.subr.bf16.mxu0 %v2549
        %2596 = vmatpush1.bf16.msra.mxu0 %v2548
        %2597 = vmatprep.subr.bf16.mxu0 %v2551
        %2598 = vmatpush1.bf16.msra.mxu0 %v2550
        %2599 = vmatprep.subr.bf16.mxu0 %v2553
        %2600 = vmatpush1.bf16.msra.mxu0 %v2552
        %2601 = vmatprep.subr.bf16.mxu0 %v2555
        %2602 = vmatpush1.bf16.msra.mxu0 %v2554
        %2603 = vmatprep.subr.bf16.mxu0 %v2557
        %2604 = vmatpush1.bf16.msra.mxu0 %v2556
        %2605 = vmatprep.subr.bf16.mxu0 %v2559
        %2606 = vmatpush1.bf16.msra.mxu0 %v2558
        %2607 = vmatprep.subr.bf16.mxu0 %v2561
        %2608 = vmatpush1.bf16.msra.mxu0 %v2560
        %2609 = vmatprep.subr.bf16.mxu0 %v2563
        %2610 = vmatpush1.bf16.msra.mxu0 %v2562
        %2611 = vmatprep.subr.bf16.mxu0 %v2585
        %2612 = vmatpush1.bf16.msra.mxu0 %v2582
        %2613 = vmatprep.subr.bf16.mxu0 0
        %2614 = vmatpush1.bf16.msra.mxu0 0
        %2615 = vmatprep.subr.bf16.mxu0 0
        %2616 = vmatpush1.bf16.msra.mxu0 0
        %2617 = vmatprep.subr.bf16.mxu0 0
        %2618 = vmatpush1.bf16.msra.mxu0 0
        %2619 = vmatprep.mubr.bf16.mxu0 %v2578
        %2620 = vmatmul.mubr.bf16.gmra.mrb[0].mxu0 %v2573
        %v2621 = vpop.f32.mrb[0].mxu0
        %v2622 = vadd.f32 0.0, %v2621
        %v2623 = vpop.f32.mrb[0].mxu0
        %v2624 = vadd.f32 0.0, %v2623
        %v2625 = vpop.f32.mrb[0].mxu0
        %v2626 = vpop.f32.mrb[0].mxu0
        %2627 = vdwg.mxu0
        %v2630 = vrot.slane %v2622, 1
        %v2631 = vrot.slane %v2624, 1
        %v2634 = vrot.slane %v2622, 2
        %v2635 = vrot.slane %v2624, 2
        %v2638 = vrot.slane %v2622, 3
        %v2639 = vrot.slane %v2624, 3
        %v2642 = vpack.c.bf16 %v2622, %v2622
        %v2643 = vpack.c.bf16 %v2624, %v2624
        %v2644 = vpack.c.bf16 %v2630, %v2630
        %v2645 = vpack.c.bf16 %v2631, %v2631
        %v2646 = vpack.c.bf16 %v2634, %v2634
        %v2647 = vpack.c.bf16 %v2635, %v2635
        %v2648 = vpack.c.bf16 %v2638, %v2638
        %v2649 = vpack.c.bf16 %v2639, %v2639
        %v2650 = vld [vmem:[%s425] sm:$0xff]
        %v2651 = vld [vmem:[%s425 + $0x8] sm:$0xff]
        %v2652 = vld [vmem:[%s425 + $0x10] sm:$0xff]
        %v2653 = vld [vmem:[%s425 + $0x18] sm:$0xff]
        %v2654 = vld [vmem:[%s425 + $0x20] sm:$0xff]
        %v2655 = vld [vmem:[%s425 + $0x28] sm:$0xff]
        %v2656 = vld [vmem:[%s425 + $0x30] sm:$0xff]
        %v2657 = vld [vmem:[%s425 + $0x38] sm:$0xff]
        %v2658 = vld [vmem:[%s425 + $0x40] sm:$0xff]
        %v2659 = vld [vmem:[%s425 + $0x48] sm:$0xff]
        %v2660 = vld [vmem:[%s425 + $0x50] sm:$0xff]
        %v2661 = vld [vmem:[%s425 + $0x58] sm:$0xff]
        %v2662 = vld [vmem:[%s425 + $0x60] sm:$0xff]
        %v2663 = vld [vmem:[%s425 + $0x68] sm:$0xff]
        %v2664 = vld [vmem:[%s425 + $0x70] sm:$0xff]
        %v2665 = vld [vmem:[%s425 + $0x78] sm:$0xff]
        %v2666 = vld [vmem:[%s425 + $0x80] sm:$0xff]
        %v2667 = vld [vmem:[%s425 + $0x88] sm:$0xff]
        %v2668 = vld [vmem:[%s425 + $0x90] sm:$0xff]
        %v2669 = vld [vmem:[%s425 + $0x98] sm:$0xff]
        %v2670 = vld [vmem:[%s425 + $0xa0] sm:$0xff]
        %v2671 = vld [vmem:[%s425 + $0xa8] sm:$0xff]
        %v2672 = vld [vmem:[%s425 + $0xb0] sm:$0xff]
        %v2673 = vld [vmem:[%s425 + $0xb8] sm:$0xff]
        %v2674 = vld [vmem:[%s425 + $0xc0] sm:$0xff]
        %v2675 = vld [vmem:[%s425 + $0xc8] sm:$0xff]
        %v2676 = vld [vmem:[%s425 + $0xd0] sm:$0xff]
        %v2677 = vld [vmem:[%s425 + $0xd8] sm:$0xff]
        %v2678 = vld [vmem:[%s425 + $0xe0] sm:$0xff]
        %v2679 = vld [vmem:[%s425 + $0xe8] sm:$0xff]
        %v2680 = vld [vmem:[%s425 + $0xf0] sm:$0xff]
        %v2681 = vld [vmem:[%s425 + $0xf8] sm:$0xff]
        %v2682 = vld [vmem:[%s425 + $0x100] sm:$0xff]
        %v2683 = vld [vmem:[%s425 + $0x108] sm:$0xff]
        %v2684 = vld [vmem:[%s425 + $0x110] sm:$0xff]
        %v2685 = vld [vmem:[%s425 + $0x118] sm:$0xff]
        %v2686 = vld [vmem:[%s425 + $0x120] sm:$0xff]
        %v2687 = vld [vmem:[%s425 + $0x128] sm:$0xff]
        %v2688 = vld [vmem:[%s425 + $0x130] sm:$0xff]
        %v2689 = vld [vmem:[%s425 + $0x138] sm:$0xff]
        %v2690 = vld [vmem:[%s425 + $0x140] sm:$0xff]
        %v2691 = vld [vmem:[%s425 + $0x148] sm:$0xff]
        %v2692 = vld [vmem:[%s425 + $0x150] sm:$0xff]
        %v2693 = vld [vmem:[%s425 + $0x158] sm:$0xff]
        %v2694 = vld [vmem:[%s425 + $0x160] sm:$0xff]
        %v2695 = vld [vmem:[%s425 + $0x168] sm:$0xff]
        %v2696 = vld [vmem:[%s425 + $0x170] sm:$0xff]
        %v2697 = vld [vmem:[%s425 + $0x178] sm:$0xff]
        %v2698 = vld [vmem:[%s425 + $0x180] sm:$0xff]
        %v2699 = vld [vmem:[%s425 + $0x188] sm:$0xff]
        %v2700 = vld [vmem:[%s425 + $0x190] sm:$0xff]
        %v2701 = vld [vmem:[%s425 + $0x198] sm:$0xff]
        %v2702 = vld [vmem:[%s425 + $0x1a0] sm:$0xff]
        %v2703 = vld [vmem:[%s425 + $0x1a8] sm:$0xff]
        %v2704 = vld [vmem:[%s425 + $0x1b0] sm:$0xff]
        %v2705 = vld [vmem:[%s425 + $0x1b8] sm:$0xff]
        %v2706 = vld [vmem:[%s425 + $0x1c0] sm:$0xff]
        %v2707 = vld [vmem:[%s425 + $0x1c8] sm:$0xff]
        %v2708 = vld [vmem:[%s425 + $0x1d0] sm:$0xff]
        %v2709 = vld [vmem:[%s425 + $0x1d8] sm:$0xff]
        %v2710 = vld [vmem:[%s425 + $0x1e0] sm:$0xff]
        %v2711 = vld [vmem:[%s425 + $0x1e8] sm:$0xff]
        %v2712 = vld [vmem:[%s425 + $0x1f0] sm:$0xff]
        %v2713 = vld [vmem:[%s425 + $0x1f8] sm:$0xff]
        %v2714 = vld [vmem:[%s425 + $0x200] sm:$0xff]
        %v2715 = vld [vmem:[%s425 + $0x208] sm:$0xff]
        %v2716 = vld [vmem:[%s425 + $0x210] sm:$0xff]
        %v2717 = vld [vmem:[%s425 + $0x218] sm:$0xff]
        %v2718 = vld [vmem:[%s425 + $0x220] sm:$0xff]
        %v2719 = vld [vmem:[%s425 + $0x228] sm:$0xff]
        %v2720 = vld [vmem:[%s425 + $0x230] sm:$0xff]
        %v2721 = vld [vmem:[%s425 + $0x238] sm:$0xff]
        %v2722 = vld [vmem:[%s425 + $0x240] sm:$0xff]
        %v2723 = vld [vmem:[%s425 + $0x248] sm:$0xff]
        %v2724 = vld [vmem:[%s425 + $0x250] sm:$0xff]
        %v2725 = vld [vmem:[%s425 + $0x258] sm:$0xff]
        %v2726 = vld [vmem:[%s425 + $0x260] sm:$0xff]
        %v2727 = vld [vmem:[%s425 + $0x268] sm:$0xff]
        %v2728 = vld [vmem:[%s425 + $0x270] sm:$0xff]
        %v2729 = vld [vmem:[%s425 + $0x278] sm:$0xff]
        %v2730 = vld [vmem:[%s425 + $0x280] sm:$0xff]
        %v2731 = vld [vmem:[%s425 + $0x288] sm:$0xff]
        %v2732 = vld [vmem:[%s425 + $0x290] sm:$0xff]
        %v2733 = vld [vmem:[%s425 + $0x298] sm:$0xff]
        %v2734 = vld [vmem:[%s425 + $0x2a0] sm:$0xff]
        %v2735 = vld [vmem:[%s425 + $0x2a8] sm:$0xff]
        %v2736 = vld [vmem:[%s425 + $0x2b0] sm:$0xff]
        %v2737 = vld [vmem:[%s425 + $0x2b8] sm:$0xff]
        %v2738 = vld [vmem:[%s425 + $0x2c0] sm:$0xff]
        %v2739 = vld [vmem:[%s425 + $0x2c8] sm:$0xff]
        %v2740 = vld [vmem:[%s425 + $0x2d0] sm:$0xff]
        %v2741 = vld [vmem:[%s425 + $0x2d8] sm:$0xff]
        %v2742 = vld [vmem:[%s425 + $0x2e0] sm:$0xff]
        %v2743 = vld [vmem:[%s425 + $0x2e8] sm:$0xff]
        %v2744 = vld [vmem:[%s425 + $0x2f0] sm:$0xff]
        %v2745 = vld [vmem:[%s425 + $0x2f8] sm:$0xff]
        %v2746 = vld [vmem:[%s425 + $0x300] sm:$0xff]
        %v2747 = vld [vmem:[%s425 + $0x308] sm:$0xff]
        %v2748 = vld [vmem:[%s425 + $0x310] sm:$0xff]
        %v2749 = vld [vmem:[%s425 + $0x318] sm:$0xff]
        %v2750 = vld [vmem:[%s425 + $0x320] sm:$0xff]
        %v2751 = vld [vmem:[%s425 + $0x328] sm:$0xff]
        %v2752 = vld [vmem:[%s425 + $0x330] sm:$0xff]
        %v2753 = vld [vmem:[%s425 + $0x338] sm:$0xff]
        %v2754 = vld [vmem:[%s425 + $0x340] sm:$0xff]
        %v2755 = vld [vmem:[%s425 + $0x348] sm:$0xff]
        %v2756 = vld [vmem:[%s425 + $0x350] sm:$0xff]
        %v2757 = vld [vmem:[%s425 + $0x358] sm:$0xff]
        %v2758 = vld [vmem:[%s425 + $0x360] sm:$0xff]
        %v2759 = vld [vmem:[%s425 + $0x368] sm:$0xff]
        %v2760 = vld [vmem:[%s425 + $0x370] sm:$0xff]
        %v2761 = vld [vmem:[%s425 + $0x378] sm:$0xff]
        %v2762 = vld [vmem:[%s425 + $0x380] sm:$0xff]
        %v2763 = vld [vmem:[%s425 + $0x388] sm:$0xff]
        %v2764 = vld [vmem:[%s425 + $0x390] sm:$0xff]
        %v2765 = vld [vmem:[%s425 + $0x398] sm:$0xff]
        %v2766 = vld [vmem:[%s425 + $0x3a0] sm:$0xff]
        %v2767 = vld [vmem:[%s425 + $0x3a8] sm:$0xff]
        %v2768 = vld [vmem:[%s425 + $0x3b0] sm:$0xff]
        %v2769 = vld [vmem:[%s425 + $0x3b8] sm:$0xff]
        %v2770 = vld [vmem:[%s425 + $0x3c0] sm:$0xff]
        %v2771 = vld [vmem:[%s425 + $0x3c8] sm:$0xff]
        %v2772 = vld [vmem:[%s425 + $0x3d0] sm:$0xff]
        %v2773 = vld [vmem:[%s425 + $0x3d8] sm:$0xff]
        %v2774 = vld [vmem:[%s425 + $0x3e0] sm:$0xff]
        %v2775 = vld [vmem:[%s425 + $0x3e8] sm:$0xff]
        %v2776 = vld [vmem:[%s425 + $0x3f0] sm:$0xff]
        %v2777 = vld [vmem:[%s425 + $0x3f8] sm:$0xff]
        %v2778 = vld [vmem:[%s425 + $0x400] sm:$0xff]
        %v2779 = vld [vmem:[%s425 + $0x408] sm:$0xff]
        %v2780 = vld [vmem:[%s425 + $0x410] sm:$0xff]
        %v2781 = vld [vmem:[%s425 + $0x418] sm:$0xff]
        %v2782 = vld [vmem:[%s425 + $0x420] sm:$0xff]
        %v2783 = vld [vmem:[%s425 + $0x428] sm:$0xff]
        %v2784 = vld [vmem:[%s425 + $0x430] sm:$0xff]
        %v2785 = vld [vmem:[%s425 + $0x438] sm:$0xff]
        %v2786 = vld [vmem:[%s425 + $0x440] sm:$0xff]
        %v2787 = vld [vmem:[%s425 + $0x448] sm:$0xff]
        %v2788 = vld [vmem:[%s425 + $0x450] sm:$0xff]
        %v2789 = vld [vmem:[%s425 + $0x458] sm:$0xff]
        %v2790 = vld [vmem:[%s425 + $0x460] sm:$0xff]
        %v2791 = vld [vmem:[%s425 + $0x468] sm:$0xff]
        %v2792 = vld [vmem:[%s425 + $0x470] sm:$0xff]
        %v2793 = vld [vmem:[%s425 + $0x478] sm:$0xff]
        %v2794 = vld [vmem:[%s425 + $0x480] sm:$0xff]
        %v2795 = vld [vmem:[%s425 + $0x488] sm:$0xff]
        %v2796 = vld [vmem:[%s425 + $0x490] sm:$0xff]
        %v2797 = vld [vmem:[%s425 + $0x498] sm:$0xff]
        %v2798 = vld [vmem:[%s425 + $0x4a0] sm:$0xff]
        %v2799 = vld [vmem:[%s425 + $0x4a8] sm:$0xff]
        %v2800 = vld [vmem:[%s425 + $0x4b0] sm:$0xff]
        %v2801 = vld [vmem:[%s425 + $0x4b8] sm:$0xff]
        %v2802 = vld [vmem:[%s425 + $0x4c0] sm:$0xff]
        %v2803 = vld [vmem:[%s425 + $0x4c8] sm:$0xff]
        %v2804 = vld [vmem:[%s425 + $0x4d0] sm:$0xff]
        %v2805 = vld [vmem:[%s425 + $0x4d8] sm:$0xff]
        %v2806 = vld [vmem:[%s425 + $0x4e0] sm:$0xff]
        %v2807 = vld [vmem:[%s425 + $0x4e8] sm:$0xff]
        %v2808 = vld [vmem:[%s425 + $0x4f0] sm:$0xff]
        %v2809 = vld [vmem:[%s425 + $0x4f8] sm:$0xff]
        %v2810 = vld [vmem:[%s425 + $0x500] sm:$0xff]
        %v2811 = vld [vmem:[%s425 + $0x508] sm:$0xff]
        %v2812 = vld [vmem:[%s425 + $0x510] sm:$0xff]
        %v2813 = vld [vmem:[%s425 + $0x518] sm:$0xff]
        %v2814 = vld [vmem:[%s425 + $0x520] sm:$0xff]
        %v2815 = vld [vmem:[%s425 + $0x528] sm:$0xff]
        %v2816 = vld [vmem:[%s425 + $0x530] sm:$0xff]
        %v2817 = vld [vmem:[%s425 + $0x538] sm:$0xff]
        %v2818 = vld [vmem:[%s425 + $0x540] sm:$0xff]
        %v2819 = vld [vmem:[%s425 + $0x548] sm:$0xff]
        %v2820 = vld [vmem:[%s425 + $0x550] sm:$0xff]
        %v2821 = vld [vmem:[%s425 + $0x558] sm:$0xff]
        %v2822 = vld [vmem:[%s425 + $0x560] sm:$0xff]
        %v2823 = vld [vmem:[%s425 + $0x568] sm:$0xff]
        %v2824 = vld [vmem:[%s425 + $0x570] sm:$0xff]
        %v2825 = vld [vmem:[%s425 + $0x578] sm:$0xff]
        %v2826 = vld [vmem:[%s425 + $0x580] sm:$0xff]
        %v2827 = vld [vmem:[%s425 + $0x588] sm:$0xff]
        %v2828 = vld [vmem:[%s425 + $0x590] sm:$0xff]
        %v2829 = vld [vmem:[%s425 + $0x598] sm:$0xff]
        %v2830 = vld [vmem:[%s425 + $0x5a0] sm:$0xff]
        %v2831 = vld [vmem:[%s425 + $0x5a8] sm:$0xff]
        %v2832 = vld [vmem:[%s425 + $0x5b0] sm:$0xff]
        %v2833 = vld [vmem:[%s425 + $0x5b8] sm:$0xff]
        %v2834 = vld [vmem:[%s425 + $0x5c0] sm:$0xff]
        %v2835 = vld [vmem:[%s425 + $0x5c8] sm:$0xff]
        %v2836 = vld [vmem:[%s425 + $0x5d0] sm:$0xff]
        %v2837 = vld [vmem:[%s425 + $0x5d8] sm:$0xff]
        %v2838 = vld [vmem:[%s425 + $0x5e0] sm:$0xff]
        %v2839 = vld [vmem:[%s425 + $0x5e8] sm:$0xff]
        %v2840 = vld [vmem:[%s425 + $0x5f0] sm:$0xff]
        %v2841 = vld [vmem:[%s425 + $0x5f8] sm:$0xff]
        %v2842 = vld [vmem:[%s425 + $0x600] sm:$0xff]
        %v2843 = vld [vmem:[%s425 + $0x608] sm:$0xff]
        %v2844 = vld [vmem:[%s425 + $0x610] sm:$0xff]
        %v2845 = vld [vmem:[%s425 + $0x618] sm:$0xff]
        %v2846 = vld [vmem:[%s425 + $0x620] sm:$0xff]
        %v2847 = vld [vmem:[%s425 + $0x628] sm:$0xff]
        %v2848 = vld [vmem:[%s425 + $0x630] sm:$0xff]
        %v2849 = vld [vmem:[%s425 + $0x638] sm:$0xff]
        %v2850 = vld [vmem:[%s425 + $0x640] sm:$0xff]
        %v2851 = vld [vmem:[%s425 + $0x648] sm:$0xff]
        %v2852 = vld [vmem:[%s425 + $0x650] sm:$0xff]
        %v2853 = vld [vmem:[%s425 + $0x658] sm:$0xff]
        %v2854 = vld [vmem:[%s425 + $0x660] sm:$0xff]
        %v2855 = vld [vmem:[%s425 + $0x668] sm:$0xff]
        %v2856 = vld [vmem:[%s425 + $0x670] sm:$0xff]
        %v2857 = vld [vmem:[%s425 + $0x678] sm:$0xff]
        %v2858 = vld [vmem:[%s425 + $0x680] sm:$0xff]
        %v2859 = vld [vmem:[%s425 + $0x688] sm:$0xff]
        %v2860 = vld [vmem:[%s425 + $0x690] sm:$0xff]
        %v2861 = vld [vmem:[%s425 + $0x698] sm:$0xff]
        %v2862 = vld [vmem:[%s425 + $0x6a0] sm:$0xff]
        %v2863 = vld [vmem:[%s425 + $0x6a8] sm:$0xff]
        %v2864 = vld [vmem:[%s425 + $0x6b0] sm:$0xff]
        %v2865 = vld [vmem:[%s425 + $0x6b8] sm:$0xff]
        %v2866 = vld [vmem:[%s425 + $0x6c0] sm:$0xff]
        %v2867 = vld [vmem:[%s425 + $0x6c8] sm:$0xff]
        %v2868 = vld [vmem:[%s425 + $0x6d0] sm:$0xff]
        %v2869 = vld [vmem:[%s425 + $0x6d8] sm:$0xff]
        %v2870 = vld [vmem:[%s425 + $0x6e0] sm:$0xff]
        %v2871 = vld [vmem:[%s425 + $0x6e8] sm:$0xff]
        %v2872 = vld [vmem:[%s425 + $0x6f0] sm:$0xff]
        %v2873 = vld [vmem:[%s425 + $0x6f8] sm:$0xff]
        %v2874 = vld [vmem:[%s425 + $0x700] sm:$0xff]
        %v2875 = vld [vmem:[%s425 + $0x708] sm:$0xff]
        %v2876 = vld [vmem:[%s425 + $0x710] sm:$0xff]
        %v2877 = vld [vmem:[%s425 + $0x718] sm:$0xff]
        %v2878 = vld [vmem:[%s425 + $0x720] sm:$0xff]
        %v2879 = vld [vmem:[%s425 + $0x728] sm:$0xff]
        %v2880 = vld [vmem:[%s425 + $0x730] sm:$0xff]
        %v2881 = vld [vmem:[%s425 + $0x738] sm:$0xff]
        %v2882 = vld [vmem:[%s425 + $0x740] sm:$0xff]
        %v2883 = vld [vmem:[%s425 + $0x748] sm:$0xff]
        %v2884 = vld [vmem:[%s425 + $0x750] sm:$0xff]
        %v2885 = vld [vmem:[%s425 + $0x758] sm:$0xff]
        %v2886 = vld [vmem:[%s425 + $0x760] sm:$0xff]
        %v2887 = vld [vmem:[%s425 + $0x768] sm:$0xff]
        %v2888 = vld [vmem:[%s425 + $0x770] sm:$0xff]
        %v2889 = vld [vmem:[%s425 + $0x778] sm:$0xff]
        %v2890 = vld [vmem:[%s425 + $0x780] sm:$0xff]
        %v2891 = vld [vmem:[%s425 + $0x788] sm:$0xff]
        %v2892 = vld [vmem:[%s425 + $0x790] sm:$0xff]
        %v2893 = vld [vmem:[%s425 + $0x798] sm:$0xff]
        %v2894 = vld [vmem:[%s425 + $0x7a0] sm:$0xff]
        %v2895 = vld [vmem:[%s425 + $0x7a8] sm:$0xff]
        %v2896 = vld [vmem:[%s425 + $0x7b0] sm:$0xff]
        %v2897 = vld [vmem:[%s425 + $0x7b8] sm:$0xff]
        %v2898 = vld [vmem:[%s425 + $0x7c0] sm:$0xff]
        %v2899 = vld [vmem:[%s425 + $0x7c8] sm:$0xff]
        %v2900 = vld [vmem:[%s425 + $0x7d0] sm:$0xff]
        %v2901 = vld [vmem:[%s425 + $0x7d8] sm:$0xff]
        %v2902 = vld [vmem:[%s425 + $0x7e0] sm:$0xff]
        %v2903 = vld [vmem:[%s425 + $0x7e8] sm:$0xff]
        %v2904 = vld [vmem:[%s425 + $0x7f0] sm:$0xff]
        %v2905 = vld [vmem:[%s425 + $0x7f8] sm:$0xff]
        %s2906 = scalar_lea.vmem %s430, 2
        %v2907 = vld [vmem:[%s2906] ss:$8 sm:$0xf]
        %v3164 = vunpack.c.l.b16 %v2650
        %v3165 = vunpack.c.h.b16 %v2650
        %v3166 = vunpack.c.l.b16 %v2651
        %v3167 = vunpack.c.h.b16 %v2651
        %v3168 = vunpack.c.l.b16 %v2652
        %v3169 = vunpack.c.h.b16 %v2652
        %v3170 = vunpack.c.l.b16 %v2653
        %v3171 = vunpack.c.h.b16 %v2653
        %v3172 = vunpack.c.l.b16 %v2654
        %v3173 = vunpack.c.h.b16 %v2654
        %v3174 = vunpack.c.l.b16 %v2655
        %v3175 = vunpack.c.h.b16 %v2655
        %v3176 = vunpack.c.l.b16 %v2656
        %v3177 = vunpack.c.h.b16 %v2656
        %v3178 = vunpack.c.l.b16 %v2657
        %v3179 = vunpack.c.h.b16 %v2657
        %v3180 = vunpack.c.l.b16 %v2658
        %v3181 = vunpack.c.h.b16 %v2658
        %v3182 = vunpack.c.l.b16 %v2659
        %v3183 = vunpack.c.h.b16 %v2659
        %v3184 = vunpack.c.l.b16 %v2660
        %v3185 = vunpack.c.h.b16 %v2660
        %v3186 = vunpack.c.l.b16 %v2661
        %v3187 = vunpack.c.h.b16 %v2661
        %v3188 = vunpack.c.l.b16 %v2662
        %v3189 = vunpack.c.h.b16 %v2662
        %v3190 = vunpack.c.l.b16 %v2663
        %v3191 = vunpack.c.h.b16 %v2663
        %v3192 = vunpack.c.l.b16 %v2664
        %v3193 = vunpack.c.h.b16 %v2664
        %v3194 = vunpack.c.l.b16 %v2665
        %v3195 = vunpack.c.h.b16 %v2665
        %v3196 = vunpack.c.l.b16 %v2666
        %v3197 = vunpack.c.h.b16 %v2666
        %v3198 = vunpack.c.l.b16 %v2667
        %v3199 = vunpack.c.h.b16 %v2667
        %v3200 = vunpack.c.l.b16 %v2668
        %v3201 = vunpack.c.h.b16 %v2668
        %v3202 = vunpack.c.l.b16 %v2669
        %v3203 = vunpack.c.h.b16 %v2669
        %v3204 = vunpack.c.l.b16 %v2670
        %v3205 = vunpack.c.h.b16 %v2670
        %v3206 = vunpack.c.l.b16 %v2671
        %v3207 = vunpack.c.h.b16 %v2671
        %v3208 = vunpack.c.l.b16 %v2672
        %v3209 = vunpack.c.h.b16 %v2672
        %v3210 = vunpack.c.l.b16 %v2673
        %v3211 = vunpack.c.h.b16 %v2673
        %v3212 = vunpack.c.l.b16 %v2674
        %v3213 = vunpack.c.h.b16 %v2674
        %v3214 = vunpack.c.l.b16 %v2675
        %v3215 = vunpack.c.h.b16 %v2675
        %v3216 = vunpack.c.l.b16 %v2676
        %v3217 = vunpack.c.h.b16 %v2676
        %v3218 = vunpack.c.l.b16 %v2677
        %v3219 = vunpack.c.h.b16 %v2677
        %v3220 = vunpack.c.l.b16 %v2678
        %v3221 = vunpack.c.h.b16 %v2678
        %v3222 = vunpack.c.l.b16 %v2679
        %v3223 = vunpack.c.h.b16 %v2679
        %v3224 = vunpack.c.l.b16 %v2680
        %v3225 = vunpack.c.h.b16 %v2680
        %v3226 = vunpack.c.l.b16 %v2681
        %v3227 = vunpack.c.h.b16 %v2681
        %v3228 = vunpack.c.l.b16 %v2682
        %v3229 = vunpack.c.h.b16 %v2682
        %v3230 = vunpack.c.l.b16 %v2683
        %v3231 = vunpack.c.h.b16 %v2683
        %v3232 = vunpack.c.l.b16 %v2684
        %v3233 = vunpack.c.h.b16 %v2684
        %v3234 = vunpack.c.l.b16 %v2685
        %v3235 = vunpack.c.h.b16 %v2685
        %v3236 = vunpack.c.l.b16 %v2686
        %v3237 = vunpack.c.h.b16 %v2686
        %v3238 = vunpack.c.l.b16 %v2687
        %v3239 = vunpack.c.h.b16 %v2687
        %v3240 = vunpack.c.l.b16 %v2688
        %v3241 = vunpack.c.h.b16 %v2688
        %v3242 = vunpack.c.l.b16 %v2689
        %v3243 = vunpack.c.h.b16 %v2689
        %v3244 = vunpack.c.l.b16 %v2690
        %v3245 = vunpack.c.h.b16 %v2690
        %v3246 = vunpack.c.l.b16 %v2691
        %v3247 = vunpack.c.h.b16 %v2691
        %v3248 = vunpack.c.l.b16 %v2692
        %v3249 = vunpack.c.h.b16 %v2692
        %v3250 = vunpack.c.l.b16 %v2693
        %v3251 = vunpack.c.h.b16 %v2693
        %v3252 = vunpack.c.l.b16 %v2694
        %v3253 = vunpack.c.h.b16 %v2694
        %v3254 = vunpack.c.l.b16 %v2695
        %v3255 = vunpack.c.h.b16 %v2695
        %v3256 = vunpack.c.l.b16 %v2696
        %v3257 = vunpack.c.h.b16 %v2696
        %v3258 = vunpack.c.l.b16 %v2697
        %v3259 = vunpack.c.h.b16 %v2697
        %v3260 = vunpack.c.l.b16 %v2698
        %v3261 = vunpack.c.h.b16 %v2698
        %v3262 = vunpack.c.l.b16 %v2699
        %v3263 = vunpack.c.h.b16 %v2699
        %v3264 = vunpack.c.l.b16 %v2700
        %v3265 = vunpack.c.h.b16 %v2700
        %v3266 = vunpack.c.l.b16 %v2701
        %v3267 = vunpack.c.h.b16 %v2701
        %v3268 = vunpack.c.l.b16 %v2702
        %v3269 = vunpack.c.h.b16 %v2702
        %v3270 = vunpack.c.l.b16 %v2703
        %v3271 = vunpack.c.h.b16 %v2703
        %v3272 = vunpack.c.l.b16 %v2704
        %v3273 = vunpack.c.h.b16 %v2704
        %v3274 = vunpack.c.l.b16 %v2705
        %v3275 = vunpack.c.h.b16 %v2705
        %v3276 = vunpack.c.l.b16 %v2706
        %v3277 = vunpack.c.h.b16 %v2706
        %v3278 = vunpack.c.l.b16 %v2707
        %v3279 = vunpack.c.h.b16 %v2707
        %v3280 = vunpack.c.l.b16 %v2708
        %v3281 = vunpack.c.h.b16 %v2708
        %v3282 = vunpack.c.l.b16 %v2709
        %v3283 = vunpack.c.h.b16 %v2709
        %v3284 = vunpack.c.l.b16 %v2710
        %v3285 = vunpack.c.h.b16 %v2710
        %v3286 = vunpack.c.l.b16 %v2711
        %v3287 = vunpack.c.h.b16 %v2711
        %v3288 = vunpack.c.l.b16 %v2712
        %v3289 = vunpack.c.h.b16 %v2712
        %v3290 = vunpack.c.l.b16 %v2713
        %v3291 = vunpack.c.h.b16 %v2713
        %v3292 = vunpack.c.l.b16 %v2714
        %v3293 = vunpack.c.h.b16 %v2714
        %v3294 = vunpack.c.l.b16 %v2715
        %v3295 = vunpack.c.h.b16 %v2715
        %v3296 = vunpack.c.l.b16 %v2716
        %v3297 = vunpack.c.h.b16 %v2716
        %v3298 = vunpack.c.l.b16 %v2717
        %v3299 = vunpack.c.h.b16 %v2717
        %v3300 = vunpack.c.l.b16 %v2718
        %v3301 = vunpack.c.h.b16 %v2718
        %v3302 = vunpack.c.l.b16 %v2719
        %v3303 = vunpack.c.h.b16 %v2719
        %v3304 = vunpack.c.l.b16 %v2720
        %v3305 = vunpack.c.h.b16 %v2720
        %v3306 = vunpack.c.l.b16 %v2721
        %v3307 = vunpack.c.h.b16 %v2721
        %v3308 = vunpack.c.l.b16 %v2722
        %v3309 = vunpack.c.h.b16 %v2722
        %v3310 = vunpack.c.l.b16 %v2723
        %v3311 = vunpack.c.h.b16 %v2723
        %v3312 = vunpack.c.l.b16 %v2724
        %v3313 = vunpack.c.h.b16 %v2724
        %v3314 = vunpack.c.l.b16 %v2725
        %v3315 = vunpack.c.h.b16 %v2725
        %v3316 = vunpack.c.l.b16 %v2726
        %v3317 = vunpack.c.h.b16 %v2726
        %v3318 = vunpack.c.l.b16 %v2727
        %v3319 = vunpack.c.h.b16 %v2727
        %v3320 = vunpack.c.l.b16 %v2728
        %v3321 = vunpack.c.h.b16 %v2728
        %v3322 = vunpack.c.l.b16 %v2729
        %v3323 = vunpack.c.h.b16 %v2729
        %v3324 = vunpack.c.l.b16 %v2730
        %v3325 = vunpack.c.h.b16 %v2730
        %v3326 = vunpack.c.l.b16 %v2731
        %v3327 = vunpack.c.h.b16 %v2731
        %v3328 = vunpack.c.l.b16 %v2732
        %v3329 = vunpack.c.h.b16 %v2732
        %v3330 = vunpack.c.l.b16 %v2733
        %v3331 = vunpack.c.h.b16 %v2733
        %v3332 = vunpack.c.l.b16 %v2734
        %v3333 = vunpack.c.h.b16 %v2734
        %v3334 = vunpack.c.l.b16 %v2735
        %v3335 = vunpack.c.h.b16 %v2735
        %v3336 = vunpack.c.l.b16 %v2736
        %v3337 = vunpack.c.h.b16 %v2736
        %v3338 = vunpack.c.l.b16 %v2737
        %v3339 = vunpack.c.h.b16 %v2737
        %v3340 = vunpack.c.l.b16 %v2738
        %v3341 = vunpack.c.h.b16 %v2738
        %v3342 = vunpack.c.l.b16 %v2739
        %v3343 = vunpack.c.h.b16 %v2739
        %v3344 = vunpack.c.l.b16 %v2740
        %v3345 = vunpack.c.h.b16 %v2740
        %v3346 = vunpack.c.l.b16 %v2741
        %v3347 = vunpack.c.h.b16 %v2741
        %v3348 = vunpack.c.l.b16 %v2742
        %v3349 = vunpack.c.h.b16 %v2742
        %v3350 = vunpack.c.l.b16 %v2743
        %v3351 = vunpack.c.h.b16 %v2743
        %v3352 = vunpack.c.l.b16 %v2744
        %v3353 = vunpack.c.h.b16 %v2744
        %v3354 = vunpack.c.l.b16 %v2745
        %v3355 = vunpack.c.h.b16 %v2745
        %v3356 = vunpack.c.l.b16 %v2746
        %v3357 = vunpack.c.h.b16 %v2746
        %v3358 = vunpack.c.l.b16 %v2747
        %v3359 = vunpack.c.h.b16 %v2747
        %v3360 = vunpack.c.l.b16 %v2748
        %v3361 = vunpack.c.h.b16 %v2748
        %v3362 = vunpack.c.l.b16 %v2749
        %v3363 = vunpack.c.h.b16 %v2749
        %v3364 = vunpack.c.l.b16 %v2750
        %v3365 = vunpack.c.h.b16 %v2750
        %v3366 = vunpack.c.l.b16 %v2751
        %v3367 = vunpack.c.h.b16 %v2751
        %v3368 = vunpack.c.l.b16 %v2752
        %v3369 = vunpack.c.h.b16 %v2752
        %v3370 = vunpack.c.l.b16 %v2753
        %v3371 = vunpack.c.h.b16 %v2753
        %v3372 = vunpack.c.l.b16 %v2754
        %v3373 = vunpack.c.h.b16 %v2754
        %v3374 = vunpack.c.l.b16 %v2755
        %v3375 = vunpack.c.h.b16 %v2755
        %v3376 = vunpack.c.l.b16 %v2756
        %v3377 = vunpack.c.h.b16 %v2756
        %v3378 = vunpack.c.l.b16 %v2757
        %v3379 = vunpack.c.h.b16 %v2757
        %v3380 = vunpack.c.l.b16 %v2758
        %v3381 = vunpack.c.h.b16 %v2758
        %v3382 = vunpack.c.l.b16 %v2759
        %v3383 = vunpack.c.h.b16 %v2759
        %v3384 = vunpack.c.l.b16 %v2760
        %v3385 = vunpack.c.h.b16 %v2760
        %v3386 = vunpack.c.l.b16 %v2761
        %v3387 = vunpack.c.h.b16 %v2761
        %v3388 = vunpack.c.l.b16 %v2762
        %v3389 = vunpack.c.h.b16 %v2762
        %v3390 = vunpack.c.l.b16 %v2763
        %v3391 = vunpack.c.h.b16 %v2763
        %v3392 = vunpack.c.l.b16 %v2764
        %v3393 = vunpack.c.h.b16 %v2764
        %v3394 = vunpack.c.l.b16 %v2765
        %v3395 = vunpack.c.h.b16 %v2765
        %v3396 = vunpack.c.l.b16 %v2766
        %v3397 = vunpack.c.h.b16 %v2766
        %v3398 = vunpack.c.l.b16 %v2767
        %v3399 = vunpack.c.h.b16 %v2767
        %v3400 = vunpack.c.l.b16 %v2768
        %v3401 = vunpack.c.h.b16 %v2768
        %v3402 = vunpack.c.l.b16 %v2769
        %v3403 = vunpack.c.h.b16 %v2769
        %v3404 = vunpack.c.l.b16 %v2770
        %v3405 = vunpack.c.h.b16 %v2770
        %v3406 = vunpack.c.l.b16 %v2771
        %v3407 = vunpack.c.h.b16 %v2771
        %v3408 = vunpack.c.l.b16 %v2772
        %v3409 = vunpack.c.h.b16 %v2772
        %v3410 = vunpack.c.l.b16 %v2773
        %v3411 = vunpack.c.h.b16 %v2773
        %v3412 = vunpack.c.l.b16 %v2774
        %v3413 = vunpack.c.h.b16 %v2774
        %v3414 = vunpack.c.l.b16 %v2775
        %v3415 = vunpack.c.h.b16 %v2775
        %v3416 = vunpack.c.l.b16 %v2776
        %v3417 = vunpack.c.h.b16 %v2776
        %v3418 = vunpack.c.l.b16 %v2777
        %v3419 = vunpack.c.h.b16 %v2777
        %v3420 = vunpack.c.l.b16 %v2778
        %v3421 = vunpack.c.h.b16 %v2778
        %v3422 = vunpack.c.l.b16 %v2779
        %v3423 = vunpack.c.h.b16 %v2779
        %v3424 = vunpack.c.l.b16 %v2780
        %v3425 = vunpack.c.h.b16 %v2780
        %v3426 = vunpack.c.l.b16 %v2781
        %v3427 = vunpack.c.h.b16 %v2781
        %v3428 = vunpack.c.l.b16 %v2782
        %v3429 = vunpack.c.h.b16 %v2782
        %v3430 = vunpack.c.l.b16 %v2783
        %v3431 = vunpack.c.h.b16 %v2783
        %v3432 = vunpack.c.l.b16 %v2784
        %v3433 = vunpack.c.h.b16 %v2784
        %v3434 = vunpack.c.l.b16 %v2785
        %v3435 = vunpack.c.h.b16 %v2785
        %v3436 = vunpack.c.l.b16 %v2786
        %v3437 = vunpack.c.h.b16 %v2786
        %v3438 = vunpack.c.l.b16 %v2787
        %v3439 = vunpack.c.h.b16 %v2787
        %v3440 = vunpack.c.l.b16 %v2788
        %v3441 = vunpack.c.h.b16 %v2788
        %v3442 = vunpack.c.l.b16 %v2789
        %v3443 = vunpack.c.h.b16 %v2789
        %v3444 = vunpack.c.l.b16 %v2790
        %v3445 = vunpack.c.h.b16 %v2790
        %v3446 = vunpack.c.l.b16 %v2791
        %v3447 = vunpack.c.h.b16 %v2791
        %v3448 = vunpack.c.l.b16 %v2792
        %v3449 = vunpack.c.h.b16 %v2792
        %v3450 = vunpack.c.l.b16 %v2793
        %v3451 = vunpack.c.h.b16 %v2793
        %v3452 = vunpack.c.l.b16 %v2794
        %v3453 = vunpack.c.h.b16 %v2794
        %v3454 = vunpack.c.l.b16 %v2795
        %v3455 = vunpack.c.h.b16 %v2795
        %v3456 = vunpack.c.l.b16 %v2796
        %v3457 = vunpack.c.h.b16 %v2796
        %v3458 = vunpack.c.l.b16 %v2797
        %v3459 = vunpack.c.h.b16 %v2797
        %v3460 = vunpack.c.l.b16 %v2798
        %v3461 = vunpack.c.h.b16 %v2798
        %v3462 = vunpack.c.l.b16 %v2799
        %v3463 = vunpack.c.h.b16 %v2799
        %v3464 = vunpack.c.l.b16 %v2800
        %v3465 = vunpack.c.h.b16 %v2800
        %v3466 = vunpack.c.l.b16 %v2801
        %v3467 = vunpack.c.h.b16 %v2801
        %v3468 = vunpack.c.l.b16 %v2802
        %v3469 = vunpack.c.h.b16 %v2802
        %v3470 = vunpack.c.l.b16 %v2803
        %v3471 = vunpack.c.h.b16 %v2803
        %v3472 = vunpack.c.l.b16 %v2804
        %v3473 = vunpack.c.h.b16 %v2804
        %v3474 = vunpack.c.l.b16 %v2805
        %v3475 = vunpack.c.h.b16 %v2805
        %v3476 = vunpack.c.l.b16 %v2806
        %v3477 = vunpack.c.h.b16 %v2806
        %v3478 = vunpack.c.l.b16 %v2807
        %v3479 = vunpack.c.h.b16 %v2807
        %v3480 = vunpack.c.l.b16 %v2808
        %v3481 = vunpack.c.h.b16 %v2808
        %v3482 = vunpack.c.l.b16 %v2809
        %v3483 = vunpack.c.h.b16 %v2809
        %v3484 = vunpack.c.l.b16 %v2810
        %v3485 = vunpack.c.h.b16 %v2810
        %v3486 = vunpack.c.l.b16 %v2811
        %v3487 = vunpack.c.h.b16 %v2811
        %v3488 = vunpack.c.l.b16 %v2812
        %v3489 = vunpack.c.h.b16 %v2812
        %v3490 = vunpack.c.l.b16 %v2813
        %v3491 = vunpack.c.h.b16 %v2813
        %v3492 = vunpack.c.l.b16 %v2814
        %v3493 = vunpack.c.h.b16 %v2814
        %v3494 = vunpack.c.l.b16 %v2815
        %v3495 = vunpack.c.h.b16 %v2815
        %v3496 = vunpack.c.l.b16 %v2816
        %v3497 = vunpack.c.h.b16 %v2816
        %v3498 = vunpack.c.l.b16 %v2817
        %v3499 = vunpack.c.h.b16 %v2817
        %v3500 = vunpack.c.l.b16 %v2818
        %v3501 = vunpack.c.h.b16 %v2818
        %v3502 = vunpack.c.l.b16 %v2819
        %v3503 = vunpack.c.h.b16 %v2819
        %v3504 = vunpack.c.l.b16 %v2820
        %v3505 = vunpack.c.h.b16 %v2820
        %v3506 = vunpack.c.l.b16 %v2821
        %v3507 = vunpack.c.h.b16 %v2821
        %v3508 = vunpack.c.l.b16 %v2822
        %v3509 = vunpack.c.h.b16 %v2822
        %v3510 = vunpack.c.l.b16 %v2823
        %v3511 = vunpack.c.h.b16 %v2823
        %v3512 = vunpack.c.l.b16 %v2824
        %v3513 = vunpack.c.h.b16 %v2824
        %v3514 = vunpack.c.l.b16 %v2825
        %v3515 = vunpack.c.h.b16 %v2825
        %v3516 = vunpack.c.l.b16 %v2826
        %v3517 = vunpack.c.h.b16 %v2826
        %v3518 = vunpack.c.l.b16 %v2827
        %v3519 = vunpack.c.h.b16 %v2827
        %v3520 = vunpack.c.l.b16 %v2828
        %v3521 = vunpack.c.h.b16 %v2828
        %v3522 = vunpack.c.l.b16 %v2829
        %v3523 = vunpack.c.h.b16 %v2829
        %v3524 = vunpack.c.l.b16 %v2830
        %v3525 = vunpack.c.h.b16 %v2830
        %v3526 = vunpack.c.l.b16 %v2831
        %v3527 = vunpack.c.h.b16 %v2831
        %v3528 = vunpack.c.l.b16 %v2832
        %v3529 = vunpack.c.h.b16 %v2832
        %v3530 = vunpack.c.l.b16 %v2833
        %v3531 = vunpack.c.h.b16 %v2833
        %v3532 = vunpack.c.l.b16 %v2834
        %v3533 = vunpack.c.h.b16 %v2834
        %v3534 = vunpack.c.l.b16 %v2835
        %v3535 = vunpack.c.h.b16 %v2835
        %v3536 = vunpack.c.l.b16 %v2836
        %v3537 = vunpack.c.h.b16 %v2836
        %v3538 = vunpack.c.l.b16 %v2837
        %v3539 = vunpack.c.h.b16 %v2837
        %v3540 = vunpack.c.l.b16 %v2838
        %v3541 = vunpack.c.h.b16 %v2838
        %v3542 = vunpack.c.l.b16 %v2839
        %v3543 = vunpack.c.h.b16 %v2839
        %v3544 = vunpack.c.l.b16 %v2840
        %v3545 = vunpack.c.h.b16 %v2840
        %v3546 = vunpack.c.l.b16 %v2841
        %v3547 = vunpack.c.h.b16 %v2841
        %v3548 = vunpack.c.l.b16 %v2842
        %v3549 = vunpack.c.h.b16 %v2842
        %v3550 = vunpack.c.l.b16 %v2843
        %v3551 = vunpack.c.h.b16 %v2843
        %v3552 = vunpack.c.l.b16 %v2844
        %v3553 = vunpack.c.h.b16 %v2844
        %v3554 = vunpack.c.l.b16 %v2845
        %v3555 = vunpack.c.h.b16 %v2845
        %v3556 = vunpack.c.l.b16 %v2846
        %v3557 = vunpack.c.h.b16 %v2846
        %v3558 = vunpack.c.l.b16 %v2847
        %v3559 = vunpack.c.h.b16 %v2847
        %v3560 = vunpack.c.l.b16 %v2848
        %v3561 = vunpack.c.h.b16 %v2848
        %v3562 = vunpack.c.l.b16 %v2849
        %v3563 = vunpack.c.h.b16 %v2849
        %v3564 = vunpack.c.l.b16 %v2850
        %v3565 = vunpack.c.h.b16 %v2850
        %v3566 = vunpack.c.l.b16 %v2851
        %v3567 = vunpack.c.h.b16 %v2851
        %v3568 = vunpack.c.l.b16 %v2852
        %v3569 = vunpack.c.h.b16 %v2852
        %v3570 = vunpack.c.l.b16 %v2853
        %v3571 = vunpack.c.h.b16 %v2853
        %v3572 = vunpack.c.l.b16 %v2854
        %v3573 = vunpack.c.h.b16 %v2854
        %v3574 = vunpack.c.l.b16 %v2855
        %v3575 = vunpack.c.h.b16 %v2855
        %v3576 = vunpack.c.l.b16 %v2856
        %v3577 = vunpack.c.h.b16 %v2856
        %v3578 = vunpack.c.l.b16 %v2857
        %v3579 = vunpack.c.h.b16 %v2857
        %v3580 = vunpack.c.l.b16 %v2858
        %v3581 = vunpack.c.h.b16 %v2858
        %v3582 = vunpack.c.l.b16 %v2859
        %v3583 = vunpack.c.h.b16 %v2859
        %v3584 = vunpack.c.l.b16 %v2860
        %v3585 = vunpack.c.h.b16 %v2860
        %v3586 = vunpack.c.l.b16 %v2861
        %v3587 = vunpack.c.h.b16 %v2861
        %v3588 = vunpack.c.l.b16 %v2862
        %v3589 = vunpack.c.h.b16 %v2862
        %v3590 = vunpack.c.l.b16 %v2863
        %v3591 = vunpack.c.h.b16 %v2863
        %v3592 = vunpack.c.l.b16 %v2864
        %v3593 = vunpack.c.h.b16 %v2864
        %v3594 = vunpack.c.l.b16 %v2865
        %v3595 = vunpack.c.h.b16 %v2865
        %v3596 = vunpack.c.l.b16 %v2866
        %v3597 = vunpack.c.h.b16 %v2866
        %v3598 = vunpack.c.l.b16 %v2867
        %v3599 = vunpack.c.h.b16 %v2867
        %v3600 = vunpack.c.l.b16 %v2868
        %v3601 = vunpack.c.h.b16 %v2868
        %v3602 = vunpack.c.l.b16 %v2869
        %v3603 = vunpack.c.h.b16 %v2869
        %v3604 = vunpack.c.l.b16 %v2870
        %v3605 = vunpack.c.h.b16 %v2870
        %v3606 = vunpack.c.l.b16 %v2871
        %v3607 = vunpack.c.h.b16 %v2871
        %v3608 = vunpack.c.l.b16 %v2872
        %v3609 = vunpack.c.h.b16 %v2872
        %v3610 = vunpack.c.l.b16 %v2873
        %v3611 = vunpack.c.h.b16 %v2873
        %v3612 = vunpack.c.l.b16 %v2874
        %v3613 = vunpack.c.h.b16 %v2874
        %v3614 = vunpack.c.l.b16 %v2875
        %v3615 = vunpack.c.h.b16 %v2875
        %v3616 = vunpack.c.l.b16 %v2876
        %v3617 = vunpack.c.h.b16 %v2876
        %v3618 = vunpack.c.l.b16 %v2877
        %v3619 = vunpack.c.h.b16 %v2877
        %v3620 = vunpack.c.l.b16 %v2878
        %v3621 = vunpack.c.h.b16 %v2878
        %v3622 = vunpack.c.l.b16 %v2879
        %v3623 = vunpack.c.h.b16 %v2879
        %v3624 = vunpack.c.l.b16 %v2880
        %v3625 = vunpack.c.h.b16 %v2880
        %v3626 = vunpack.c.l.b16 %v2881
        %v3627 = vunpack.c.h.b16 %v2881
        %v3628 = vunpack.c.l.b16 %v2882
        %v3629 = vunpack.c.h.b16 %v2882
        %v3630 = vunpack.c.l.b16 %v2883
        %v3631 = vunpack.c.h.b16 %v2883
        %v3632 = vunpack.c.l.b16 %v2884
        %v3633 = vunpack.c.h.b16 %v2884
        %v3634 = vunpack.c.l.b16 %v2885
        %v3635 = vunpack.c.h.b16 %v2885
        %v3636 = vunpack.c.l.b16 %v2886
        %v3637 = vunpack.c.h.b16 %v2886
        %v3638 = vunpack.c.l.b16 %v2887
        %v3639 = vunpack.c.h.b16 %v2887
        %v3640 = vunpack.c.l.b16 %v2888
        %v3641 = vunpack.c.h.b16 %v2888
        %v3642 = vunpack.c.l.b16 %v2889
        %v3643 = vunpack.c.h.b16 %v2889
        %v3644 = vunpack.c.l.b16 %v2890
        %v3645 = vunpack.c.h.b16 %v2890
        %v3646 = vunpack.c.l.b16 %v2891
        %v3647 = vunpack.c.h.b16 %v2891
        %v3648 = vunpack.c.l.b16 %v2892
        %v3649 = vunpack.c.h.b16 %v2892
        %v3650 = vunpack.c.l.b16 %v2893
        %v3651 = vunpack.c.h.b16 %v2893
        %v3652 = vunpack.c.l.b16 %v2894
        %v3653 = vunpack.c.h.b16 %v2894
        %v3654 = vunpack.c.l.b16 %v2895
        %v3655 = vunpack.c.h.b16 %v2895
        %v3656 = vunpack.c.l.b16 %v2896
        %v3657 = vunpack.c.h.b16 %v2896
        %v3658 = vunpack.c.l.b16 %v2897
        %v3659 = vunpack.c.h.b16 %v2897
        %v3660 = vunpack.c.l.b16 %v2898
        %v3661 = vunpack.c.h.b16 %v2898
        %v3662 = vunpack.c.l.b16 %v2899
        %v3663 = vunpack.c.h.b16 %v2899
        %v3664 = vunpack.c.l.b16 %v2900
        %v3665 = vunpack.c.h.b16 %v2900
        %v3666 = vunpack.c.l.b16 %v2901
        %v3667 = vunpack.c.h.b16 %v2901
        %v3668 = vunpack.c.l.b16 %v2902
        %v3669 = vunpack.c.h.b16 %v2902
        %v3670 = vunpack.c.l.b16 %v2903
        %v3671 = vunpack.c.h.b16 %v2903
        %v3672 = vunpack.c.l.b16 %v2904
        %v3673 = vunpack.c.h.b16 %v2904
        %v3674 = vunpack.c.l.b16 %v2905
        %v3675 = vunpack.c.h.b16 %v2905
        %v3676 = vpack.c.b16 %v3168, %v3164
        %v3677 = vpack.c.b16 %v3169, %v3165
        %v3678 = vpack.c.b16 %v3170, %v3166
        %v3679 = vpack.c.b16 %v3171, %v3167
        %v3680 = vpack.c.b16 %v3176, %v3172
        %v3681 = vpack.c.b16 %v3177, %v3173
        %v3682 = vpack.c.b16 %v3178, %v3174
        %v3683 = vpack.c.b16 %v3179, %v3175
        %v3684 = vpack.c.b16 %v3184, %v3180
        %v3685 = vpack.c.b16 %v3185, %v3181
        %v3686 = vpack.c.b16 %v3186, %v3182
        %v3687 = vpack.c.b16 %v3187, %v3183
        %v3688 = vpack.c.b16 %v3192, %v3188
        %v3689 = vpack.c.b16 %v3193, %v3189
        %v3690 = vpack.c.b16 %v3194, %v3190
        %v3691 = vpack.c.b16 %v3195, %v3191
        %v3692 = vpack.c.b16 %v3200, %v3196
        %v3693 = vpack.c.b16 %v3201, %v3197
        %v3694 = vpack.c.b16 %v3202, %v3198
        %v3695 = vpack.c.b16 %v3203, %v3199
        %v3696 = vpack.c.b16 %v3208, %v3204
        %v3697 = vpack.c.b16 %v3209, %v3205
        %v3698 = vpack.c.b16 %v3210, %v3206
        %v3699 = vpack.c.b16 %v3211, %v3207
        %v3700 = vpack.c.b16 %v3216, %v3212
        %v3701 = vpack.c.b16 %v3217, %v3213
        %v3702 = vpack.c.b16 %v3218, %v3214
        %v3703 = vpack.c.b16 %v3219, %v3215
        %v3704 = vpack.c.b16 %v3224, %v3220
        %v3705 = vpack.c.b16 %v3225, %v3221
        %v3706 = vpack.c.b16 %v3226, %v3222
        %v3707 = vpack.c.b16 %v3227, %v3223
        %v3708 = vpack.c.b16 %v3232, %v3228
        %v3709 = vpack.c.b16 %v3233, %v3229
        %v3710 = vpack.c.b16 %v3234, %v3230
        %v3711 = vpack.c.b16 %v3235, %v3231
        %v3712 = vpack.c.b16 %v3240, %v3236
        %v3713 = vpack.c.b16 %v3241, %v3237
        %v3714 = vpack.c.b16 %v3242, %v3238
        %v3715 = vpack.c.b16 %v3243, %v3239
        %v3716 = vpack.c.b16 %v3248, %v3244
        %v3717 = vpack.c.b16 %v3249, %v3245
        %v3718 = vpack.c.b16 %v3250, %v3246
        %v3719 = vpack.c.b16 %v3251, %v3247
        %v3720 = vpack.c.b16 %v3256, %v3252
        %v3721 = vpack.c.b16 %v3257, %v3253
        %v3722 = vpack.c.b16 %v3258, %v3254
        %v3723 = vpack.c.b16 %v3259, %v3255
        %v3724 = vpack.c.b16 %v3264, %v3260
        %v3725 = vpack.c.b16 %v3265, %v3261
        %v3726 = vpack.c.b16 %v3266, %v3262
        %v3727 = vpack.c.b16 %v3267, %v3263
        %v3728 = vpack.c.b16 %v3272, %v3268
        %v3729 = vpack.c.b16 %v3273, %v3269
        %v3730 = vpack.c.b16 %v3274, %v3270
        %v3731 = vpack.c.b16 %v3275, %v3271
        %v3732 = vpack.c.b16 %v3280, %v3276
        %v3733 = vpack.c.b16 %v3281, %v3277
        %v3734 = vpack.c.b16 %v3282, %v3278
        %v3735 = vpack.c.b16 %v3283, %v3279
        %v3736 = vpack.c.b16 %v3288, %v3284
        %v3737 = vpack.c.b16 %v3289, %v3285
        %v3738 = vpack.c.b16 %v3290, %v3286
        %v3739 = vpack.c.b16 %v3291, %v3287
        %v3740 = vpack.c.b16 %v3296, %v3292
        %v3741 = vpack.c.b16 %v3297, %v3293
        %v3742 = vpack.c.b16 %v3298, %v3294
        %v3743 = vpack.c.b16 %v3299, %v3295
        %v3744 = vpack.c.b16 %v3304, %v3300
        %v3745 = vpack.c.b16 %v3305, %v3301
        %v3746 = vpack.c.b16 %v3306, %v3302
        %v3747 = vpack.c.b16 %v3307, %v3303
        %v3748 = vpack.c.b16 %v3312, %v3308
        %v3749 = vpack.c.b16 %v3313, %v3309
        %v3750 = vpack.c.b16 %v3314, %v3310
        %v3751 = vpack.c.b16 %v3315, %v3311
        %v3752 = vpack.c.b16 %v3320, %v3316
        %v3753 = vpack.c.b16 %v3321, %v3317
        %v3754 = vpack.c.b16 %v3322, %v3318
        %v3755 = vpack.c.b16 %v3323, %v3319
        %v3756 = vpack.c.b16 %v3328, %v3324
        %v3757 = vpack.c.b16 %v3329, %v3325
        %v3758 = vpack.c.b16 %v3330, %v3326
        %v3759 = vpack.c.b16 %v3331, %v3327
        %v3760 = vpack.c.b16 %v3336, %v3332
        %v3761 = vpack.c.b16 %v3337, %v3333
        %v3762 = vpack.c.b16 %v3338, %v3334
        %v3763 = vpack.c.b16 %v3339, %v3335
        %v3764 = vpack.c.b16 %v3344, %v3340
        %v3765 = vpack.c.b16 %v3345, %v3341
        %v3766 = vpack.c.b16 %v3346, %v3342
        %v3767 = vpack.c.b16 %v3347, %v3343
        %v3768 = vpack.c.b16 %v3352, %v3348
        %v3769 = vpack.c.b16 %v3353, %v3349
        %v3770 = vpack.c.b16 %v3354, %v3350
        %v3771 = vpack.c.b16 %v3355, %v3351
        %v3772 = vpack.c.b16 %v3360, %v3356
        %v3773 = vpack.c.b16 %v3361, %v3357
        %v3774 = vpack.c.b16 %v3362, %v3358
        %v3775 = vpack.c.b16 %v3363, %v3359
        %v3776 = vpack.c.b16 %v3368, %v3364
        %v3777 = vpack.c.b16 %v3369, %v3365
        %v3778 = vpack.c.b16 %v3370, %v3366
        %v3779 = vpack.c.b16 %v3371, %v3367
        %v3780 = vpack.c.b16 %v3376, %v3372
        %v3781 = vpack.c.b16 %v3377, %v3373
        %v3782 = vpack.c.b16 %v3378, %v3374
        %v3783 = vpack.c.b16 %v3379, %v3375
        %v3784 = vpack.c.b16 %v3384, %v3380
        %v3785 = vpack.c.b16 %v3385, %v3381
        %v3786 = vpack.c.b16 %v3386, %v3382
        %v3787 = vpack.c.b16 %v3387, %v3383
        %v3788 = vpack.c.b16 %v3392, %v3388
        %v3789 = vpack.c.b16 %v3393, %v3389
        %v3790 = vpack.c.b16 %v3394, %v3390
        %v3791 = vpack.c.b16 %v3395, %v3391
        %v3792 = vpack.c.b16 %v3400, %v3396
        %v3793 = vpack.c.b16 %v3401, %v3397
        %v3794 = vpack.c.b16 %v3402, %v3398
        %v3795 = vpack.c.b16 %v3403, %v3399
        %v3796 = vpack.c.b16 %v3408, %v3404
        %v3797 = vpack.c.b16 %v3409, %v3405
        %v3798 = vpack.c.b16 %v3410, %v3406
        %v3799 = vpack.c.b16 %v3411, %v3407
        %v3800 = vpack.c.b16 %v3416, %v3412
        %v3801 = vpack.c.b16 %v3417, %v3413
        %v3802 = vpack.c.b16 %v3418, %v3414
        %v3803 = vpack.c.b16 %v3419, %v3415
        %v3804 = vpack.c.b16 %v3424, %v3420
        %v3805 = vpack.c.b16 %v3425, %v3421
        %v3806 = vpack.c.b16 %v3426, %v3422
        %v3807 = vpack.c.b16 %v3427, %v3423
        %v3808 = vpack.c.b16 %v3432, %v3428
        %v3809 = vpack.c.b16 %v3433, %v3429
        %v3810 = vpack.c.b16 %v3434, %v3430
        %v3811 = vpack.c.b16 %v3435, %v3431
        %v3812 = vpack.c.b16 %v3440, %v3436
        %v3813 = vpack.c.b16 %v3441, %v3437
        %v3814 = vpack.c.b16 %v3442, %v3438
        %v3815 = vpack.c.b16 %v3443, %v3439
        %v3816 = vpack.c.b16 %v3448, %v3444
        %v3817 = vpack.c.b16 %v3449, %v3445
        %v3818 = vpack.c.b16 %v3450, %v3446
        %v3819 = vpack.c.b16 %v3451, %v3447
        %v3820 = vpack.c.b16 %v3456, %v3452
        %v3821 = vpack.c.b16 %v3457, %v3453
        %v3822 = vpack.c.b16 %v3458, %v3454
        %v3823 = vpack.c.b16 %v3459, %v3455
        %v3824 = vpack.c.b16 %v3464, %v3460
        %v3825 = vpack.c.b16 %v3465, %v3461
        %v3826 = vpack.c.b16 %v3466, %v3462
        %v3827 = vpack.c.b16 %v3467, %v3463
        %v3828 = vpack.c.b16 %v3472, %v3468
        %v3829 = vpack.c.b16 %v3473, %v3469
        %v3830 = vpack.c.b16 %v3474, %v3470
        %v3831 = vpack.c.b16 %v3475, %v3471
        %v3832 = vpack.c.b16 %v3480, %v3476
        %v3833 = vpack.c.b16 %v3481, %v3477
        %v3834 = vpack.c.b16 %v3482, %v3478
        %v3835 = vpack.c.b16 %v3483, %v3479
        %v3836 = vpack.c.b16 %v3488, %v3484
        %v3837 = vpack.c.b16 %v3489, %v3485
        %v3838 = vpack.c.b16 %v3490, %v3486
        %v3839 = vpack.c.b16 %v3491, %v3487
        %v3840 = vpack.c.b16 %v3496, %v3492
        %v3841 = vpack.c.b16 %v3497, %v3493
        %v3842 = vpack.c.b16 %v3498, %v3494
        %v3843 = vpack.c.b16 %v3499, %v3495
        %v3844 = vpack.c.b16 %v3504, %v3500
        %v3845 = vpack.c.b16 %v3505, %v3501
        %v3846 = vpack.c.b16 %v3506, %v3502
        %v3847 = vpack.c.b16 %v3507, %v3503
        %v3848 = vpack.c.b16 %v3512, %v3508
        %v3849 = vpack.c.b16 %v3513, %v3509
        %v3850 = vpack.c.b16 %v3514, %v3510
        %v3851 = vpack.c.b16 %v3515, %v3511
        %v3852 = vpack.c.b16 %v3520, %v3516
        %v3853 = vpack.c.b16 %v3521, %v3517
        %v3854 = vpack.c.b16 %v3522, %v3518
        %v3855 = vpack.c.b16 %v3523, %v3519
        %v3856 = vpack.c.b16 %v3528, %v3524
        %v3857 = vpack.c.b16 %v3529, %v3525
        %v3858 = vpack.c.b16 %v3530, %v3526
        %v3859 = vpack.c.b16 %v3531, %v3527
        %v3860 = vpack.c.b16 %v3536, %v3532
        %v3861 = vpack.c.b16 %v3537, %v3533
        %v3862 = vpack.c.b16 %v3538, %v3534
        %v3863 = vpack.c.b16 %v3539, %v3535
        %v3864 = vpack.c.b16 %v3544, %v3540
        %v3865 = vpack.c.b16 %v3545, %v3541
        %v3866 = vpack.c.b16 %v3546, %v3542
        %v3867 = vpack.c.b16 %v3547, %v3543
        %v3868 = vpack.c.b16 %v3552, %v3548
        %v3869 = vpack.c.b16 %v3553, %v3549
        %v3870 = vpack.c.b16 %v3554, %v3550
        %v3871 = vpack.c.b16 %v3555, %v3551
        %v3872 = vpack.c.b16 %v3560, %v3556
        %v3873 = vpack.c.b16 %v3561, %v3557
        %v3874 = vpack.c.b16 %v3562, %v3558
        %v3875 = vpack.c.b16 %v3563, %v3559
        %v3876 = vpack.c.b16 %v3568, %v3564
        %v3877 = vpack.c.b16 %v3569, %v3565
        %v3878 = vpack.c.b16 %v3570, %v3566
        %v3879 = vpack.c.b16 %v3571, %v3567
        %v3880 = vpack.c.b16 %v3576, %v3572
        %v3881 = vpack.c.b16 %v3577, %v3573
        %v3882 = vpack.c.b16 %v3578, %v3574
        %v3883 = vpack.c.b16 %v3579, %v3575
        %v3884 = vpack.c.b16 %v3584, %v3580
        %v3885 = vpack.c.b16 %v3585, %v3581
        %v3886 = vpack.c.b16 %v3586, %v3582
        %v3887 = vpack.c.b16 %v3587, %v3583
        %v3888 = vpack.c.b16 %v3592, %v3588
        %v3889 = vpack.c.b16 %v3593, %v3589
        %v3890 = vpack.c.b16 %v3594, %v3590
        %v3891 = vpack.c.b16 %v3595, %v3591
        %v3892 = vpack.c.b16 %v3600, %v3596
        %v3893 = vpack.c.b16 %v3601, %v3597
        %v3894 = vpack.c.b16 %v3602, %v3598
        %v3895 = vpack.c.b16 %v3603, %v3599
        %v3896 = vpack.c.b16 %v3608, %v3604
        %v3897 = vpack.c.b16 %v3609, %v3605
        %v3898 = vpack.c.b16 %v3610, %v3606
        %v3899 = vpack.c.b16 %v3611, %v3607
        %v3900 = vpack.c.b16 %v3616, %v3612
        %v3901 = vpack.c.b16 %v3617, %v3613
        %v3902 = vpack.c.b16 %v3618, %v3614
        %v3903 = vpack.c.b16 %v3619, %v3615
        %v3904 = vpack.c.b16 %v3624, %v3620
        %v3905 = vpack.c.b16 %v3625, %v3621
        %v3906 = vpack.c.b16 %v3626, %v3622
        %v3907 = vpack.c.b16 %v3627, %v3623
        %v3908 = vpack.c.b16 %v3632, %v3628
        %v3909 = vpack.c.b16 %v3633, %v3629
        %v3910 = vpack.c.b16 %v3634, %v3630
        %v3911 = vpack.c.b16 %v3635, %v3631
        %v3912 = vpack.c.b16 %v3640, %v3636
        %v3913 = vpack.c.b16 %v3641, %v3637
        %v3914 = vpack.c.b16 %v3642, %v3638
        %v3915 = vpack.c.b16 %v3643, %v3639
        %v3916 = vpack.c.b16 %v3648, %v3644
        %v3917 = vpack.c.b16 %v3649, %v3645
        %v3918 = vpack.c.b16 %v3650, %v3646
        %v3919 = vpack.c.b16 %v3651, %v3647
        %v3920 = vpack.c.b16 %v3656, %v3652
        %v3921 = vpack.c.b16 %v3657, %v3653
        %v3922 = vpack.c.b16 %v3658, %v3654
        %v3923 = vpack.c.b16 %v3659, %v3655
        %v3924 = vpack.c.b16 %v3664, %v3660
        %v3925 = vpack.c.b16 %v3665, %v3661
        %v3926 = vpack.c.b16 %v3666, %v3662
        %v3927 = vpack.c.b16 %v3667, %v3663
        %v3928 = vpack.c.b16 %v3672, %v3668
        %v3929 = vpack.c.b16 %v3673, %v3669
        %v3930 = vpack.c.b16 %v3674, %v3670
        %v3931 = vpack.c.b16 %v3675, %v3671
        %v4189 = vlaneseq
        %v4190 = vshrl.u32 %v4189, 7
        %v4191 = vsub.s32 0, %v4190
        %v4192 = vrot.slane %v2907, %v4191
        %v4193 = vlaneseq
        %v4194 = vshrl.u32 %v4193, 7
        %v4195 = vsub.s32 1, %v4194
        %v4196 = vrot.slane %v2907, %v4195
        %v4197 = vlaneseq
        %v4198 = vshrl.u32 %v4197, 7
        %v4199 = vsub.s32 2, %v4198
        %v4200 = vrot.slane %v2907, %v4199
        %v4201 = vlaneseq
        %v4202 = vshrl.u32 %v4201, 7
        %v4203 = vsub.s32 3, %v4202
        %v4204 = vrot.slane %v2907, %v4203
        %4209 = vmatprep.subr.bf16.mxu0 %v3677
        %4210 = vmatpush1.bf16.msra.mxu0 %v3676
        %4211 = vmatprep.subr.bf16.mxu0 %v3681
        %4212 = vmatpush1.bf16.msra.mxu0 %v3680
        %4213 = vmatprep.subr.bf16.mxu0 %v3685
        %4214 = vmatpush1.bf16.msra.mxu0 %v3684
        %4215 = vmatprep.subr.bf16.mxu0 %v3689
        %4216 = vmatpush1.bf16.msra.mxu0 %v3688
        %4217 = vmatprep.subr.bf16.mxu0 %v3693
        %4218 = vmatpush1.bf16.msra.mxu0 %v3692
        %4219 = vmatprep.subr.bf16.mxu0 %v3697
        %4220 = vmatpush1.bf16.msra.mxu0 %v3696
        %4221 = vmatprep.subr.bf16.mxu0 %v3701
        %4222 = vmatpush1.bf16.msra.mxu0 %v3700
        %4223 = vmatprep.subr.bf16.mxu0 %v3705
        %4224 = vmatpush1.bf16.msra.mxu0 %v3704
        %4225 = vmatprep.subr.bf16.mxu0 %v3709
        %4226 = vmatpush1.bf16.msra.mxu0 %v3708
        %4227 = vmatprep.subr.bf16.mxu0 %v3713
        %4228 = vmatpush1.bf16.msra.mxu0 %v3712
        %4229 = vmatprep.subr.bf16.mxu0 %v3717
        %4230 = vmatpush1.bf16.msra.mxu0 %v3716
        %4231 = vmatprep.subr.bf16.mxu0 %v3721
        %4232 = vmatpush1.bf16.msra.mxu0 %v3720
        %4233 = vmatprep.subr.bf16.mxu0 %v3725
        %4234 = vmatpush1.bf16.msra.mxu0 %v3724
        %4235 = vmatprep.subr.bf16.mxu0 %v3729
        %4236 = vmatpush1.bf16.msra.mxu0 %v3728
        %4237 = vmatprep.subr.bf16.mxu0 %v3733
        %4238 = vmatpush1.bf16.msra.mxu0 %v3732
        %4239 = vmatprep.subr.bf16.mxu0 %v3737
        %4240 = vmatpush1.bf16.msra.mxu0 %v3736
        %4241 = vmatprep.mubr.bf16.mxu0 %v2643
        %4242 = vmatmul.mubr.bf16.gmra.mrb[0].mxu0 %v2642
        %v4243 = vpop.f32.mrb[0].mxu0
        %v4244 = vadd.f32 %v4192, %v4243
        %v4245 = vpop.f32.mrb[0].mxu0
        %v4246 = vadd.f32 %v4196, %v4245
        %v4247 = vpop.f32.mrb[0].mxu0
        %v4248 = vpop.f32.mrb[0].mxu0
        %4249 = vdwg.mxu0
        %4250 = vmatprep.subr.bf16.mxu0 %v3741
        %4251 = vmatpush1.bf16.msra.mxu0 %v3740
        %4252 = vmatprep.subr.bf16.mxu0 %v3745
        %4253 = vmatpush1.bf16.msra.mxu0 %v3744
        %4254 = vmatprep.subr.bf16.mxu0 %v3749
        %4255 = vmatpush1.bf16.msra.mxu0 %v3748
        %4256 = vmatprep.subr.bf16.mxu0 %v3753
        %4257 = vmatpush1.bf16.msra.mxu0 %v3752
        %4258 = vmatprep.subr.bf16.mxu0 %v3757
        %4259 = vmatpush1.bf16.msra.mxu0 %v3756
        %4260 = vmatprep.subr.bf16.mxu0 %v3761
        %4261 = vmatpush1.bf16.msra.mxu0 %v3760
        %4262 = vmatprep.subr.bf16.mxu0 %v3765
        %4263 = vmatpush1.bf16.msra.mxu0 %v3764
        %4264 = vmatprep.subr.bf16.mxu0 %v3769
        %4265 = vmatpush1.bf16.msra.mxu0 %v3768
        %4266 = vmatprep.subr.bf16.mxu0 %v3773
        %4267 = vmatpush1.bf16.msra.mxu0 %v3772
        %4268 = vmatprep.subr.bf16.mxu0 %v3777
        %4269 = vmatpush1.bf16.msra.mxu0 %v3776
        %4270 = vmatprep.subr.bf16.mxu0 %v3781
        %4271 = vmatpush1.bf16.msra.mxu0 %v3780
        %4272 = vmatprep.subr.bf16.mxu0 %v3785
        %4273 = vmatpush1.bf16.msra.mxu0 %v3784
        %4274 = vmatprep.subr.bf16.mxu0 %v3789
        %4275 = vmatpush1.bf16.msra.mxu0 %v3788
        %4276 = vmatprep.subr.bf16.mxu0 %v3793
        %4277 = vmatpush1.bf16.msra.mxu0 %v3792
        %4278 = vmatprep.subr.bf16.mxu0 %v3797
        %4279 = vmatpush1.bf16.msra.mxu0 %v3796
        %4280 = vmatprep.subr.bf16.mxu0 %v3801
        %4281 = vmatpush1.bf16.msra.mxu0 %v3800
        %4282 = vmatprep.mubr.bf16.mxu0 %v2645
        %4283 = vmatmul.mubr.bf16.gmra.mrb[0].mxu0 %v2644
        %v4284 = vpop.f32.mrb[0].mxu0
        %v4285 = vadd.f32 %v4244, %v4284
        %v4286 = vpop.f32.mrb[0].mxu0
        %v4287 = vadd.f32 %v4246, %v4286
        %v4288 = vpop.f32.mrb[0].mxu0
        %v4289 = vpop.f32.mrb[0].mxu0
        %4290 = vdwg.mxu0
        %4291 = vmatprep.subr.bf16.mxu0 %v3805
        %4292 = vmatpush1.bf16.msra.mxu0 %v3804
        %4293 = vmatprep.subr.bf16.mxu0 %v3809
        %4294 = vmatpush1.bf16.msra.mxu0 %v3808
        %4295 = vmatprep.subr.bf16.mxu0 %v3813
        %4296 = vmatpush1.bf16.msra.mxu0 %v3812
        %4297 = vmatprep.subr.bf16.mxu0 %v3817
        %4298 = vmatpush1.bf16.msra.mxu0 %v3816
        %4299 = vmatprep.subr.bf16.mxu0 %v3821
        %4300 = vmatpush1.bf16.msra.mxu0 %v3820
        %4301 = vmatprep.subr.bf16.mxu0 %v3825
        %4302 = vmatpush1.bf16.msra.mxu0 %v3824
        %4303 = vmatprep.subr.bf16.mxu0 %v3829
        %4304 = vmatpush1.bf16.msra.mxu0 %v3828
        %4305 = vmatprep.subr.bf16.mxu0 %v3833
        %4306 = vmatpush1.bf16.msra.mxu0 %v3832
        %4307 = vmatprep.subr.bf16.mxu0 %v3837
        %4308 = vmatpush1.bf16.msra.mxu0 %v3836
        %4309 = vmatprep.subr.bf16.mxu0 %v3841
        %4310 = vmatpush1.bf16.msra.mxu0 %v3840
        %4311 = vmatprep.subr.bf16.mxu0 %v3845
        %4312 = vmatpush1.bf16.msra.mxu0 %v3844
        %4313 = vmatprep.subr.bf16.mxu0 %v3849
        %4314 = vmatpush1.bf16.msra.mxu0 %v3848
        %4315 = vmatprep.subr.bf16.mxu0 %v3853
        %4316 = vmatpush1.bf16.msra.mxu0 %v3852
        %4317 = vmatprep.subr.bf16.mxu0 %v3857
        %4318 = vmatpush1.bf16.msra.mxu0 %v3856
        %4319 = vmatprep.subr.bf16.mxu0 %v3861
        %4320 = vmatpush1.bf16.msra.mxu0 %v3860
        %4321 = vmatprep.subr.bf16.mxu0 %v3865
        %4322 = vmatpush1.bf16.msra.mxu0 %v3864
        %4323 = vmatprep.mubr.bf16.mxu0 %v2647
        %4324 = vmatmul.mubr.bf16.gmra.mrb[0].mxu0 %v2646
        %v4325 = vpop.f32.mrb[0].mxu0
        %v4326 = vadd.f32 %v4285, %v4325
        %v4327 = vpop.f32.mrb[0].mxu0
        %v4328 = vadd.f32 %v4287, %v4327
        %v4329 = vpop.f32.mrb[0].mxu0
        %v4330 = vpop.f32.mrb[0].mxu0
        %4331 = vdwg.mxu0
        %4332 = vmatprep.subr.bf16.mxu0 %v3869
        %4333 = vmatpush1.bf16.msra.mxu0 %v3868
        %4334 = vmatprep.subr.bf16.mxu0 %v3873
        %4335 = vmatpush1.bf16.msra.mxu0 %v3872
        %4336 = vmatprep.subr.bf16.mxu0 %v3877
        %4337 = vmatpush1.bf16.msra.mxu0 %v3876
        %4338 = vmatprep.subr.bf16.mxu0 %v3881
        %4339 = vmatpush1.bf16.msra.mxu0 %v3880
        %4340 = vmatprep.subr.bf16.mxu0 %v3885
        %4341 = vmatpush1.bf16.msra.mxu0 %v3884
        %4342 = vmatprep.subr.bf16.mxu0 %v3889
        %4343 = vmatpush1.bf16.msra.mxu0 %v3888
        %4344 = vmatprep.subr.bf16.mxu0 %v3893
        %4345 = vmatpush1.bf16.msra.mxu0 %v3892
        %4346 = vmatprep.subr.bf16.mxu0 %v3897
        %4347 = vmatpush1.bf16.msra.mxu0 %v3896
        %4348 = vmatprep.subr.bf16.mxu0 %v3901
        %4349 = vmatpush1.bf16.msra.mxu0 %v3900
        %4350 = vmatprep.subr.bf16.mxu0 %v3905
        %4351 = vmatpush1.bf16.msra.mxu0 %v3904
        %4352 = vmatprep.subr.bf16.mxu0 %v3909
        %4353 = vmatpush1.bf16.msra.mxu0 %v3908
        %4354 = vmatprep.subr.bf16.mxu0 %v3913
        %4355 = vmatpush1.bf16.msra.mxu0 %v3912
        %4356 = vmatprep.subr.bf16.mxu0 %v3917
        %4357 = vmatpush1.bf16.msra.mxu0 %v3916
        %4358 = vmatprep.subr.bf16.mxu0 %v3921
        %4359 = vmatpush1.bf16.msra.mxu0 %v3920
        %4360 = vmatprep.subr.bf16.mxu0 %v3925
        %4361 = vmatpush1.bf16.msra.mxu0 %v3924
        %4362 = vmatprep.subr.bf16.mxu0 %v3929
        %4363 = vmatpush1.bf16.msra.mxu0 %v3928
        %4364 = vmatprep.mubr.bf16.mxu0 %v2649
        %4365 = vmatmul.mubr.bf16.gmra.mrb[0].mxu0 %v2648
        %v4366 = vpop.f32.mrb[0].mxu0
        %v4367 = vadd.f32 %v4326, %v4366
        %v4368 = vpop.f32.mrb[0].mxu0
        %v4369 = vadd.f32 %v4328, %v4368
        %v4370 = vpop.f32.mrb[0].mxu0
        %v4371 = vpop.f32.mrb[0].mxu0
        %4372 = vdwg.mxu0
        %4373 = vmatprep.subr.bf16.mxu0 %v3679
        %4374 = vmatpush1.bf16.msra.mxu0 %v3678
        %4375 = vmatprep.subr.bf16.mxu0 %v3683
        %4376 = vmatpush1.bf16.msra.mxu0 %v3682
        %4377 = vmatprep.subr.bf16.mxu0 %v3687
        %4378 = vmatpush1.bf16.msra.mxu0 %v3686
        %4379 = vmatprep.subr.bf16.mxu0 %v3691
        %4380 = vmatpush1.bf16.msra.mxu0 %v3690
        %4381 = vmatprep.subr.bf16.mxu0 %v3695
        %4382 = vmatpush1.bf16.msra.mxu0 %v3694
        %4383 = vmatprep.subr.bf16.mxu0 %v3699
        %4384 = vmatpush1.bf16.msra.mxu0 %v3698
        %4385 = vmatprep.subr.bf16.mxu0 %v3703
        %4386 = vmatpush1.bf16.msra.mxu0 %v3702
        %4387 = vmatprep.subr.bf16.mxu0 %v3707
        %4388 = vmatpush1.bf16.msra.mxu0 %v3706
        %4389 = vmatprep.subr.bf16.mxu0 %v3711
        %4390 = vmatpush1.bf16.msra.mxu0 %v3710
        %4391 = vmatprep.subr.bf16.mxu0 %v3715
        %4392 = vmatpush1.bf16.msra.mxu0 %v3714
        %4393 = vmatprep.subr.bf16.mxu0 %v3719
        %4394 = vmatpush1.bf16.msra.mxu0 %v3718
        %4395 = vmatprep.subr.bf16.mxu0 %v3723
        %4396 = vmatpush1.bf16.msra.mxu0 %v3722
        %4397 = vmatprep.subr.bf16.mxu0 %v3727
        %4398 = vmatpush1.bf16.msra.mxu0 %v3726
        %4399 = vmatprep.subr.bf16.mxu0 %v3731
        %4400 = vmatpush1.bf16.msra.mxu0 %v3730
        %4401 = vmatprep.subr.bf16.mxu0 %v3735
        %4402 = vmatpush1.bf16.msra.mxu0 %v3734
        %4403 = vmatprep.subr.bf16.mxu0 %v3739
        %4404 = vmatpush1.bf16.msra.mxu0 %v3738
        %4405 = vmatprep.mubr.bf16.mxu0 %v2643
        %4406 = vmatmul.mubr.bf16.gmra.mrb[0].mxu0 %v2642
        %v4407 = vpop.f32.mrb[0].mxu0
        %v4408 = vadd.f32 %v4200, %v4407
        %v4409 = vpop.f32.mrb[0].mxu0
        %v4410 = vadd.f32 %v4204, %v4409
        %v4411 = vpop.f32.mrb[0].mxu0
        %v4412 = vpop.f32.mrb[0].mxu0
        %4413 = vdwg.mxu0
        %4414 = vmatprep.subr.bf16.mxu0 %v3743
        %4415 = vmatpush1.bf16.msra.mxu0 %v3742
        %4416 = vmatprep.subr.bf16.mxu0 %v3747
        %4417 = vmatpush1.bf16.msra.mxu0 %v3746
        %4418 = vmatprep.subr.bf16.mxu0 %v3751
        %4419 = vmatpush1.bf16.msra.mxu0 %v3750
        %4420 = vmatprep.subr.bf16.mxu0 %v3755
        %4421 = vmatpush1.bf16.msra.mxu0 %v3754
        %4422 = vmatprep.subr.bf16.mxu0 %v3759
        %4423 = vmatpush1.bf16.msra.mxu0 %v3758
        %4424 = vmatprep.subr.bf16.mxu0 %v3763
        %4425 = vmatpush1.bf16.msra.mxu0 %v3762
        %4426 = vmatprep.subr.bf16.mxu0 %v3767
        %4427 = vmatpush1.bf16.msra.mxu0 %v3766
        %4428 = vmatprep.subr.bf16.mxu0 %v3771
        %4429 = vmatpush1.bf16.msra.mxu0 %v3770
        %4430 = vmatprep.subr.bf16.mxu0 %v3775
        %4431 = vmatpush1.bf16.msra.mxu0 %v3774
        %4432 = vmatprep.subr.bf16.mxu0 %v3779
        %4433 = vmatpush1.bf16.msra.mxu0 %v3778
        %4434 = vmatprep.subr.bf16.mxu0 %v3783
        %4435 = vmatpush1.bf16.msra.mxu0 %v3782
        %4436 = vmatprep.subr.bf16.mxu0 %v3787
        %4437 = vmatpush1.bf16.msra.mxu0 %v3786
        %4438 = vmatprep.subr.bf16.mxu0 %v3791
        %4439 = vmatpush1.bf16.msra.mxu0 %v3790
        %4440 = vmatprep.subr.bf16.mxu0 %v3795
        %4441 = vmatpush1.bf16.msra.mxu0 %v3794
        %4442 = vmatprep.subr.bf16.mxu0 %v3799
        %4443 = vmatpush1.bf16.msra.mxu0 %v3798
        %4444 = vmatprep.subr.bf16.mxu0 %v3803
        %4445 = vmatpush1.bf16.msra.mxu0 %v3802
        %4446 = vmatprep.mubr.bf16.mxu0 %v2645
        %4447 = vmatmul.mubr.bf16.gmra.mrb[0].mxu0 %v2644
        %v4448 = vpop.f32.mrb[0].mxu0
        %v4449 = vadd.f32 %v4408, %v4448
        %v4450 = vpop.f32.mrb[0].mxu0
        %v4451 = vadd.f32 %v4410, %v4450
        %v4452 = vpop.f32.mrb[0].mxu0
        %v4453 = vpop.f32.mrb[0].mxu0
        %4454 = vdwg.mxu0
        %4455 = vmatprep.subr.bf16.mxu0 %v3807
        %4456 = vmatpush1.bf16.msra.mxu0 %v3806
        %4457 = vmatprep.subr.bf16.mxu0 %v3811
        %4458 = vmatpush1.bf16.msra.mxu0 %v3810
        %4459 = vmatprep.subr.bf16.mxu0 %v3815
        %4460 = vmatpush1.bf16.msra.mxu0 %v3814
        %4461 = vmatprep.subr.bf16.mxu0 %v3819
        %4462 = vmatpush1.bf16.msra.mxu0 %v3818
        %4463 = vmatprep.subr.bf16.mxu0 %v3823
        %4464 = vmatpush1.bf16.msra.mxu0 %v3822
        %4465 = vmatprep.subr.bf16.mxu0 %v3827
        %4466 = vmatpush1.bf16.msra.mxu0 %v3826
        %4467 = vmatprep.subr.bf16.mxu0 %v3831
        %4468 = vmatpush1.bf16.msra.mxu0 %v3830
        %4469 = vmatprep.subr.bf16.mxu0 %v3835
        %4470 = vmatpush1.bf16.msra.mxu0 %v3834
        %4471 = vmatprep.subr.bf16.mxu0 %v3839
        %4472 = vmatpush1.bf16.msra.mxu0 %v3838
        %4473 = vmatprep.subr.bf16.mxu0 %v3843
        %4474 = vmatpush1.bf16.msra.mxu0 %v3842
        %4475 = vmatprep.subr.bf16.mxu0 %v3847
        %4476 = vmatpush1.bf16.msra.mxu0 %v3846
        %4477 = vmatprep.subr.bf16.mxu0 %v3851
        %4478 = vmatpush1.bf16.msra.mxu0 %v3850
        %4479 = vmatprep.subr.bf16.mxu0 %v3855
        %4480 = vmatpush1.bf16.msra.mxu0 %v3854
        %4481 = vmatprep.subr.bf16.mxu0 %v3859
        %4482 = vmatpush1.bf16.msra.mxu0 %v3858
        %4483 = vmatprep.subr.bf16.mxu0 %v3863
        %4484 = vmatpush1.bf16.msra.mxu0 %v3862
        %4485 = vmatprep.subr.bf16.mxu0 %v3867
        %4486 = vmatpush1.bf16.msra.mxu0 %v3866
        %4487 = vmatprep.mubr.bf16.mxu0 %v2647
        %4488 = vmatmul.mubr.bf16.gmra.mrb[0].mxu0 %v2646
        %v4489 = vpop.f32.mrb[0].mxu0
        %v4490 = vadd.f32 %v4449, %v4489
        %v4491 = vpop.f32.mrb[0].mxu0
        %v4492 = vadd.f32 %v4451, %v4491
        %v4493 = vpop.f32.mrb[0].mxu0
        %v4494 = vpop.f32.mrb[0].mxu0
        %4495 = vdwg.mxu0
        %4496 = vmatprep.subr.bf16.mxu0 %v3871
        %4497 = vmatpush1.bf16.msra.mxu0 %v3870
        %4498 = vmatprep.subr.bf16.mxu0 %v3875
        %4499 = vmatpush1.bf16.msra.mxu0 %v3874
        %4500 = vmatprep.subr.bf16.mxu0 %v3879
        %4501 = vmatpush1.bf16.msra.mxu0 %v3878
        %4502 = vmatprep.subr.bf16.mxu0 %v3883
        %4503 = vmatpush1.bf16.msra.mxu0 %v3882
        %4504 = vmatprep.subr.bf16.mxu0 %v3887
        %4505 = vmatpush1.bf16.msra.mxu0 %v3886
        %4506 = vmatprep.subr.bf16.mxu0 %v3891
        %4507 = vmatpush1.bf16.msra.mxu0 %v3890
        %4508 = vmatprep.subr.bf16.mxu0 %v3895
        %4509 = vmatpush1.bf16.msra.mxu0 %v3894
        %4510 = vmatprep.subr.bf16.mxu0 %v3899
        %4511 = vmatpush1.bf16.msra.mxu0 %v3898
        %4512 = vmatprep.subr.bf16.mxu0 %v3903
        %4513 = vmatpush1.bf16.msra.mxu0 %v3902
        %4514 = vmatprep.subr.bf16.mxu0 %v3907
        %4515 = vmatpush1.bf16.msra.mxu0 %v3906
        %4516 = vmatprep.subr.bf16.mxu0 %v3911
        %4517 = vmatpush1.bf16.msra.mxu0 %v3910
        %4518 = vmatprep.subr.bf16.mxu0 %v3915
        %4519 = vmatpush1.bf16.msra.mxu0 %v3914
        %4520 = vmatprep.subr.bf16.mxu0 %v3919
        %4521 = vmatpush1.bf16.msra.mxu0 %v3918
        %4522 = vmatprep.subr.bf16.mxu0 %v3923
        %4523 = vmatpush1.bf16.msra.mxu0 %v3922
        %4524 = vmatprep.subr.bf16.mxu0 %v3927
        %4525 = vmatpush1.bf16.msra.mxu0 %v3926
        %4526 = vmatprep.subr.bf16.mxu0 %v3931
        %4527 = vmatpush1.bf16.msra.mxu0 %v3930
        %4528 = vmatprep.mubr.bf16.mxu0 %v2649
        %4529 = vmatmul.mubr.bf16.gmra.mrb[0].mxu0 %v2648
        %v4530 = vpop.f32.mrb[0].mxu0
        %v4531 = vadd.f32 %v4490, %v4530
        %v4532 = vpop.f32.mrb[0].mxu0
        %v4533 = vadd.f32 %v4492, %v4532
        %v4534 = vpop.f32.mrb[0].mxu0
        %v4535 = vpop.f32.mrb[0].mxu0
        %4536 = vdwg.mxu0
        %v4537 = vpack.c.bf16 %v4367, %v4367
        %v4538 = vpack.c.bf16 %v4369, %v4369
        %v4539 = vpack.c.bf16 %v4531, %v4531
        %v4540 = vpack.c.bf16 %v4533, %v4533
        %v4545 = vcombine.low %v4537, %v4538
        %v4546 = vcombine.low %v4539, %v4540
        %v4548 = vunpack.c.l.s4 1966171168
        %v4549 = vunpack.c.0.s8 %v4548
        %v4550 = vlaneseq
        %v4551 = vshrl.u32 %v4550, 7
        %v4552 = vsub.s32 %v4549, %v4551
        %v4553 = vrot.slane %v4545, %v4552
        %v4555 = vunpack.c.l.s4 1966171168
        %v4556 = vunpack.c.0.s8 %v4555
        %v4557 = vlaneseq
        %v4558 = vshrl.u32 %v4557, 7
        %v4559 = vsub.s32 %v4556, %v4558
        %v4560 = vrot.slane %v4546, %v4559
        %v4561 = vcombine.low %v4553, %v4560
        %v4563 = vunpack.c.l.s4 1966171168
        %v4564 = vunpack.c.0.s8 %v4563
        %v4565 = vlaneseq
        %v4566 = vshrl.u32 %v4565, 7
        %v4567 = vsub.s32 %v4564, %v4566
        %v4568 = vrot.slane %v4561, %v4567
        %vm4570 = vcmask 1040384
        %vm4571 = vsmask.f32 256
        %vm4572 = vmand %vm4570, %vm4571
        %vm4573 = vcmask 1041409
        %vm4574 = vsmask.f32 1280
        %vm4575 = vmand %vm4573, %vm4574
        %vm4576 = vmor %vm4575, %vm4572
        %vm4577 = vcmask 1042434
        %vm4578 = vsmask.f32 2304
        %vm4579 = vmand %vm4577, %vm4578
        %vm4580 = vmor %vm4579, %vm4576
        %vm4581 = vcmask 1043459
        %vm4582 = vsmask.f32 3328
        %vm4583 = vmand %vm4581, %vm4582
        %vm4584 = vmor %vm4583, %vm4580
        %v4585 = vld [vmem:[%s438] sm:$0xf]
        %v4586 = vsel %vm4584, %v4568, %v4585
        %4587 = vst [vmem:[%s438] sm:$0xf] %v4586
        %p4588 = scmp.lt.s32.totalorder %s25, 1
        %s4589 = scalar_select %p4588, %s25, 1
        %p4590 = scmp.lt.s32.totalorder %s26, 1
        %s4591 = scalar_select %p4590, %s26, 1
        %s4592 = smul.addr %s4591, 4
        %s4593 = smul.addr %s4589, 8
        %s4594 = sadd.s32 %s4592, %s4593
        %s4595 = scalar_lea.vmem %s6, %s4594
        %p4596 = scmp.lt.s32.totalorder %s25, 1
        %s4597 = scalar_select %p4596, %s25, 1
        %p4598 = scmp.lt.s32.totalorder %s26, 1
        %s4599 = scalar_select %p4598, %s26, 1
        %s4600 = smul.addr %s4599, 25
        %s4601 = smul.addr %s4597, 50
        %s4602 = sadd.s32 %s4600, %s4601
        %s4603 = smul.addr %s4602, 8
        %s4604 = scalar_lea.vmem %s7, %s4603
        %p4605 = scmp.lt.s32.totalorder %s25, 1
        %s4606 = scalar_select %p4605, %s25, 1
        %p4607 = scmp.lt.s32.totalorder %s26, 1
        %s4608 = scalar_select %p4607, %s26, 1
        %s4609 = smul.addr %s4606, 2
        %s4610 = sadd.s32 %s4608, %s4609
        %s4611 = scalar_lea.vmem %s8, %s4610
        // Predicated region
        $region49: #{ponnet_forward.2} parent=43 // pred_check
          %p4612 = pneg %p201
        $region50: #{ponnet_forward.2} parent=43 // pred_check_branch
          %4614 = sbr.rel (%p4612) target = $region52
        $region51: #{ponnet_forward.2} parent=43 // pred_region
          _
        $region52: #{ponnet_forward.2} parent=43 // pred_fallthru
          _
        // Predicated region
        $region53: #{ponnet_forward.2} parent=43 // pred_check
          %p4615 = pneg %p229
        $region54: #{ponnet_forward.2} parent=43 // pred_check_branch
          %4617 = sbr.rel (%p4615) target = $region56
        $region55: #{ponnet_forward.2} parent=43 // pred_region
          _
        $region56: #{ponnet_forward.2} parent=43 // pred_fallthru
          _
        // Predicated region
        $region57: #{ponnet_forward.2} parent=43 // pred_check
          %p4618 = pneg %p257
        $region58: #{ponnet_forward.2} parent=43 // pred_check_branch
          %4620 = sbr.rel (%p4618) target = $region60
        $region59: #{ponnet_forward.2} parent=43 // pred_region
          _
        $region60: #{ponnet_forward.2} parent=43 // pred_fallthru
          _
      $region44: #{ponnet_forward.2} parent=5 // pred_fallthru
        _
      %p4621 = scmp.le.s32.totalorder 2, %s16
      // Predicated region
      $region61: #{ponnet_forward.2} parent=5 // pred_check
        %p4622 = pneg %p4621
      $region62: #{ponnet_forward.2} parent=5 // pred_check_branch
        %4624 = sbr.rel (%p4622) target = $region64
      $region63: #{ponnet_forward.2} parent=5 // pred_region
        %s4625 = ssub.s32 %s16, 2
        // Predicated region
        $region65: #{ponnet_forward.2} parent=63 // pred_check
          %p4626 = pneg %p207
        $region66: #{ponnet_forward.2} parent=63 // pred_check_branch
          %4628 = sbr.rel (%p4626) target = $region68
        $region67: #{ponnet_forward.2} parent=63 // pred_region
          %p4629 = scmp.lt.s32.totalorder %s27, 1
          %s4630 = scalar_select %p4629, %s27, 1
          %p4631 = scmp.lt.s32.totalorder %s28, 1
          %s4632 = scalar_select %p4631, %s28, 1
          %s4633 = smul.addr %s4632, 4
          %s4634 = smul.addr %s4630, 8
          %s4635 = sadd.s32 %s4633, %s4634
          %s4636 = scalar_lea.vmem %s6, %s4635
        $region68: #{ponnet_forward.2} parent=63 // pred_fallthru
          _
        // Predicated region
        $region69: #{ponnet_forward.2} parent=63 // pred_check
          %p4637 = pneg %p235
        $region70: #{ponnet_forward.2} parent=63 // pred_check_branch
          %4639 = sbr.rel (%p4637) target = $region72
        $region71: #{ponnet_forward.2} parent=63 // pred_region
          %p4640 = scmp.lt.s32.totalorder %s27, 1
          %s4641 = scalar_select %p4640, %s27, 1
          %p4642 = scmp.lt.s32.totalorder %s28, 1
          %s4643 = scalar_select %p4642, %s28, 1
          %s4644 = smul.addr %s4643, 25
          %s4645 = smul.addr %s4641, 50
          %s4646 = sadd.s32 %s4644, %s4645
          %s4647 = smul.addr %s4646, 8
          %s4648 = scalar_lea.vmem %s7, %s4647
        $region72: #{ponnet_forward.2} parent=63 // pred_fallthru
          _
        // Predicated region
        $region73: #{ponnet_forward.2} parent=63 // pred_check
          %p4649 = pneg %p263
        $region74: #{ponnet_forward.2} parent=63 // pred_check_branch
          %4651 = sbr.rel (%p4649) target = $region76
        $region75: #{ponnet_forward.2} parent=63 // pred_region
          %p4652 = scmp.lt.s32.totalorder %s27, 1
          %s4653 = scalar_select %p4652, %s27, 1
          %p4654 = scmp.lt.s32.totalorder %s28, 1
          %s4655 = scalar_select %p4654, %s28, 1
          %s4656 = smul.addr %s4653, 2
          %s4657 = sadd.s32 %s4655, %s4656
          %s4658 = scalar_lea.vmem %s8, %s4657
        $region76: #{ponnet_forward.2} parent=63 // pred_fallthru
          _
      $region64: #{ponnet_forward.2} parent=5 // pred_fallthru
        _
    $region6: #{ponnet_forward.2} parent=1 // loop_footer
      %s20 = sadd.s32 1, %s16
    $region7: #{ponnet_forward.2} parent=1 // loop_footer_branch
      %15 = sbr.rel target = $region3
    $region8: #{ponnet_forward.2} parent=1 // loop_exit
      _
    %4659 = vsyncpa [#allocation3], 1
    %s4660 = scalar_lea.sflag [#allocation3], 1
    %4661 = vsyncpa %s4660, 1

// kernel: squeeze.0
$region0: #{squeeze.0}
  %s0 = inlined_call_operand.vmem [shape: f32[2,196], index: 0, kind: input, shape index: {}]
  %s1 = inlined_call_operand.hbm [shape: f32[2,1,14,14], index: 1, kind: output, shape index: {}]
  $region1: #{squeeze.0} parent=0
    #allocation0 [shape = 'u8[14336]{0}', space=vmem, size = 0x3800, scoped, tag = 'operand span for operand 1']
    #allocation1 [shape = 's32[1]{0}', space=sflag, size = 0x4, scoped, tag = 'scoped memory for squeeze.0']
    #allocation2 [shape = 'u8[114688]{0}', space=vmem, size = 0x1c000, scoped, tag = 'scoped mem for output reshape']
    #allocation3 [shape = 'u8[8192]{0}', space=vmem, size = 0x2000, scoped, tag = 'scoped mem for input reshape']
    %2 = vsyncpa [#allocation1], 0
    %s4 = sshllo.u32 0, 2
    %s5 = scalar_lea.vmem %s0, 2
    %v6 = vld [vmem:[%s5] sm:%s4]
    %s7 = scalar_lea.vmem [#allocation3], 8
    %8 = vst [vmem:[%s7] sm:%s4] %v6
    %v9 = vld [vmem:[%s0] sm:%s4]
    %10 = vst [vmem:[#allocation3] sm:%s4] %v9
    %v11 = vld [vmem:[#allocation3] sm:$0x3]
    %vm12 = vcmask 113664
    %13 = vst.msk [vmem:[#allocation2] ss:$112 sm:$0x3] %vm12, %v11
    %s14 = scalar_lea.vmem [#allocation3], 9
    %s15 = smov 3
    %v16 = vld [vmem:[%s14] ss:$-1 sm:%s15]
    %17 = vrot.lane.b32.xlu0 %v16, 116
    %v18 = vpop.permute.xlu0 %17
    %vm19 = vcmask 113664
    %s20 = scalar_lea.vmem [#allocation2], 192
    %21 = vst.msk [vmem:[%s20] ss:$-112 sm:$0x3] %vm19, %v18
    %v22 = vld [vmem:[#allocation3] sm:$0x3]
    %23 = vrot.lane.b32.xlu0 %v22, 114
    %v24 = vpop.permute.xlu0 %23
    %vm25 = vcmask 113664
    %s26 = scalar_lea.vmem [#allocation2], 8
    %27 = vst.msk [vmem:[%s26] ss:$112 sm:$0x3] %vm25, %v24
    %s28 = scalar_lea.vmem [#allocation3], 9
    %s29 = smov 3
    %v30 = vld [vmem:[%s28] ss:$-1 sm:%s29]
    %31 = vrot.lane.b32.xlu0 %v30, 102
    %v32 = vpop.permute.xlu0 %31
    %vm33 = vcmask 113664
    %s34 = scalar_lea.vmem [#allocation2], 200
    %35 = vst.msk [vmem:[%s34] ss:$-112 sm:$0x3] %vm33, %v32
    %s36 = scalar_lea.vmem [#allocation3], 1
    %s37 = smov 3
    %v38 = vld [vmem:[%s36] ss:$-1 sm:%s37]
    %39 = vrot.lane.b32.xlu0 %v38, 100
    %v40 = vpop.permute.xlu0 %39
    %vm41 = vcmask 113664
    %s42 = scalar_lea.vmem [#allocation2], 128
    %43 = vst.msk [vmem:[%s42] ss:$-112 sm:$0x3] %vm41, %v40
    %s44 = scalar_lea.vmem [#allocation3], 8
    %v45 = vld [vmem:[%s44] sm:$0x3]
    %46 = vrot.lane.b32.xlu0 %v45, 88
    %v47 = vpop.permute.xlu0 %46
    %vm48 = vcmask 113664
    %s49 = scalar_lea.vmem [#allocation2], 96
    %50 = vst.msk [vmem:[%s49] ss:$112 sm:$0x3] %vm48, %v47
    %s51 = scalar_lea.vmem [#allocation3], 1
    %s52 = smov 3
    %v53 = vld [vmem:[%s51] ss:$-1 sm:%s52]
    %54 = vrot.lane.b32.xlu0 %v53, 86
    %v55 = vpop.permute.xlu0 %54
    %vm56 = vcmask 113664
    %s57 = scalar_lea.vmem [#allocation2], 136
    %58 = vst.msk [vmem:[%s57] ss:$-112 sm:$0x3] %vm56, %v55
    %s59 = scalar_lea.vmem [#allocation3], 8
    %v60 = vld [vmem:[%s59] sm:$0x3]
    %61 = vrot.lane.b32.xlu0 %v60, 74
    %v62 = vpop.permute.xlu0 %61
    %vm63 = vcmask 113664
    %s64 = scalar_lea.vmem [#allocation2], 104
    %65 = vst.msk [vmem:[%s64] ss:$112 sm:$0x3] %vm63, %v62
    %v66 = vld [vmem:[#allocation3] sm:$0x3]
    %67 = vrot.lane.b32.xlu0 %v66, 72
    %v68 = vpop.permute.xlu0 %67
    %vm69 = vcmask 113664
    %s70 = scalar_lea.vmem [#allocation2], 32
    %71 = vst.msk [vmem:[%s70] ss:$112 sm:$0x3] %vm69, %v68
    %v72 = vld [vmem:[#allocation3] sm:$0x3]
    %73 = vrot.lane.b32.xlu0 %v72, 58
    %v74 = vpop.permute.xlu0 %73
    %vm75 = vcmask 113664
    %s76 = scalar_lea.vmem [#allocation2], 40
    %77 = vst.msk [vmem:[%s76] ss:$112 sm:$0x3] %vm75, %v74
    %s78 = scalar_lea.vmem [#allocation3], 1
    %s79 = smov 3
    %v80 = vld [vmem:[%s78] ss:$-1 sm:%s79]
    %81 = vrot.lane.b32.xlu0 %v80, 44
    %v82 = vpop.permute.xlu0 %81
    %vm83 = vcmask 113664
    %s84 = scalar_lea.vmem [#allocation2], 160
    %85 = vst.msk [vmem:[%s84] ss:$-112 sm:$0x3] %vm83, %v82
    %s86 = scalar_lea.vmem [#allocation3], 1
    %s87 = smov 3
    %v88 = vld [vmem:[%s86] ss:$-1 sm:%s87]
    %89 = vrot.lane.b32.xlu0 %v88, 30
    %v90 = vpop.permute.xlu0 %89
    %vm91 = vcmask 113664
    %s92 = scalar_lea.vmem [#allocation2], 168
    %93 = vst.msk [vmem:[%s92] ss:$-112 sm:$0x3] %vm91, %v90
    %v94 = vld [vmem:[#allocation3] sm:$0x3]
    %95 = vrot.lane.b32.xlu0 %v94, 16
    %v96 = vpop.permute.xlu0 %95
    %vm97 = vcmask 113664
    %s98 = scalar_lea.vmem [#allocation2], 64
    %99 = vst.msk [vmem:[%s98] ss:$112 sm:$0x3] %vm97, %v96
    %v100 = vld [vmem:[#allocation3] sm:$0x3]
    %s101 = scalar_lea.vmem [#allocation3], 8
    %v102 = vld [vmem:[%s101] sm:$0x3]
    %vm103 = vcmask 1031168
    %v104 = vsel %vm103, %v102, %v100
    %105 = vrot.lane.b32.xlu0 %v104, 2
    %v106 = vpop.permute.xlu0 %105
    %vm107 = vcmask 15360
    %s108 = scalar_lea.vmem [#allocation2], 72
    %109 = vst.msk [vmem:[%s108] ss:$112 sm:$0x3] %vm107, %v106
    %vm110 = vcmask 113680
    %s111 = scalar_lea.vmem [#allocation2], 72
    %112 = vst.msk [vmem:[%s111] ss:$112 sm:$0x3] %vm110, %v106
    %s114 = sshllo.u32 0, 1
    %v116 = vld [vmem:[#allocation2] sm:%s114]
    %s117 = sshllo.u32 0, 1
    %118 = vst [vmem:[#allocation0] sm:%s117] %v116
    %s119 = scalar_lea.vmem [#allocation2], 8
    %v120 = vld [vmem:[%s119] sm:%s114]
    %s121 = sshllo.u32 0, 1
    %s122 = scalar_lea.vmem [#allocation0], 1
    %123 = vst [vmem:[%s122] sm:%s121] %v120
    %s124 = scalar_lea.vmem [#allocation2], 16
    %v125 = vld [vmem:[%s124] sm:%s114]
    %s126 = sshllo.u32 0, 1
    %s127 = smul.addr 1, 2
    %s128 = scalar_lea.vmem [#allocation0], %s127
    %129 = vst [vmem:[%s128] sm:%s126] %v125
    %s130 = scalar_lea.vmem [#allocation2], 24
    %v131 = vld [vmem:[%s130] sm:%s114]
    %s132 = sshllo.u32 0, 1
    %s133 = smul.addr 1, 3
    %s134 = scalar_lea.vmem [#allocation0], %s133
    %135 = vst [vmem:[%s134] sm:%s132] %v131
    %s136 = scalar_lea.vmem [#allocation2], 32
    %v137 = vld [vmem:[%s136] sm:%s114]
    %s138 = sshllo.u32 0, 1
    %s139 = smul.addr 1, 4
    %s140 = scalar_lea.vmem [#allocation0], %s139
    %141 = vst [vmem:[%s140] sm:%s138] %v137
    %s142 = scalar_lea.vmem [#allocation2], 40
    %v143 = vld [vmem:[%s142] sm:%s114]
    %s144 = sshllo.u32 0, 1
    %s145 = smul.addr 1, 5
    %s146 = scalar_lea.vmem [#allocation0], %s145
    %147 = vst [vmem:[%s146] sm:%s144] %v143
    %s148 = scalar_lea.vmem [#allocation2], 48
    %v149 = vld [vmem:[%s148] sm:%s114]
    %s150 = sshllo.u32 0, 1
    %s151 = smul.addr 1, 6
    %s152 = scalar_lea.vmem [#allocation0], %s151
    %153 = vst [vmem:[%s152] sm:%s150] %v149
    %s154 = scalar_lea.vmem [#allocation2], 56
    %v155 = vld [vmem:[%s154] sm:%s114]
    %s156 = sshllo.u32 0, 1
    %s157 = smul.addr 1, 7
    %s158 = scalar_lea.vmem [#allocation0], %s157
    %159 = vst [vmem:[%s158] sm:%s156] %v155
    %s160 = scalar_lea.vmem [#allocation2], 64
    %v161 = vld [vmem:[%s160] sm:%s114]
    %s162 = sshllo.u32 0, 1
    %s163 = smul.addr 1, 8
    %s164 = scalar_lea.vmem [#allocation0], %s163
    %165 = vst [vmem:[%s164] sm:%s162] %v161
    %s166 = scalar_lea.vmem [#allocation2], 72
    %v167 = vld [vmem:[%s166] sm:%s114]
    %s168 = sshllo.u32 0, 1
    %s169 = smul.addr 1, 9
    %s170 = scalar_lea.vmem [#allocation0], %s169
    %171 = vst [vmem:[%s170] sm:%s168] %v167
    %s172 = scalar_lea.vmem [#allocation2], 80
    %v173 = vld [vmem:[%s172] sm:%s114]
    %s174 = sshllo.u32 0, 1
    %s175 = smul.addr 1, 10
    %s176 = scalar_lea.vmem [#allocation0], %s175
    %177 = vst [vmem:[%s176] sm:%s174] %v173
    %s178 = scalar_lea.vmem [#allocation2], 88
    %v179 = vld [vmem:[%s178] sm:%s114]
    %s180 = sshllo.u32 0, 1
    %s181 = smul.addr 1, 11
    %s182 = scalar_lea.vmem [#allocation0], %s181
    %183 = vst [vmem:[%s182] sm:%s180] %v179
    %s184 = scalar_lea.vmem [#allocation2], 96
    %v185 = vld [vmem:[%s184] sm:%s114]
    %s186 = sshllo.u32 0, 1
    %s187 = smul.addr 1, 12
    %s188 = scalar_lea.vmem [#allocation0], %s187
    %189 = vst [vmem:[%s188] sm:%s186] %v185
    %s190 = scalar_lea.vmem [#allocation2], 104
    %v191 = vld [vmem:[%s190] sm:%s114]
    %s192 = sshllo.u32 0, 1
    %s193 = smul.addr 1, 13
    %s194 = scalar_lea.vmem [#allocation0], %s193
    %195 = vst [vmem:[%s194] sm:%s192] %v191
    %s196 = scalar_lea.vmem [#allocation2], 112
    %v197 = vld [vmem:[%s196] sm:%s114]
    %s198 = sshllo.u32 0, 1
    %s199 = smul.addr 1, 14
    %s200 = scalar_lea.vmem [#allocation0], %s199
    %201 = vst [vmem:[%s200] sm:%s198] %v197
    %s202 = scalar_lea.vmem [#allocation2], 120
    %v203 = vld [vmem:[%s202] sm:%s114]
    %s204 = sshllo.u32 0, 1
    %s205 = smul.addr 1, 15
    %s206 = scalar_lea.vmem [#allocation0], %s205
    %207 = vst [vmem:[%s206] sm:%s204] %v203
    %s208 = scalar_lea.vmem [#allocation2], 128
    %v209 = vld [vmem:[%s208] sm:%s114]
    %s210 = sshllo.u32 0, 1
    %s211 = smul.addr 1, 16
    %s212 = scalar_lea.vmem [#allocation0], %s211
    %213 = vst [vmem:[%s212] sm:%s210] %v209
    %s214 = scalar_lea.vmem [#allocation2], 136
    %v215 = vld [vmem:[%s214] sm:%s114]
    %s216 = sshllo.u32 0, 1
    %s217 = smul.addr 1, 17
    %s218 = scalar_lea.vmem [#allocation0], %s217
    %219 = vst [vmem:[%s218] sm:%s216] %v215
    %s220 = scalar_lea.vmem [#allocation2], 144
    %v221 = vld [vmem:[%s220] sm:%s114]
    %s222 = sshllo.u32 0, 1
    %s223 = smul.addr 1, 18
    %s224 = scalar_lea.vmem [#allocation0], %s223
    %225 = vst [vmem:[%s224] sm:%s222] %v221
    %s226 = scalar_lea.vmem [#allocation2], 152
    %v227 = vld [vmem:[%s226] sm:%s114]
    %s228 = sshllo.u32 0, 1
    %s229 = smul.addr 1, 19
    %s230 = scalar_lea.vmem [#allocation0], %s229
    %231 = vst [vmem:[%s230] sm:%s228] %v227
    %s232 = scalar_lea.vmem [#allocation2], 160
    %v233 = vld [vmem:[%s232] sm:%s114]
    %s234 = sshllo.u32 0, 1
    %s235 = smul.addr 1, 20
    %s236 = scalar_lea.vmem [#allocation0], %s235
    %237 = vst [vmem:[%s236] sm:%s234] %v233
    %s238 = scalar_lea.vmem [#allocation2], 168
    %v239 = vld [vmem:[%s238] sm:%s114]
    %s240 = sshllo.u32 0, 1
    %s241 = smul.addr 1, 21
    %s242 = scalar_lea.vmem [#allocation0], %s241
    %243 = vst [vmem:[%s242] sm:%s240] %v239
    %s244 = scalar_lea.vmem [#allocation2], 176
    %v245 = vld [vmem:[%s244] sm:%s114]
    %s246 = sshllo.u32 0, 1
    %s247 = smul.addr 1, 22
    %s248 = scalar_lea.vmem [#allocation0], %s247
    %249 = vst [vmem:[%s248] sm:%s246] %v245
    %s250 = scalar_lea.vmem [#allocation2], 184
    %v251 = vld [vmem:[%s250] sm:%s114]
    %s252 = sshllo.u32 0, 1
    %s253 = smul.addr 1, 23
    %s254 = scalar_lea.vmem [#allocation0], %s253
    %255 = vst [vmem:[%s254] sm:%s252] %v251
    %s256 = scalar_lea.vmem [#allocation2], 192
    %v257 = vld [vmem:[%s256] sm:%s114]
    %s258 = sshllo.u32 0, 1
    %s259 = smul.addr 1, 24
    %s260 = scalar_lea.vmem [#allocation0], %s259
    %261 = vst [vmem:[%s260] sm:%s258] %v257
    %s262 = scalar_lea.vmem [#allocation2], 200
    %v263 = vld [vmem:[%s262] sm:%s114]
    %s264 = sshllo.u32 0, 1
    %s265 = smul.addr 1, 25
    %s266 = scalar_lea.vmem [#allocation0], %s265
    %267 = vst [vmem:[%s266] sm:%s264] %v263
    %s268 = scalar_lea.vmem [#allocation2], 208
    %v269 = vld [vmem:[%s268] sm:%s114]
    %s270 = sshllo.u32 0, 1
    %s271 = smul.addr 1, 26
    %s272 = scalar_lea.vmem [#allocation0], %s271
    %273 = vst [vmem:[%s272] sm:%s270] %v269
    %s274 = scalar_lea.vmem [#allocation2], 216
    %v275 = vld [vmem:[%s274] sm:%s114]
    %s276 = sshllo.u32 0, 1
    %s277 = smul.addr 1, 27
    %s278 = scalar_lea.vmem [#allocation0], %s277
    %279 = vst [vmem:[%s278] sm:%s276] %v275
    %s281 = ssub.s32 448, 448
    %282 = vsyncadd [#allocation1], %s281
    %s284 = sshll.u32 [#allocation0], 4
    %s285 = int_to_ptr.vmem [resolvable:$true] %s284
    %287 = dma.vmem_to_hbm [thread:$0]  %s285, 448, %s1, [#allocation1]
    %288 = dma.done [#allocation1], 448
    %289 = vsyncpa [#allocation1], 1

// kernel: ponnet_forward.3
$region0: #{ponnet_forward.3}
  #allocation0 [shape = 'u32[]', space=smem, size = 0x4, offset = 0x4, fixed_abs, tag = 'smem constant byte address 0x4 - core index']
  #allocation1 [shape = 'u32[144,128]{1,0:T(1,128)}', space=vmem, size = 0x12000, scoped, tag = 'internal scratch']
  %s0 = inlined_call_operand.vmem [shape: bf16[2,2,512], index: 0, kind: input, shape index: {}]
  %s1 = inlined_call_operand.vmem [shape: bf16[2,512,256], index: 1, kind: input, shape index: {}]
  %s2 = inlined_call_operand.vmem [shape: bf16[256,512], index: 2, kind: input, shape index: {}]
  %s3 = inlined_call_operand.vmem [shape: bf16[256,256], index: 3, kind: input, shape index: {}]
  %s4 = inlined_call_operand.vmem [shape: f32[256,2], index: 4, kind: input, shape index: {}]
  %s5 = inlined_call_operand.vmem [shape: f32[5,512], index: 5, kind: input, shape index: {}]
  %s6 = inlined_call_operand.hbm [shape: f32[2,2], index: 6, kind: output, shape index: {}]
  %s7 = sld [smem:[#allocation0]]
  $region34: #{ponnet_forward.3} parent=0
    _
  %s9 = ssub.s32 1, %s7
  %s10 = scalar_select 0, %s9, %s7
  $region1: #{ponnet_forward.3} parent=0
    #allocation2 [shape = 'u8[1024]{0}', space=vmem, size = 0x400, scoped, tag = 'output window, operand 0, single buffered']
    #allocation3 [shape = 's32[1]{0}', space=sflag, size = 0x4, scoped, tag = 'scoped memory for ponnet_forward.3']
    %11 = vsyncpa [#allocation3], 0
    // Predicated region
    $region2: #{ponnet_forward.3} parent=1 // pred_check
      _
    $region3: #{ponnet_forward.3} parent=1 // pred_check_branch
      %13 = sbr.rel (0) target = $region5
    $region4: #{ponnet_forward.3} parent=1 // pred_region
      _
    $region5: #{ponnet_forward.3} parent=1 // pred_fallthru
      _
    // Predicated region
    $region6: #{ponnet_forward.3} parent=1 // pred_check
      _
    $region7: #{ponnet_forward.3} parent=1 // pred_check_branch
      %15 = sbr.rel (0) target = $region9
    $region8: #{ponnet_forward.3} parent=1 // pred_region
      _
    $region9: #{ponnet_forward.3} parent=1 // pred_fallthru
      _
    // Predicated region
    $region10: #{ponnet_forward.3} parent=1 // pred_check
      _
    $region11: #{ponnet_forward.3} parent=1 // pred_check_branch
      %17 = sbr.rel (0) target = $region13
    $region12: #{ponnet_forward.3} parent=1 // pred_region
      _
    $region13: #{ponnet_forward.3} parent=1 // pred_fallthru
      _
    // Predicated region
    $region14: #{ponnet_forward.3} parent=1 // pred_check
      _
    $region15: #{ponnet_forward.3} parent=1 // pred_check_branch
      %19 = sbr.rel (0) target = $region17
    $region16: #{ponnet_forward.3} parent=1 // pred_region
      _
    $region17: #{ponnet_forward.3} parent=1 // pred_fallthru
      _
    // Predicated region
    $region18: #{ponnet_forward.3} parent=1 // pred_check
      _
    $region19: #{ponnet_forward.3} parent=1 // pred_check_branch
      %21 = sbr.rel (0) target = $region21
    $region20: #{ponnet_forward.3} parent=1 // pred_region
      _
    $region21: #{ponnet_forward.3} parent=1 // pred_fallthru
      _
    // Predicated region
    $region22: #{ponnet_forward.3} parent=1 // pred_check
      _
    $region23: #{ponnet_forward.3} parent=1 // pred_check_branch
      %23 = sbr.rel (0) target = $region25
    $region24: #{ponnet_forward.3} parent=1 // pred_region
      _
    $region25: #{ponnet_forward.3} parent=1 // pred_fallthru
      _
    %v24 = vld [vmem:[%s0] sm:$0xf]
    %v25 = vld [vmem:[%s1] sm:$0xff]
    %v26 = vld [vmem:[%s1 + $0x8] sm:$0xff]
    %v27 = vld [vmem:[%s1 + $0x10] sm:$0xff]
    %v28 = vld [vmem:[%s1 + $0x18] sm:$0xff]
    %v29 = vld [vmem:[%s1 + $0x20] sm:$0xff]
    %v30 = vld [vmem:[%s1 + $0x28] sm:$0xff]
    %v31 = vld [vmem:[%s1 + $0x30] sm:$0xff]
    %v32 = vld [vmem:[%s1 + $0x38] sm:$0xff]
    %v33 = vld [vmem:[%s1 + $0x40] sm:$0xff]
    %v34 = vld [vmem:[%s1 + $0x48] sm:$0xff]
    %v35 = vld [vmem:[%s1 + $0x50] sm:$0xff]
    %v36 = vld [vmem:[%s1 + $0x58] sm:$0xff]
    %v37 = vld [vmem:[%s1 + $0x60] sm:$0xff]
    %v38 = vld [vmem:[%s1 + $0x68] sm:$0xff]
    %v39 = vld [vmem:[%s1 + $0x70] sm:$0xff]
    %v40 = vld [vmem:[%s1 + $0x78] sm:$0xff]
    %v41 = vld [vmem:[%s1 + $0x80] sm:$0xff]
    %v42 = vld [vmem:[%s1 + $0x88] sm:$0xff]
    %v43 = vld [vmem:[%s1 + $0x90] sm:$0xff]
    %v44 = vld [vmem:[%s1 + $0x98] sm:$0xff]
    %v45 = vld [vmem:[%s1 + $0xa0] sm:$0xff]
    %v46 = vld [vmem:[%s1 + $0xa8] sm:$0xff]
    %v47 = vld [vmem:[%s1 + $0xb0] sm:$0xff]
    %v48 = vld [vmem:[%s1 + $0xb8] sm:$0xff]
    %v49 = vld [vmem:[%s1 + $0xc0] sm:$0xff]
    %v50 = vld [vmem:[%s1 + $0xc8] sm:$0xff]
    %v51 = vld [vmem:[%s1 + $0xd0] sm:$0xff]
    %v52 = vld [vmem:[%s1 + $0xd8] sm:$0xff]
    %v53 = vld [vmem:[%s1 + $0xe0] sm:$0xff]
    %v54 = vld [vmem:[%s1 + $0xe8] sm:$0xff]
    %v55 = vld [vmem:[%s1 + $0xf0] sm:$0xff]
    %v56 = vld [vmem:[%s1 + $0xf8] sm:$0xff]
    %v57 = vld [vmem:[%s1 + $0x100] sm:$0xff]
    %v58 = vld [vmem:[%s1 + $0x108] sm:$0xff]
    %v59 = vld [vmem:[%s1 + $0x110] sm:$0xff]
    %v60 = vld [vmem:[%s1 + $0x118] sm:$0xff]
    %v61 = vld [vmem:[%s1 + $0x120] sm:$0xff]
    %v62 = vld [vmem:[%s1 + $0x128] sm:$0xff]
    %v63 = vld [vmem:[%s1 + $0x130] sm:$0xff]
    %v64 = vld [vmem:[%s1 + $0x138] sm:$0xff]
    %v65 = vld [vmem:[%s1 + $0x140] sm:$0xff]
    %v66 = vld [vmem:[%s1 + $0x148] sm:$0xff]
    %v67 = vld [vmem:[%s1 + $0x150] sm:$0xff]
    %v68 = vld [vmem:[%s1 + $0x158] sm:$0xff]
    %v69 = vld [vmem:[%s1 + $0x160] sm:$0xff]
    %v70 = vld [vmem:[%s1 + $0x168] sm:$0xff]
    %v71 = vld [vmem:[%s1 + $0x170] sm:$0xff]
    %v72 = vld [vmem:[%s1 + $0x178] sm:$0xff]
    %v73 = vld [vmem:[%s1 + $0x180] sm:$0xff]
    %v74 = vld [vmem:[%s1 + $0x188] sm:$0xff]
    %v75 = vld [vmem:[%s1 + $0x190] sm:$0xff]
    %v76 = vld [vmem:[%s1 + $0x198] sm:$0xff]
    %v77 = vld [vmem:[%s1 + $0x1a0] sm:$0xff]
    %v78 = vld [vmem:[%s1 + $0x1a8] sm:$0xff]
    %v79 = vld [vmem:[%s1 + $0x1b0] sm:$0xff]
    %v80 = vld [vmem:[%s1 + $0x1b8] sm:$0xff]
    %v81 = vld [vmem:[%s1 + $0x1c0] sm:$0xff]
    %v82 = vld [vmem:[%s1 + $0x1c8] sm:$0xff]
    %v83 = vld [vmem:[%s1 + $0x1d0] sm:$0xff]
    %v84 = vld [vmem:[%s1 + $0x1d8] sm:$0xff]
    %v85 = vld [vmem:[%s1 + $0x1e0] sm:$0xff]
    %v86 = vld [vmem:[%s1 + $0x1e8] sm:$0xff]
    %v87 = vld [vmem:[%s1 + $0x1f0] sm:$0xff]
    %v88 = vld [vmem:[%s1 + $0x1f8] sm:$0xff]
    %v89 = vld [vmem:[%s5] ss:$8 sm:$0x3]
    %v91 = vlaneseq
    %v92 = vshrl.u32 %v91, 7
    %v93 = vsub.s32 0, %v92
    %v94 = vrot.slane %v89, %v93
    %v95 = vlaneseq
    %v96 = vshrl.u32 %v95, 7
    %v97 = vsub.s32 1, %v96
    %v98 = vrot.slane %v89, %v97
    %v103 = vunpack.c.l.s4 1966171168
    %v104 = vunpack.c.0.s8 %v103
    %v105 = vlaneseq
    %v106 = vshrl.u32 %v105, 7
    %v107 = vsub.s32 %v104, %v106
    %v108 = vrot.slane %v24, %v107
    %v109 = vcombine.high %v108, %v108
    %v111 = vunpack.c.l.s4 1966171168
    %v112 = vunpack.c.0.s8 %v111
    %v113 = vlaneseq
    %v114 = vshrl.u32 %v113, 7
    %v115 = vsub.s32 %v112, %v114
    %v116 = vrot.slane %v108, %v115
    %v118 = vunpack.c.l.s4 1966171168
    %v119 = vunpack.c.0.s8 %v118
    %v120 = vlaneseq
    %v121 = vshrl.u32 %v120, 7
    %v122 = vsub.s32 %v119, %v121
    %v123 = vrot.slane %v109, %v122
    %v124 = vcombine.high %v116, %v116
    %v125 = vcombine.high %v123, %v123
    %v194 = vunpack.c.l.b16 %v25
    %v195 = vunpack.c.h.b16 %v25
    %v196 = vunpack.c.l.b16 %v26
    %v197 = vunpack.c.h.b16 %v26
    %v198 = vunpack.c.l.b16 %v27
    %v199 = vunpack.c.h.b16 %v27
    %v200 = vunpack.c.l.b16 %v28
    %v201 = vunpack.c.h.b16 %v28
    %v202 = vunpack.c.l.b16 %v29
    %v203 = vunpack.c.h.b16 %v29
    %v204 = vunpack.c.l.b16 %v30
    %v205 = vunpack.c.h.b16 %v30
    %v206 = vunpack.c.l.b16 %v31
    %v207 = vunpack.c.h.b16 %v31
    %v208 = vunpack.c.l.b16 %v32
    %v209 = vunpack.c.h.b16 %v32
    %v210 = vunpack.c.l.b16 %v33
    %v211 = vunpack.c.h.b16 %v33
    %v212 = vunpack.c.l.b16 %v34
    %v213 = vunpack.c.h.b16 %v34
    %v214 = vunpack.c.l.b16 %v35
    %v215 = vunpack.c.h.b16 %v35
    %v216 = vunpack.c.l.b16 %v36
    %v217 = vunpack.c.h.b16 %v36
    %v218 = vunpack.c.l.b16 %v37
    %v219 = vunpack.c.h.b16 %v37
    %v220 = vunpack.c.l.b16 %v38
    %v221 = vunpack.c.h.b16 %v38
    %v222 = vunpack.c.l.b16 %v39
    %v223 = vunpack.c.h.b16 %v39
    %v224 = vunpack.c.l.b16 %v40
    %v225 = vunpack.c.h.b16 %v40
    %v226 = vunpack.c.l.b16 %v41
    %v227 = vunpack.c.h.b16 %v41
    %v228 = vunpack.c.l.b16 %v42
    %v229 = vunpack.c.h.b16 %v42
    %v230 = vunpack.c.l.b16 %v43
    %v231 = vunpack.c.h.b16 %v43
    %v232 = vunpack.c.l.b16 %v44
    %v233 = vunpack.c.h.b16 %v44
    %v234 = vunpack.c.l.b16 %v45
    %v235 = vunpack.c.h.b16 %v45
    %v236 = vunpack.c.l.b16 %v46
    %v237 = vunpack.c.h.b16 %v46
    %v238 = vunpack.c.l.b16 %v47
    %v239 = vunpack.c.h.b16 %v47
    %v240 = vunpack.c.l.b16 %v48
    %v241 = vunpack.c.h.b16 %v48
    %v242 = vunpack.c.l.b16 %v49
    %v243 = vunpack.c.h.b16 %v49
    %v244 = vunpack.c.l.b16 %v50
    %v245 = vunpack.c.h.b16 %v50
    %v246 = vunpack.c.l.b16 %v51
    %v247 = vunpack.c.h.b16 %v51
    %v248 = vunpack.c.l.b16 %v52
    %v249 = vunpack.c.h.b16 %v52
    %v250 = vunpack.c.l.b16 %v53
    %v251 = vunpack.c.h.b16 %v53
    %v252 = vunpack.c.l.b16 %v54
    %v253 = vunpack.c.h.b16 %v54
    %v254 = vunpack.c.l.b16 %v55
    %v255 = vunpack.c.h.b16 %v55
    %v256 = vunpack.c.l.b16 %v56
    %v257 = vunpack.c.h.b16 %v56
    %v258 = vunpack.c.l.b16 %v57
    %v259 = vunpack.c.h.b16 %v57
    %v260 = vunpack.c.l.b16 %v58
    %v261 = vunpack.c.h.b16 %v58
    %v262 = vunpack.c.l.b16 %v59
    %v263 = vunpack.c.h.b16 %v59
    %v264 = vunpack.c.l.b16 %v60
    %v265 = vunpack.c.h.b16 %v60
    %v266 = vunpack.c.l.b16 %v61
    %v267 = vunpack.c.h.b16 %v61
    %v268 = vunpack.c.l.b16 %v62
    %v269 = vunpack.c.h.b16 %v62
    %v270 = vunpack.c.l.b16 %v63
    %v271 = vunpack.c.h.b16 %v63
    %v272 = vunpack.c.l.b16 %v64
    %v273 = vunpack.c.h.b16 %v64
    %v274 = vunpack.c.l.b16 %v65
    %v275 = vunpack.c.h.b16 %v65
    %v276 = vunpack.c.l.b16 %v66
    %v277 = vunpack.c.h.b16 %v66
    %v278 = vunpack.c.l.b16 %v67
    %v279 = vunpack.c.h.b16 %v67
    %v280 = vunpack.c.l.b16 %v68
    %v281 = vunpack.c.h.b16 %v68
    %v282 = vunpack.c.l.b16 %v69
    %v283 = vunpack.c.h.b16 %v69
    %v284 = vunpack.c.l.b16 %v70
    %v285 = vunpack.c.h.b16 %v70
    %v286 = vunpack.c.l.b16 %v71
    %v287 = vunpack.c.h.b16 %v71
    %v288 = vunpack.c.l.b16 %v72
    %v289 = vunpack.c.h.b16 %v72
    %v290 = vunpack.c.l.b16 %v73
    %v291 = vunpack.c.h.b16 %v73
    %v292 = vunpack.c.l.b16 %v74
    %v293 = vunpack.c.h.b16 %v74
    %v294 = vunpack.c.l.b16 %v75
    %v295 = vunpack.c.h.b16 %v75
    %v296 = vunpack.c.l.b16 %v76
    %v297 = vunpack.c.h.b16 %v76
    %v298 = vunpack.c.l.b16 %v77
    %v299 = vunpack.c.h.b16 %v77
    %v300 = vunpack.c.l.b16 %v78
    %v301 = vunpack.c.h.b16 %v78
    %v302 = vunpack.c.l.b16 %v79
    %v303 = vunpack.c.h.b16 %v79
    %v304 = vunpack.c.l.b16 %v80
    %v305 = vunpack.c.h.b16 %v80
    %v306 = vunpack.c.l.b16 %v81
    %v307 = vunpack.c.h.b16 %v81
    %v308 = vunpack.c.l.b16 %v82
    %v309 = vunpack.c.h.b16 %v82
    %v310 = vunpack.c.l.b16 %v83
    %v311 = vunpack.c.h.b16 %v83
    %v312 = vunpack.c.l.b16 %v84
    %v313 = vunpack.c.h.b16 %v84
    %v314 = vunpack.c.l.b16 %v85
    %v315 = vunpack.c.h.b16 %v85
    %v316 = vunpack.c.l.b16 %v86
    %v317 = vunpack.c.h.b16 %v86
    %v318 = vunpack.c.l.b16 %v87
    %v319 = vunpack.c.h.b16 %v87
    %v320 = vunpack.c.l.b16 %v88
    %v321 = vunpack.c.h.b16 %v88
    %v322 = vpack.c.b16 %v196, %v194
    %v323 = vpack.c.b16 %v197, %v195
    %v324 = vpack.c.b16 %v200, %v198
    %v325 = vpack.c.b16 %v201, %v199
    %v326 = vpack.c.b16 %v204, %v202
    %v327 = vpack.c.b16 %v205, %v203
    %v328 = vpack.c.b16 %v208, %v206
    %v329 = vpack.c.b16 %v209, %v207
    %v330 = vpack.c.b16 %v212, %v210
    %v331 = vpack.c.b16 %v213, %v211
    %v332 = vpack.c.b16 %v216, %v214
    %v333 = vpack.c.b16 %v217, %v215
    %v334 = vpack.c.b16 %v220, %v218
    %v335 = vpack.c.b16 %v221, %v219
    %v336 = vpack.c.b16 %v224, %v222
    %v337 = vpack.c.b16 %v225, %v223
    %v338 = vpack.c.b16 %v228, %v226
    %v339 = vpack.c.b16 %v229, %v227
    %v340 = vpack.c.b16 %v232, %v230
    %v341 = vpack.c.b16 %v233, %v231
    %v342 = vpack.c.b16 %v236, %v234
    %v343 = vpack.c.b16 %v237, %v235
    %v344 = vpack.c.b16 %v240, %v238
    %v345 = vpack.c.b16 %v241, %v239
    %v346 = vpack.c.b16 %v244, %v242
    %v347 = vpack.c.b16 %v245, %v243
    %v348 = vpack.c.b16 %v248, %v246
    %v349 = vpack.c.b16 %v249, %v247
    %v350 = vpack.c.b16 %v252, %v250
    %v351 = vpack.c.b16 %v253, %v251
    %v352 = vpack.c.b16 %v256, %v254
    %v353 = vpack.c.b16 %v257, %v255
    %v354 = vpack.c.b16 %v260, %v258
    %v355 = vpack.c.b16 %v261, %v259
    %v356 = vpack.c.b16 %v264, %v262
    %v357 = vpack.c.b16 %v265, %v263
    %v358 = vpack.c.b16 %v268, %v266
    %v359 = vpack.c.b16 %v269, %v267
    %v360 = vpack.c.b16 %v272, %v270
    %v361 = vpack.c.b16 %v273, %v271
    %v362 = vpack.c.b16 %v276, %v274
    %v363 = vpack.c.b16 %v277, %v275
    %v364 = vpack.c.b16 %v280, %v278
    %v365 = vpack.c.b16 %v281, %v279
    %v366 = vpack.c.b16 %v284, %v282
    %v367 = vpack.c.b16 %v285, %v283
    %v368 = vpack.c.b16 %v288, %v286
    %v369 = vpack.c.b16 %v289, %v287
    %v370 = vpack.c.b16 %v292, %v290
    %v371 = vpack.c.b16 %v293, %v291
    %v372 = vpack.c.b16 %v296, %v294
    %v373 = vpack.c.b16 %v297, %v295
    %v374 = vpack.c.b16 %v300, %v298
    %v375 = vpack.c.b16 %v301, %v299
    %v376 = vpack.c.b16 %v304, %v302
    %v377 = vpack.c.b16 %v305, %v303
    %v378 = vpack.c.b16 %v308, %v306
    %v379 = vpack.c.b16 %v309, %v307
    %v380 = vpack.c.b16 %v312, %v310
    %v381 = vpack.c.b16 %v313, %v311
    %v382 = vpack.c.b16 %v316, %v314
    %v383 = vpack.c.b16 %v317, %v315
    %v384 = vpack.c.b16 %v320, %v318
    %v385 = vpack.c.b16 %v321, %v319
    %450 = vmatprep.subr.bf16.mxu0 %v323
    %451 = vmatpush1.bf16.msra.mxu0 %v322
    %452 = vmatprep.subr.bf16.mxu0 %v325
    %453 = vmatpush1.bf16.msra.mxu0 %v324
    %454 = vmatprep.subr.bf16.mxu0 %v327
    %455 = vmatpush1.bf16.msra.mxu0 %v326
    %456 = vmatprep.subr.bf16.mxu0 %v329
    %457 = vmatpush1.bf16.msra.mxu0 %v328
    %458 = vmatprep.subr.bf16.mxu0 %v331
    %459 = vmatpush1.bf16.msra.mxu0 %v330
    %460 = vmatprep.subr.bf16.mxu0 %v333
    %461 = vmatpush1.bf16.msra.mxu0 %v332
    %462 = vmatprep.subr.bf16.mxu0 %v335
    %463 = vmatpush1.bf16.msra.mxu0 %v334
    %464 = vmatprep.subr.bf16.mxu0 %v337
    %465 = vmatpush1.bf16.msra.mxu0 %v336
    %466 = vmatprep.subr.bf16.mxu0 %v339
    %467 = vmatpush1.bf16.msra.mxu0 %v338
    %468 = vmatprep.subr.bf16.mxu0 %v341
    %469 = vmatpush1.bf16.msra.mxu0 %v340
    %470 = vmatprep.subr.bf16.mxu0 %v343
    %471 = vmatpush1.bf16.msra.mxu0 %v342
    %472 = vmatprep.subr.bf16.mxu0 %v345
    %473 = vmatpush1.bf16.msra.mxu0 %v344
    %474 = vmatprep.subr.bf16.mxu0 %v347
    %475 = vmatpush1.bf16.msra.mxu0 %v346
    %476 = vmatprep.subr.bf16.mxu0 %v349
    %477 = vmatpush1.bf16.msra.mxu0 %v348
    %478 = vmatprep.subr.bf16.mxu0 %v351
    %479 = vmatpush1.bf16.msra.mxu0 %v350
    %480 = vmatprep.subr.bf16.mxu0 %v353
    %481 = vmatpush1.bf16.msra.mxu0 %v352
    %482 = vmatprep.mubr.bf16.mxu0 %v123
    %483 = vmatmul.mubr.bf16.gmra.mrb[0].mxu0 %v116
    %v484 = vpop.f32.mrb[0].mxu0
    %v485 = vadd.f32 %v94, %v484
    %v486 = vpop.f32.mrb[0].mxu0
    %v487 = vadd.f32 %v98, %v486
    %v488 = vpop.f32.mrb[0].mxu0
    %v489 = vpop.f32.mrb[0].mxu0
    %490 = vdwg.mxu0
    %491 = vmatprep.subr.bf16.mxu0 %v355
    %492 = vmatpush1.bf16.msra.mxu0 %v354
    %493 = vmatprep.subr.bf16.mxu0 %v357
    %494 = vmatpush1.bf16.msra.mxu0 %v356
    %495 = vmatprep.subr.bf16.mxu0 %v359
    %496 = vmatpush1.bf16.msra.mxu0 %v358
    %497 = vmatprep.subr.bf16.mxu0 %v361
    %498 = vmatpush1.bf16.msra.mxu0 %v360
    %499 = vmatprep.subr.bf16.mxu0 %v363
    %500 = vmatpush1.bf16.msra.mxu0 %v362
    %501 = vmatprep.subr.bf16.mxu0 %v365
    %502 = vmatpush1.bf16.msra.mxu0 %v364
    %503 = vmatprep.subr.bf16.mxu0 %v367
    %504 = vmatpush1.bf16.msra.mxu0 %v366
    %505 = vmatprep.subr.bf16.mxu0 %v369
    %506 = vmatpush1.bf16.msra.mxu0 %v368
    %507 = vmatprep.subr.bf16.mxu0 %v371
    %508 = vmatpush1.bf16.msra.mxu0 %v370
    %509 = vmatprep.subr.bf16.mxu0 %v373
    %510 = vmatpush1.bf16.msra.mxu0 %v372
    %511 = vmatprep.subr.bf16.mxu0 %v375
    %512 = vmatpush1.bf16.msra.mxu0 %v374
    %513 = vmatprep.subr.bf16.mxu0 %v377
    %514 = vmatpush1.bf16.msra.mxu0 %v376
    %515 = vmatprep.subr.bf16.mxu0 %v379
    %516 = vmatpush1.bf16.msra.mxu0 %v378
    %517 = vmatprep.subr.bf16.mxu0 %v381
    %518 = vmatpush1.bf16.msra.mxu0 %v380
    %519 = vmatprep.subr.bf16.mxu0 %v383
    %520 = vmatpush1.bf16.msra.mxu0 %v382
    %521 = vmatprep.subr.bf16.mxu0 %v385
    %522 = vmatpush1.bf16.msra.mxu0 %v384
    %523 = vmatprep.mubr.bf16.mxu0 %v125
    %524 = vmatmul.mubr.bf16.gmra.mrb[0].mxu0 %v124
    %v525 = vpop.f32.mrb[0].mxu0
    %v526 = vadd.f32 %v485, %v525
    %v527 = vpop.f32.mrb[0].mxu0
    %v528 = vadd.f32 %v487, %v527
    %v529 = vpop.f32.mrb[0].mxu0
    %v530 = vpop.f32.mrb[0].mxu0
    %531 = vdwg.mxu0
    %s532 = scalar_lea.vmem %s0, 4
    %v533 = vld [vmem:[%s532] sm:$0xf]
    %s534 = scalar_lea.vmem %s1, 512
    %v535 = vld [vmem:[%s534] sm:$0xff]
    %v536 = vld [vmem:[%s534 + $0x8] sm:$0xff]
    %v537 = vld [vmem:[%s534 + $0x10] sm:$0xff]
    %v538 = vld [vmem:[%s534 + $0x18] sm:$0xff]
    %v539 = vld [vmem:[%s534 + $0x20] sm:$0xff]
    %v540 = vld [vmem:[%s534 + $0x28] sm:$0xff]
    %v541 = vld [vmem:[%s534 + $0x30] sm:$0xff]
    %v542 = vld [vmem:[%s534 + $0x38] sm:$0xff]
    %v543 = vld [vmem:[%s534 + $0x40] sm:$0xff]
    %v544 = vld [vmem:[%s534 + $0x48] sm:$0xff]
    %v545 = vld [vmem:[%s534 + $0x50] sm:$0xff]
    %v546 = vld [vmem:[%s534 + $0x58] sm:$0xff]
    %v547 = vld [vmem:[%s534 + $0x60] sm:$0xff]
    %v548 = vld [vmem:[%s534 + $0x68] sm:$0xff]
    %v549 = vld [vmem:[%s534 + $0x70] sm:$0xff]
    %v550 = vld [vmem:[%s534 + $0x78] sm:$0xff]
    %v551 = vld [vmem:[%s534 + $0x80] sm:$0xff]
    %v552 = vld [vmem:[%s534 + $0x88] sm:$0xff]
    %v553 = vld [vmem:[%s534 + $0x90] sm:$0xff]
    %v554 = vld [vmem:[%s534 + $0x98] sm:$0xff]
    %v555 = vld [vmem:[%s534 + $0xa0] sm:$0xff]
    %v556 = vld [vmem:[%s534 + $0xa8] sm:$0xff]
    %v557 = vld [vmem:[%s534 + $0xb0] sm:$0xff]
    %v558 = vld [vmem:[%s534 + $0xb8] sm:$0xff]
    %v559 = vld [vmem:[%s534 + $0xc0] sm:$0xff]
    %v560 = vld [vmem:[%s534 + $0xc8] sm:$0xff]
    %v561 = vld [vmem:[%s534 + $0xd0] sm:$0xff]
    %v562 = vld [vmem:[%s534 + $0xd8] sm:$0xff]
    %v563 = vld [vmem:[%s534 + $0xe0] sm:$0xff]
    %v564 = vld [vmem:[%s534 + $0xe8] sm:$0xff]
    %v565 = vld [vmem:[%s534 + $0xf0] sm:$0xff]
    %v566 = vld [vmem:[%s534 + $0xf8] sm:$0xff]
    %v567 = vld [vmem:[%s534 + $0x100] sm:$0xff]
    %v568 = vld [vmem:[%s534 + $0x108] sm:$0xff]
    %v569 = vld [vmem:[%s534 + $0x110] sm:$0xff]
    %v570 = vld [vmem:[%s534 + $0x118] sm:$0xff]
    %v571 = vld [vmem:[%s534 + $0x120] sm:$0xff]
    %v572 = vld [vmem:[%s534 + $0x128] sm:$0xff]
    %v573 = vld [vmem:[%s534 + $0x130] sm:$0xff]
    %v574 = vld [vmem:[%s534 + $0x138] sm:$0xff]
    %v575 = vld [vmem:[%s534 + $0x140] sm:$0xff]
    %v576 = vld [vmem:[%s534 + $0x148] sm:$0xff]
    %v577 = vld [vmem:[%s534 + $0x150] sm:$0xff]
    %v578 = vld [vmem:[%s534 + $0x158] sm:$0xff]
    %v579 = vld [vmem:[%s534 + $0x160] sm:$0xff]
    %v580 = vld [vmem:[%s534 + $0x168] sm:$0xff]
    %v581 = vld [vmem:[%s534 + $0x170] sm:$0xff]
    %v582 = vld [vmem:[%s534 + $0x178] sm:$0xff]
    %v583 = vld [vmem:[%s534 + $0x180] sm:$0xff]
    %v584 = vld [vmem:[%s534 + $0x188] sm:$0xff]
    %v585 = vld [vmem:[%s534 + $0x190] sm:$0xff]
    %v586 = vld [vmem:[%s534 + $0x198] sm:$0xff]
    %v587 = vld [vmem:[%s534 + $0x1a0] sm:$0xff]
    %v588 = vld [vmem:[%s534 + $0x1a8] sm:$0xff]
    %v589 = vld [vmem:[%s534 + $0x1b0] sm:$0xff]
    %v590 = vld [vmem:[%s534 + $0x1b8] sm:$0xff]
    %v591 = vld [vmem:[%s534 + $0x1c0] sm:$0xff]
    %v592 = vld [vmem:[%s534 + $0x1c8] sm:$0xff]
    %v593 = vld [vmem:[%s534 + $0x1d0] sm:$0xff]
    %v594 = vld [vmem:[%s534 + $0x1d8] sm:$0xff]
    %v595 = vld [vmem:[%s534 + $0x1e0] sm:$0xff]
    %v596 = vld [vmem:[%s534 + $0x1e8] sm:$0xff]
    %v597 = vld [vmem:[%s534 + $0x1f0] sm:$0xff]
    %v598 = vld [vmem:[%s534 + $0x1f8] sm:$0xff]
    %s599 = scalar_lea.vmem %s5, 16
    %v600 = vld [vmem:[%s599] ss:$8 sm:$0x3]
    %v602 = vlaneseq
    %v603 = vshrl.u32 %v602, 7
    %v604 = vsub.s32 0, %v603
    %v605 = vrot.slane %v600, %v604
    %v606 = vlaneseq
    %v607 = vshrl.u32 %v606, 7
    %v608 = vsub.s32 1, %v607
    %v609 = vrot.slane %v600, %v608
    %v614 = vunpack.c.l.s4 1966171168
    %v615 = vunpack.c.0.s8 %v614
    %v616 = vlaneseq
    %v617 = vshrl.u32 %v616, 7
    %v618 = vsub.s32 %v615, %v617
    %v619 = vrot.slane %v533, %v618
    %v620 = vcombine.high %v619, %v619
    %v622 = vunpack.c.l.s4 1966171168
    %v623 = vunpack.c.0.s8 %v622
    %v624 = vlaneseq
    %v625 = vshrl.u32 %v624, 7
    %v626 = vsub.s32 %v623, %v625
    %v627 = vrot.slane %v619, %v626
    %v629 = vunpack.c.l.s4 1966171168
    %v630 = vunpack.c.0.s8 %v629
    %v631 = vlaneseq
    %v632 = vshrl.u32 %v631, 7
    %v633 = vsub.s32 %v630, %v632
    %v634 = vrot.slane %v620, %v633
    %v635 = vcombine.high %v627, %v627
    %v636 = vcombine.high %v634, %v634
    %v705 = vunpack.c.l.b16 %v535
    %v706 = vunpack.c.h.b16 %v535
    %v707 = vunpack.c.l.b16 %v536
    %v708 = vunpack.c.h.b16 %v536
    %v709 = vunpack.c.l.b16 %v537
    %v710 = vunpack.c.h.b16 %v537
    %v711 = vunpack.c.l.b16 %v538
    %v712 = vunpack.c.h.b16 %v538
    %v713 = vunpack.c.l.b16 %v539
    %v714 = vunpack.c.h.b16 %v539
    %v715 = vunpack.c.l.b16 %v540
    %v716 = vunpack.c.h.b16 %v540
    %v717 = vunpack.c.l.b16 %v541
    %v718 = vunpack.c.h.b16 %v541
    %v719 = vunpack.c.l.b16 %v542
    %v720 = vunpack.c.h.b16 %v542
    %v721 = vunpack.c.l.b16 %v543
    %v722 = vunpack.c.h.b16 %v543
    %v723 = vunpack.c.l.b16 %v544
    %v724 = vunpack.c.h.b16 %v544
    %v725 = vunpack.c.l.b16 %v545
    %v726 = vunpack.c.h.b16 %v545
    %v727 = vunpack.c.l.b16 %v546
    %v728 = vunpack.c.h.b16 %v546
    %v729 = vunpack.c.l.b16 %v547
    %v730 = vunpack.c.h.b16 %v547
    %v731 = vunpack.c.l.b16 %v548
    %v732 = vunpack.c.h.b16 %v548
    %v733 = vunpack.c.l.b16 %v549
    %v734 = vunpack.c.h.b16 %v549
    %v735 = vunpack.c.l.b16 %v550
    %v736 = vunpack.c.h.b16 %v550
    %v737 = vunpack.c.l.b16 %v551
    %v738 = vunpack.c.h.b16 %v551
    %v739 = vunpack.c.l.b16 %v552
    %v740 = vunpack.c.h.b16 %v552
    %v741 = vunpack.c.l.b16 %v553
    %v742 = vunpack.c.h.b16 %v553
    %v743 = vunpack.c.l.b16 %v554
    %v744 = vunpack.c.h.b16 %v554
    %v745 = vunpack.c.l.b16 %v555
    %v746 = vunpack.c.h.b16 %v555
    %v747 = vunpack.c.l.b16 %v556
    %v748 = vunpack.c.h.b16 %v556
    %v749 = vunpack.c.l.b16 %v557
    %v750 = vunpack.c.h.b16 %v557
    %v751 = vunpack.c.l.b16 %v558
    %v752 = vunpack.c.h.b16 %v558
    %v753 = vunpack.c.l.b16 %v559
    %v754 = vunpack.c.h.b16 %v559
    %v755 = vunpack.c.l.b16 %v560
    %v756 = vunpack.c.h.b16 %v560
    %v757 = vunpack.c.l.b16 %v561
    %v758 = vunpack.c.h.b16 %v561
    %v759 = vunpack.c.l.b16 %v562
    %v760 = vunpack.c.h.b16 %v562
    %v761 = vunpack.c.l.b16 %v563
    %v762 = vunpack.c.h.b16 %v563
    %v763 = vunpack.c.l.b16 %v564
    %v764 = vunpack.c.h.b16 %v564
    %v765 = vunpack.c.l.b16 %v565
    %v766 = vunpack.c.h.b16 %v565
    %v767 = vunpack.c.l.b16 %v566
    %v768 = vunpack.c.h.b16 %v566
    %v769 = vunpack.c.l.b16 %v567
    %v770 = vunpack.c.h.b16 %v567
    %v771 = vunpack.c.l.b16 %v568
    %v772 = vunpack.c.h.b16 %v568
    %v773 = vunpack.c.l.b16 %v569
    %v774 = vunpack.c.h.b16 %v569
    %v775 = vunpack.c.l.b16 %v570
    %v776 = vunpack.c.h.b16 %v570
    %v777 = vunpack.c.l.b16 %v571
    %v778 = vunpack.c.h.b16 %v571
    %v779 = vunpack.c.l.b16 %v572
    %v780 = vunpack.c.h.b16 %v572
    %v781 = vunpack.c.l.b16 %v573
    %v782 = vunpack.c.h.b16 %v573
    %v783 = vunpack.c.l.b16 %v574
    %v784 = vunpack.c.h.b16 %v574
    %v785 = vunpack.c.l.b16 %v575
    %v786 = vunpack.c.h.b16 %v575
    %v787 = vunpack.c.l.b16 %v576
    %v788 = vunpack.c.h.b16 %v576
    %v789 = vunpack.c.l.b16 %v577
    %v790 = vunpack.c.h.b16 %v577
    %v791 = vunpack.c.l.b16 %v578
    %v792 = vunpack.c.h.b16 %v578
    %v793 = vunpack.c.l.b16 %v579
    %v794 = vunpack.c.h.b16 %v579
    %v795 = vunpack.c.l.b16 %v580
    %v796 = vunpack.c.h.b16 %v580
    %v797 = vunpack.c.l.b16 %v581
    %v798 = vunpack.c.h.b16 %v581
    %v799 = vunpack.c.l.b16 %v582
    %v800 = vunpack.c.h.b16 %v582
    %v801 = vunpack.c.l.b16 %v583
    %v802 = vunpack.c.h.b16 %v583
    %v803 = vunpack.c.l.b16 %v584
    %v804 = vunpack.c.h.b16 %v584
    %v805 = vunpack.c.l.b16 %v585
    %v806 = vunpack.c.h.b16 %v585
    %v807 = vunpack.c.l.b16 %v586
    %v808 = vunpack.c.h.b16 %v586
    %v809 = vunpack.c.l.b16 %v587
    %v810 = vunpack.c.h.b16 %v587
    %v811 = vunpack.c.l.b16 %v588
    %v812 = vunpack.c.h.b16 %v588
    %v813 = vunpack.c.l.b16 %v589
    %v814 = vunpack.c.h.b16 %v589
    %v815 = vunpack.c.l.b16 %v590
    %v816 = vunpack.c.h.b16 %v590
    %v817 = vunpack.c.l.b16 %v591
    %v818 = vunpack.c.h.b16 %v591
    %v819 = vunpack.c.l.b16 %v592
    %v820 = vunpack.c.h.b16 %v592
    %v821 = vunpack.c.l.b16 %v593
    %v822 = vunpack.c.h.b16 %v593
    %v823 = vunpack.c.l.b16 %v594
    %v824 = vunpack.c.h.b16 %v594
    %v825 = vunpack.c.l.b16 %v595
    %v826 = vunpack.c.h.b16 %v595
    %v827 = vunpack.c.l.b16 %v596
    %v828 = vunpack.c.h.b16 %v596
    %v829 = vunpack.c.l.b16 %v597
    %v830 = vunpack.c.h.b16 %v597
    %v831 = vunpack.c.l.b16 %v598
    %v832 = vunpack.c.h.b16 %v598
    %v833 = vpack.c.b16 %v707, %v705
    %v834 = vpack.c.b16 %v708, %v706
    %v835 = vpack.c.b16 %v711, %v709
    %v836 = vpack.c.b16 %v712, %v710
    %v837 = vpack.c.b16 %v715, %v713
    %v838 = vpack.c.b16 %v716, %v714
    %v839 = vpack.c.b16 %v719, %v717
    %v840 = vpack.c.b16 %v720, %v718
    %v841 = vpack.c.b16 %v723, %v721
    %v842 = vpack.c.b16 %v724, %v722
    %v843 = vpack.c.b16 %v727, %v725
    %v844 = vpack.c.b16 %v728, %v726
    %v845 = vpack.c.b16 %v731, %v729
    %v846 = vpack.c.b16 %v732, %v730
    %v847 = vpack.c.b16 %v735, %v733
    %v848 = vpack.c.b16 %v736, %v734
    %v849 = vpack.c.b16 %v739, %v737
    %v850 = vpack.c.b16 %v740, %v738
    %v851 = vpack.c.b16 %v743, %v741
    %v852 = vpack.c.b16 %v744, %v742
    %v853 = vpack.c.b16 %v747, %v745
    %v854 = vpack.c.b16 %v748, %v746
    %v855 = vpack.c.b16 %v751, %v749
    %v856 = vpack.c.b16 %v752, %v750
    %v857 = vpack.c.b16 %v755, %v753
    %v858 = vpack.c.b16 %v756, %v754
    %v859 = vpack.c.b16 %v759, %v757
    %v860 = vpack.c.b16 %v760, %v758
    %v861 = vpack.c.b16 %v763, %v761
    %v862 = vpack.c.b16 %v764, %v762
    %v863 = vpack.c.b16 %v767, %v765
    %v864 = vpack.c.b16 %v768, %v766
    %v865 = vpack.c.b16 %v771, %v769
    %v866 = vpack.c.b16 %v772, %v770
    %v867 = vpack.c.b16 %v775, %v773
    %v868 = vpack.c.b16 %v776, %v774
    %v869 = vpack.c.b16 %v779, %v777
    %v870 = vpack.c.b16 %v780, %v778
    %v871 = vpack.c.b16 %v783, %v781
    %v872 = vpack.c.b16 %v784, %v782
    %v873 = vpack.c.b16 %v787, %v785
    %v874 = vpack.c.b16 %v788, %v786
    %v875 = vpack.c.b16 %v791, %v789
    %v876 = vpack.c.b16 %v792, %v790
    %v877 = vpack.c.b16 %v795, %v793
    %v878 = vpack.c.b16 %v796, %v794
    %v879 = vpack.c.b16 %v799, %v797
    %v880 = vpack.c.b16 %v800, %v798
    %v881 = vpack.c.b16 %v803, %v801
    %v882 = vpack.c.b16 %v804, %v802
    %v883 = vpack.c.b16 %v807, %v805
    %v884 = vpack.c.b16 %v808, %v806
    %v885 = vpack.c.b16 %v811, %v809
    %v886 = vpack.c.b16 %v812, %v810
    %v887 = vpack.c.b16 %v815, %v813
    %v888 = vpack.c.b16 %v816, %v814
    %v889 = vpack.c.b16 %v819, %v817
    %v890 = vpack.c.b16 %v820, %v818
    %v891 = vpack.c.b16 %v823, %v821
    %v892 = vpack.c.b16 %v824, %v822
    %v893 = vpack.c.b16 %v827, %v825
    %v894 = vpack.c.b16 %v828, %v826
    %v895 = vpack.c.b16 %v831, %v829
    %v896 = vpack.c.b16 %v832, %v830
    %961 = vmatprep.subr.bf16.mxu0 %v834
    %962 = vmatpush1.bf16.msra.mxu0 %v833
    %963 = vmatprep.subr.bf16.mxu0 %v836
    %964 = vmatpush1.bf16.msra.mxu0 %v835
    %965 = vmatprep.subr.bf16.mxu0 %v838
    %966 = vmatpush1.bf16.msra.mxu0 %v837
    %967 = vmatprep.subr.bf16.mxu0 %v840
    %968 = vmatpush1.bf16.msra.mxu0 %v839
    %969 = vmatprep.subr.bf16.mxu0 %v842
    %970 = vmatpush1.bf16.msra.mxu0 %v841
    %971 = vmatprep.subr.bf16.mxu0 %v844
    %972 = vmatpush1.bf16.msra.mxu0 %v843
    %973 = vmatprep.subr.bf16.mxu0 %v846
    %974 = vmatpush1.bf16.msra.mxu0 %v845
    %975 = vmatprep.subr.bf16.mxu0 %v848
    %976 = vmatpush1.bf16.msra.mxu0 %v847
    %977 = vmatprep.subr.bf16.mxu0 %v850
    %978 = vmatpush1.bf16.msra.mxu0 %v849
    %979 = vmatprep.subr.bf16.mxu0 %v852
    %980 = vmatpush1.bf16.msra.mxu0 %v851
    %981 = vmatprep.subr.bf16.mxu0 %v854
    %982 = vmatpush1.bf16.msra.mxu0 %v853
    %983 = vmatprep.subr.bf16.mxu0 %v856
    %984 = vmatpush1.bf16.msra.mxu0 %v855
    %985 = vmatprep.subr.bf16.mxu0 %v858
    %986 = vmatpush1.bf16.msra.mxu0 %v857
    %987 = vmatprep.subr.bf16.mxu0 %v860
    %988 = vmatpush1.bf16.msra.mxu0 %v859
    %989 = vmatprep.subr.bf16.mxu0 %v862
    %990 = vmatpush1.bf16.msra.mxu0 %v861
    %991 = vmatprep.subr.bf16.mxu0 %v864
    %992 = vmatpush1.bf16.msra.mxu0 %v863
    %993 = vmatprep.mubr.bf16.mxu0 %v634
    %994 = vmatmul.mubr.bf16.gmra.mrb[0].mxu0 %v627
    %v995 = vpop.f32.mrb[0].mxu0
    %v996 = vadd.f32 %v605, %v995
    %v997 = vpop.f32.mrb[0].mxu0
    %v998 = vadd.f32 %v609, %v997
    %v999 = vpop.f32.mrb[0].mxu0
    %v1000 = vpop.f32.mrb[0].mxu0
    %1001 = vdwg.mxu0
    %1002 = vmatprep.subr.bf16.mxu0 %v866
    %1003 = vmatpush1.bf16.msra.mxu0 %v865
    %1004 = vmatprep.subr.bf16.mxu0 %v868
    %1005 = vmatpush1.bf16.msra.mxu0 %v867
    %1006 = vmatprep.subr.bf16.mxu0 %v870
    %1007 = vmatpush1.bf16.msra.mxu0 %v869
    %1008 = vmatprep.subr.bf16.mxu0 %v872
    %1009 = vmatpush1.bf16.msra.mxu0 %v871
    %1010 = vmatprep.subr.bf16.mxu0 %v874
    %1011 = vmatpush1.bf16.msra.mxu0 %v873
    %1012 = vmatprep.subr.bf16.mxu0 %v876
    %1013 = vmatpush1.bf16.msra.mxu0 %v875
    %1014 = vmatprep.subr.bf16.mxu0 %v878
    %1015 = vmatpush1.bf16.msra.mxu0 %v877
    %1016 = vmatprep.subr.bf16.mxu0 %v880
    %1017 = vmatpush1.bf16.msra.mxu0 %v879
    %1018 = vmatprep.subr.bf16.mxu0 %v882
    %1019 = vmatpush1.bf16.msra.mxu0 %v881
    %1020 = vmatprep.subr.bf16.mxu0 %v884
    %1021 = vmatpush1.bf16.msra.mxu0 %v883
    %1022 = vmatprep.subr.bf16.mxu0 %v886
    %1023 = vmatpush1.bf16.msra.mxu0 %v885
    %1024 = vmatprep.subr.bf16.mxu0 %v888
    %1025 = vmatpush1.bf16.msra.mxu0 %v887
    %1026 = vmatprep.subr.bf16.mxu0 %v890
    %1027 = vmatpush1.bf16.msra.mxu0 %v889
    %1028 = vmatprep.subr.bf16.mxu0 %v892
    %1029 = vmatpush1.bf16.msra.mxu0 %v891
    %1030 = vmatprep.subr.bf16.mxu0 %v894
    %1031 = vmatpush1.bf16.msra.mxu0 %v893
    %1032 = vmatprep.subr.bf16.mxu0 %v896
    %1033 = vmatpush1.bf16.msra.mxu0 %v895
    %1034 = vmatprep.mubr.bf16.mxu0 %v636
    %1035 = vmatmul.mubr.bf16.gmra.mrb[0].mxu0 %v635
    %v1036 = vpop.f32.mrb[0].mxu0
    %v1037 = vadd.f32 %v996, %v1036
    %v1038 = vpop.f32.mrb[0].mxu0
    %v1039 = vadd.f32 %v998, %v1038
    %v1040 = vpop.f32.mrb[0].mxu0
    %v1041 = vpop.f32.mrb[0].mxu0
    %1042 = vdwg.mxu0
    %v1045 = vrot.slane %v1037, 6
    %v1046 = vrot.slane %v1039, 6
    %vm1049 = vcmask 1041408
    %v1050 = vsel %vm1049, %v526, %v1045
    %v1051 = vsel %vm1049, %v528, %v1046
    %v1052 = vpack.c.bf16 %v1050, %v1050
    %v1053 = vpack.c.bf16 %v1051, %v1051
    %v1054 = vld [vmem:[%s2] sm:$0xff]
    %v1055 = vld [vmem:[%s2 + $0x8] sm:$0xff]
    %v1056 = vld [vmem:[%s2 + $0x10] sm:$0xff]
    %v1057 = vld [vmem:[%s2 + $0x18] sm:$0xff]
    %v1058 = vld [vmem:[%s2 + $0x20] sm:$0xff]
    %v1059 = vld [vmem:[%s2 + $0x28] sm:$0xff]
    %v1060 = vld [vmem:[%s2 + $0x30] sm:$0xff]
    %v1061 = vld [vmem:[%s2 + $0x38] sm:$0xff]
    %v1062 = vld [vmem:[%s2 + $0x40] sm:$0xff]
    %v1063 = vld [vmem:[%s2 + $0x48] sm:$0xff]
    %v1064 = vld [vmem:[%s2 + $0x50] sm:$0xff]
    %v1065 = vld [vmem:[%s2 + $0x58] sm:$0xff]
    %v1066 = vld [vmem:[%s2 + $0x60] sm:$0xff]
    %v1067 = vld [vmem:[%s2 + $0x68] sm:$0xff]
    %v1068 = vld [vmem:[%s2 + $0x70] sm:$0xff]
    %v1069 = vld [vmem:[%s2 + $0x78] sm:$0xff]
    %v1070 = vld [vmem:[%s2 + $0x80] sm:$0xff]
    %v1071 = vld [vmem:[%s2 + $0x88] sm:$0xff]
    %v1072 = vld [vmem:[%s2 + $0x90] sm:$0xff]
    %v1073 = vld [vmem:[%s2 + $0x98] sm:$0xff]
    %v1074 = vld [vmem:[%s2 + $0xa0] sm:$0xff]
    %v1075 = vld [vmem:[%s2 + $0xa8] sm:$0xff]
    %v1076 = vld [vmem:[%s2 + $0xb0] sm:$0xff]
    %v1077 = vld [vmem:[%s2 + $0xb8] sm:$0xff]
    %v1078 = vld [vmem:[%s2 + $0xc0] sm:$0xff]
    %v1079 = vld [vmem:[%s2 + $0xc8] sm:$0xff]
    %v1080 = vld [vmem:[%s2 + $0xd0] sm:$0xff]
    %v1081 = vld [vmem:[%s2 + $0xd8] sm:$0xff]
    %v1082 = vld [vmem:[%s2 + $0xe0] sm:$0xff]
    %v1083 = vld [vmem:[%s2 + $0xe8] sm:$0xff]
    %v1084 = vld [vmem:[%s2 + $0xf0] sm:$0xff]
    %v1085 = vld [vmem:[%s2 + $0xf8] sm:$0xff]
    %v1086 = vld [vmem:[%s2 + $0x100] sm:$0xff]
    %v1087 = vld [vmem:[%s2 + $0x108] sm:$0xff]
    %v1088 = vld [vmem:[%s2 + $0x110] sm:$0xff]
    %v1089 = vld [vmem:[%s2 + $0x118] sm:$0xff]
    %v1090 = vld [vmem:[%s2 + $0x120] sm:$0xff]
    %v1091 = vld [vmem:[%s2 + $0x128] sm:$0xff]
    %v1092 = vld [vmem:[%s2 + $0x130] sm:$0xff]
    %v1093 = vld [vmem:[%s2 + $0x138] sm:$0xff]
    %v1094 = vld [vmem:[%s2 + $0x140] sm:$0xff]
    %v1095 = vld [vmem:[%s2 + $0x148] sm:$0xff]
    %v1096 = vld [vmem:[%s2 + $0x150] sm:$0xff]
    %v1097 = vld [vmem:[%s2 + $0x158] sm:$0xff]
    %v1098 = vld [vmem:[%s2 + $0x160] sm:$0xff]
    %v1099 = vld [vmem:[%s2 + $0x168] sm:$0xff]
    %v1100 = vld [vmem:[%s2 + $0x170] sm:$0xff]
    %v1101 = vld [vmem:[%s2 + $0x178] sm:$0xff]
    %v1102 = vld [vmem:[%s2 + $0x180] sm:$0xff]
    %v1103 = vld [vmem:[%s2 + $0x188] sm:$0xff]
    %v1104 = vld [vmem:[%s2 + $0x190] sm:$0xff]
    %v1105 = vld [vmem:[%s2 + $0x198] sm:$0xff]
    %v1106 = vld [vmem:[%s2 + $0x1a0] sm:$0xff]
    %v1107 = vld [vmem:[%s2 + $0x1a8] sm:$0xff]
    %v1108 = vld [vmem:[%s2 + $0x1b0] sm:$0xff]
    %v1109 = vld [vmem:[%s2 + $0x1b8] sm:$0xff]
    %v1110 = vld [vmem:[%s2 + $0x1c0] sm:$0xff]
    %v1111 = vld [vmem:[%s2 + $0x1c8] sm:$0xff]
    %v1112 = vld [vmem:[%s2 + $0x1d0] sm:$0xff]
    %v1113 = vld [vmem:[%s2 + $0x1d8] sm:$0xff]
    %v1114 = vld [vmem:[%s2 + $0x1e0] sm:$0xff]
    %v1115 = vld [vmem:[%s2 + $0x1e8] sm:$0xff]
    %v1116 = vld [vmem:[%s2 + $0x1f0] sm:$0xff]
    %v1117 = vld [vmem:[%s2 + $0x1f8] sm:$0xff]
    %s1118 = scalar_lea.vmem %s5, 1
    %v1119 = vld [vmem:[%s1118] ss:$8 sm:$0xf]
    %v1121 = vlaneseq
    %v1122 = vshrl.u32 %v1121, 7
    %v1123 = vsub.s32 0, %v1122
    %v1124 = vrot.slane %v1119, %v1123
    %v1125 = vlaneseq
    %v1126 = vshrl.u32 %v1125, 7
    %v1127 = vsub.s32 1, %v1126
    %v1128 = vrot.slane %v1119, %v1127
    %v1129 = vlaneseq
    %v1130 = vshrl.u32 %v1129, 7
    %v1131 = vsub.s32 2, %v1130
    %v1132 = vrot.slane %v1119, %v1131
    %v1133 = vlaneseq
    %v1134 = vshrl.u32 %v1133, 7
    %v1135 = vsub.s32 3, %v1134
    %v1136 = vrot.slane %v1119, %v1135
    %v1205 = vunpack.c.l.b16 %v1054
    %v1206 = vunpack.c.h.b16 %v1054
    %v1207 = vunpack.c.l.b16 %v1055
    %v1208 = vunpack.c.h.b16 %v1055
    %v1209 = vunpack.c.l.b16 %v1056
    %v1210 = vunpack.c.h.b16 %v1056
    %v1211 = vunpack.c.l.b16 %v1057
    %v1212 = vunpack.c.h.b16 %v1057
    %v1213 = vunpack.c.l.b16 %v1058
    %v1214 = vunpack.c.h.b16 %v1058
    %v1215 = vunpack.c.l.b16 %v1059
    %v1216 = vunpack.c.h.b16 %v1059
    %v1217 = vunpack.c.l.b16 %v1060
    %v1218 = vunpack.c.h.b16 %v1060
    %v1219 = vunpack.c.l.b16 %v1061
    %v1220 = vunpack.c.h.b16 %v1061
    %v1221 = vunpack.c.l.b16 %v1062
    %v1222 = vunpack.c.h.b16 %v1062
    %v1223 = vunpack.c.l.b16 %v1063
    %v1224 = vunpack.c.h.b16 %v1063
    %v1225 = vunpack.c.l.b16 %v1064
    %v1226 = vunpack.c.h.b16 %v1064
    %v1227 = vunpack.c.l.b16 %v1065
    %v1228 = vunpack.c.h.b16 %v1065
    %v1229 = vunpack.c.l.b16 %v1066
    %v1230 = vunpack.c.h.b16 %v1066
    %v1231 = vunpack.c.l.b16 %v1067
    %v1232 = vunpack.c.h.b16 %v1067
    %v1233 = vunpack.c.l.b16 %v1068
    %v1234 = vunpack.c.h.b16 %v1068
    %v1235 = vunpack.c.l.b16 %v1069
    %v1236 = vunpack.c.h.b16 %v1069
    %v1237 = vunpack.c.l.b16 %v1070
    %v1238 = vunpack.c.h.b16 %v1070
    %v1239 = vunpack.c.l.b16 %v1071
    %v1240 = vunpack.c.h.b16 %v1071
    %v1241 = vunpack.c.l.b16 %v1072
    %v1242 = vunpack.c.h.b16 %v1072
    %v1243 = vunpack.c.l.b16 %v1073
    %v1244 = vunpack.c.h.b16 %v1073
    %v1245 = vunpack.c.l.b16 %v1074
    %v1246 = vunpack.c.h.b16 %v1074
    %v1247 = vunpack.c.l.b16 %v1075
    %v1248 = vunpack.c.h.b16 %v1075
    %v1249 = vunpack.c.l.b16 %v1076
    %v1250 = vunpack.c.h.b16 %v1076
    %v1251 = vunpack.c.l.b16 %v1077
    %v1252 = vunpack.c.h.b16 %v1077
    %v1253 = vunpack.c.l.b16 %v1078
    %v1254 = vunpack.c.h.b16 %v1078
    %v1255 = vunpack.c.l.b16 %v1079
    %v1256 = vunpack.c.h.b16 %v1079
    %v1257 = vunpack.c.l.b16 %v1080
    %v1258 = vunpack.c.h.b16 %v1080
    %v1259 = vunpack.c.l.b16 %v1081
    %v1260 = vunpack.c.h.b16 %v1081
    %v1261 = vunpack.c.l.b16 %v1082
    %v1262 = vunpack.c.h.b16 %v1082
    %v1263 = vunpack.c.l.b16 %v1083
    %v1264 = vunpack.c.h.b16 %v1083
    %v1265 = vunpack.c.l.b16 %v1084
    %v1266 = vunpack.c.h.b16 %v1084
    %v1267 = vunpack.c.l.b16 %v1085
    %v1268 = vunpack.c.h.b16 %v1085
    %v1269 = vunpack.c.l.b16 %v1086
    %v1270 = vunpack.c.h.b16 %v1086
    %v1271 = vunpack.c.l.b16 %v1087
    %v1272 = vunpack.c.h.b16 %v1087
    %v1273 = vunpack.c.l.b16 %v1088
    %v1274 = vunpack.c.h.b16 %v1088
    %v1275 = vunpack.c.l.b16 %v1089
    %v1276 = vunpack.c.h.b16 %v1089
    %v1277 = vunpack.c.l.b16 %v1090
    %v1278 = vunpack.c.h.b16 %v1090
    %v1279 = vunpack.c.l.b16 %v1091
    %v1280 = vunpack.c.h.b16 %v1091
    %v1281 = vunpack.c.l.b16 %v1092
    %v1282 = vunpack.c.h.b16 %v1092
    %v1283 = vunpack.c.l.b16 %v1093
    %v1284 = vunpack.c.h.b16 %v1093
    %v1285 = vunpack.c.l.b16 %v1094
    %v1286 = vunpack.c.h.b16 %v1094
    %v1287 = vunpack.c.l.b16 %v1095
    %v1288 = vunpack.c.h.b16 %v1095
    %v1289 = vunpack.c.l.b16 %v1096
    %v1290 = vunpack.c.h.b16 %v1096
    %v1291 = vunpack.c.l.b16 %v1097
    %v1292 = vunpack.c.h.b16 %v1097
    %v1293 = vunpack.c.l.b16 %v1098
    %v1294 = vunpack.c.h.b16 %v1098
    %v1295 = vunpack.c.l.b16 %v1099
    %v1296 = vunpack.c.h.b16 %v1099
    %v1297 = vunpack.c.l.b16 %v1100
    %v1298 = vunpack.c.h.b16 %v1100
    %v1299 = vunpack.c.l.b16 %v1101
    %v1300 = vunpack.c.h.b16 %v1101
    %v1301 = vunpack.c.l.b16 %v1102
    %v1302 = vunpack.c.h.b16 %v1102
    %v1303 = vunpack.c.l.b16 %v1103
    %v1304 = vunpack.c.h.b16 %v1103
    %v1305 = vunpack.c.l.b16 %v1104
    %v1306 = vunpack.c.h.b16 %v1104
    %v1307 = vunpack.c.l.b16 %v1105
    %v1308 = vunpack.c.h.b16 %v1105
    %v1309 = vunpack.c.l.b16 %v1106
    %v1310 = vunpack.c.h.b16 %v1106
    %v1311 = vunpack.c.l.b16 %v1107
    %v1312 = vunpack.c.h.b16 %v1107
    %v1313 = vunpack.c.l.b16 %v1108
    %v1314 = vunpack.c.h.b16 %v1108
    %v1315 = vunpack.c.l.b16 %v1109
    %v1316 = vunpack.c.h.b16 %v1109
    %v1317 = vunpack.c.l.b16 %v1110
    %v1318 = vunpack.c.h.b16 %v1110
    %v1319 = vunpack.c.l.b16 %v1111
    %v1320 = vunpack.c.h.b16 %v1111
    %v1321 = vunpack.c.l.b16 %v1112
    %v1322 = vunpack.c.h.b16 %v1112
    %v1323 = vunpack.c.l.b16 %v1113
    %v1324 = vunpack.c.h.b16 %v1113
    %v1325 = vunpack.c.l.b16 %v1114
    %v1326 = vunpack.c.h.b16 %v1114
    %v1327 = vunpack.c.l.b16 %v1115
    %v1328 = vunpack.c.h.b16 %v1115
    %v1329 = vunpack.c.l.b16 %v1116
    %v1330 = vunpack.c.h.b16 %v1116
    %v1331 = vunpack.c.l.b16 %v1117
    %v1332 = vunpack.c.h.b16 %v1117
    %v1333 = vpack.c.b16 %v1209, %v1205
    %v1334 = vpack.c.b16 %v1210, %v1206
    %v1335 = vpack.c.b16 %v1211, %v1207
    %v1336 = vpack.c.b16 %v1212, %v1208
    %v1337 = vpack.c.b16 %v1217, %v1213
    %v1338 = vpack.c.b16 %v1218, %v1214
    %v1339 = vpack.c.b16 %v1219, %v1215
    %v1340 = vpack.c.b16 %v1220, %v1216
    %v1341 = vpack.c.b16 %v1225, %v1221
    %v1342 = vpack.c.b16 %v1226, %v1222
    %v1343 = vpack.c.b16 %v1227, %v1223
    %v1344 = vpack.c.b16 %v1228, %v1224
    %v1345 = vpack.c.b16 %v1233, %v1229
    %v1346 = vpack.c.b16 %v1234, %v1230
    %v1347 = vpack.c.b16 %v1235, %v1231
    %v1348 = vpack.c.b16 %v1236, %v1232
    %v1349 = vpack.c.b16 %v1241, %v1237
    %v1350 = vpack.c.b16 %v1242, %v1238
    %v1351 = vpack.c.b16 %v1243, %v1239
    %v1352 = vpack.c.b16 %v1244, %v1240
    %v1353 = vpack.c.b16 %v1249, %v1245
    %v1354 = vpack.c.b16 %v1250, %v1246
    %v1355 = vpack.c.b16 %v1251, %v1247
    %v1356 = vpack.c.b16 %v1252, %v1248
    %v1357 = vpack.c.b16 %v1257, %v1253
    %v1358 = vpack.c.b16 %v1258, %v1254
    %v1359 = vpack.c.b16 %v1259, %v1255
    %v1360 = vpack.c.b16 %v1260, %v1256
    %v1361 = vpack.c.b16 %v1265, %v1261
    %v1362 = vpack.c.b16 %v1266, %v1262
    %v1363 = vpack.c.b16 %v1267, %v1263
    %v1364 = vpack.c.b16 %v1268, %v1264
    %v1365 = vpack.c.b16 %v1273, %v1269
    %v1366 = vpack.c.b16 %v1274, %v1270
    %v1367 = vpack.c.b16 %v1275, %v1271
    %v1368 = vpack.c.b16 %v1276, %v1272
    %v1369 = vpack.c.b16 %v1281, %v1277
    %v1370 = vpack.c.b16 %v1282, %v1278
    %v1371 = vpack.c.b16 %v1283, %v1279
    %v1372 = vpack.c.b16 %v1284, %v1280
    %v1373 = vpack.c.b16 %v1289, %v1285
    %v1374 = vpack.c.b16 %v1290, %v1286
    %v1375 = vpack.c.b16 %v1291, %v1287
    %v1376 = vpack.c.b16 %v1292, %v1288
    %v1377 = vpack.c.b16 %v1297, %v1293
    %v1378 = vpack.c.b16 %v1298, %v1294
    %v1379 = vpack.c.b16 %v1299, %v1295
    %v1380 = vpack.c.b16 %v1300, %v1296
    %v1381 = vpack.c.b16 %v1305, %v1301
    %v1382 = vpack.c.b16 %v1306, %v1302
    %v1383 = vpack.c.b16 %v1307, %v1303
    %v1384 = vpack.c.b16 %v1308, %v1304
    %v1385 = vpack.c.b16 %v1313, %v1309
    %v1386 = vpack.c.b16 %v1314, %v1310
    %v1387 = vpack.c.b16 %v1315, %v1311
    %v1388 = vpack.c.b16 %v1316, %v1312
    %v1389 = vpack.c.b16 %v1321, %v1317
    %v1390 = vpack.c.b16 %v1322, %v1318
    %v1391 = vpack.c.b16 %v1323, %v1319
    %v1392 = vpack.c.b16 %v1324, %v1320
    %v1393 = vpack.c.b16 %v1329, %v1325
    %v1394 = vpack.c.b16 %v1330, %v1326
    %v1395 = vpack.c.b16 %v1331, %v1327
    %v1396 = vpack.c.b16 %v1332, %v1328
    %1461 = vmatprep.subr.bf16.mxu0 %v1334
    %1462 = vmatpush1.bf16.msra.mxu0 %v1333
    %1463 = vmatprep.subr.bf16.mxu0 %v1338
    %1464 = vmatpush1.bf16.msra.mxu0 %v1337
    %1465 = vmatprep.subr.bf16.mxu0 %v1342
    %1466 = vmatpush1.bf16.msra.mxu0 %v1341
    %1467 = vmatprep.subr.bf16.mxu0 %v1346
    %1468 = vmatpush1.bf16.msra.mxu0 %v1345
    %1469 = vmatprep.subr.bf16.mxu0 %v1350
    %1470 = vmatpush1.bf16.msra.mxu0 %v1349
    %1471 = vmatprep.subr.bf16.mxu0 %v1354
    %1472 = vmatpush1.bf16.msra.mxu0 %v1353
    %1473 = vmatprep.subr.bf16.mxu0 %v1358
    %1474 = vmatpush1.bf16.msra.mxu0 %v1357
    %1475 = vmatprep.subr.bf16.mxu0 %v1362
    %1476 = vmatpush1.bf16.msra.mxu0 %v1361
    %1477 = vmatprep.subr.bf16.mxu0 %v1366
    %1478 = vmatpush1.bf16.msra.mxu0 %v1365
    %1479 = vmatprep.subr.bf16.mxu0 %v1370
    %1480 = vmatpush1.bf16.msra.mxu0 %v1369
    %1481 = vmatprep.subr.bf16.mxu0 %v1374
    %1482 = vmatpush1.bf16.msra.mxu0 %v1373
    %1483 = vmatprep.subr.bf16.mxu0 %v1378
    %1484 = vmatpush1.bf16.msra.mxu0 %v1377
    %1485 = vmatprep.subr.bf16.mxu0 %v1382
    %1486 = vmatpush1.bf16.msra.mxu0 %v1381
    %1487 = vmatprep.subr.bf16.mxu0 %v1386
    %1488 = vmatpush1.bf16.msra.mxu0 %v1385
    %1489 = vmatprep.subr.bf16.mxu0 %v1390
    %1490 = vmatpush1.bf16.msra.mxu0 %v1389
    %1491 = vmatprep.subr.bf16.mxu0 %v1394
    %1492 = vmatpush1.bf16.msra.mxu0 %v1393
    %1493 = vmatprep.mubr.bf16.mxu0 %v1053
    %1494 = vmatmul.mubr.bf16.gmra.mrb[0].mxu0 %v1052
    %v1495 = vpop.f32.mrb[0].mxu0
    %v1496 = vadd.f32 %v1124, %v1495
    %v1497 = vpop.f32.mrb[0].mxu0
    %v1498 = vadd.f32 %v1128, %v1497
    %v1499 = vpop.f32.mrb[0].mxu0
    %v1500 = vpop.f32.mrb[0].mxu0
    %1501 = vdwg.mxu0
    %1502 = vmatprep.subr.bf16.mxu0 %v1336
    %1503 = vmatpush1.bf16.msra.mxu0 %v1335
    %1504 = vmatprep.subr.bf16.mxu0 %v1340
    %1505 = vmatpush1.bf16.msra.mxu0 %v1339
    %1506 = vmatprep.subr.bf16.mxu0 %v1344
    %1507 = vmatpush1.bf16.msra.mxu0 %v1343
    %1508 = vmatprep.subr.bf16.mxu0 %v1348
    %1509 = vmatpush1.bf16.msra.mxu0 %v1347
    %1510 = vmatprep.subr.bf16.mxu0 %v1352
    %1511 = vmatpush1.bf16.msra.mxu0 %v1351
    %1512 = vmatprep.subr.bf16.mxu0 %v1356
    %1513 = vmatpush1.bf16.msra.mxu0 %v1355
    %1514 = vmatprep.subr.bf16.mxu0 %v1360
    %1515 = vmatpush1.bf16.msra.mxu0 %v1359
    %1516 = vmatprep.subr.bf16.mxu0 %v1364
    %1517 = vmatpush1.bf16.msra.mxu0 %v1363
    %1518 = vmatprep.subr.bf16.mxu0 %v1368
    %1519 = vmatpush1.bf16.msra.mxu0 %v1367
    %1520 = vmatprep.subr.bf16.mxu0 %v1372
    %1521 = vmatpush1.bf16.msra.mxu0 %v1371
    %1522 = vmatprep.subr.bf16.mxu0 %v1376
    %1523 = vmatpush1.bf16.msra.mxu0 %v1375
    %1524 = vmatprep.subr.bf16.mxu0 %v1380
    %1525 = vmatpush1.bf16.msra.mxu0 %v1379
    %1526 = vmatprep.subr.bf16.mxu0 %v1384
    %1527 = vmatpush1.bf16.msra.mxu0 %v1383
    %1528 = vmatprep.subr.bf16.mxu0 %v1388
    %1529 = vmatpush1.bf16.msra.mxu0 %v1387
    %1530 = vmatprep.subr.bf16.mxu0 %v1392
    %1531 = vmatpush1.bf16.msra.mxu0 %v1391
    %1532 = vmatprep.subr.bf16.mxu0 %v1396
    %1533 = vmatpush1.bf16.msra.mxu0 %v1395
    %1534 = vmatprep.mubr.bf16.mxu0 %v1053
    %1535 = vmatmul.mubr.bf16.gmra.mrb[0].mxu0 %v1052
    %v1536 = vpop.f32.mrb[0].mxu0
    %v1537 = vadd.f32 %v1132, %v1536
    %v1538 = vpop.f32.mrb[0].mxu0
    %v1539 = vadd.f32 %v1136, %v1538
    %v1540 = vpop.f32.mrb[0].mxu0
    %v1541 = vpop.f32.mrb[0].mxu0
    %1542 = vdwg.mxu0
    %v1543 = vtanh.pop %v1496
    %v1544 = vtanh.pop %v1498
    %v1545 = vtanh.pop %v1537
    %v1546 = vtanh.pop %v1539
    %s1547 = scalar_lea.vmem %s5, 2
    %v1548 = vld [vmem:[%s1547] ss:$8 sm:$0x3]
    %v1550 = vlaneseq
    %v1551 = vshrl.u32 %v1550, 7
    %v1552 = vsub.s32 0, %v1551
    %v1553 = vrot.slane %v1548, %v1552
    %v1554 = vlaneseq
    %v1555 = vshrl.u32 %v1554, 7
    %v1556 = vsub.s32 1, %v1555
    %v1557 = vrot.slane %v1548, %v1556
    %v1560 = vmul.f32 %v1543, %v1553
    %v1561 = vmul.f32 %v1544, %v1557
    %v1562 = vsel %vm1049, %v1560, 0.0
    %v1563 = vsel %vm1049, %v1561, 0.0
    %v1564 = vadd.f32 %v1562, %v1563
    %1565 = vadd.xlane.f32.xlu0 %v1564
    %v1566 = vpop.xlane.xlu0 %1565
    %s1567 = scalar_lea.vmem %s5, 18
    %v1568 = vld [vmem:[%s1567] ss:$8 sm:$0x3]
    %v1570 = vlaneseq
    %v1571 = vshrl.u32 %v1570, 7
    %v1572 = vsub.s32 0, %v1571
    %v1573 = vrot.slane %v1568, %v1572
    %v1574 = vlaneseq
    %v1575 = vshrl.u32 %v1574, 7
    %v1576 = vsub.s32 1, %v1575
    %v1577 = vrot.slane %v1568, %v1576
    %v1580 = vmul.f32 %v1545, %v1573
    %v1581 = vmul.f32 %v1546, %v1577
    %vm1582 = vcmask 1043458
    %v1583 = vsel %vm1582, %v1580, 0.0
    %v1584 = vsel %vm1582, %v1581, 0.0
    %v1585 = vadd.f32 %v1583, %v1584
    %1586 = vadd.xlane.f32.xlu0 %v1585
    %v1587 = vpop.xlane.xlu0 %1586
    %v1588 = vmul.f32 %v1566, 1.442695
    %v1589 = vpow.pop %v1588
    %v1590 = vmul.f32 %v1587, 1.442695
    %v1591 = vpow.pop %v1590
    %v1593 = vrot.slane %v1591, 2
    %v1595 = vadd.f32 %v1589, %v1593
    %v1596 = vrcp.pop %v1595
    %v1597 = vmul.f32 %v1589, %v1596
    %1599 = vset.pattern.permute.xlu0 0
    %1600 = vperm.xlu0 %1599, %v1597
    %v1601 = vpop.permute.xlu0 %1600
    %v1603 = vmul.f32 %v1601, %v526
    %v1604 = vmul.f32 %v1601, %v528
    %v1606 = vrot.slane %v1596, 6
    %v1608 = vmul.f32 %v1591, %v1606
    %1610 = vset.pattern.permute.xlu0 0
    %1611 = vperm.xlu0 %1610, %v1608
    %v1612 = vpop.permute.xlu0 %1611
    %v1614 = vmul.f32 %v1612, %v1045
    %v1615 = vmul.f32 %v1612, %v1046
    %v1618 = vrot.slane %v1614, 2
    %v1619 = vrot.slane %v1615, 2
    %v1622 = vadd.f32 %v1603, %v1618
    %v1623 = vadd.f32 %v1604, %v1619
    %v1624 = vpack.c.bf16 %v1622, %v1622
    %v1625 = vpack.c.bf16 %v1623, %v1623
    %v1626 = vld [vmem:[%s3] sm:$0xff]
    %v1627 = vld [vmem:[%s3 + $0x8] sm:$0xff]
    %v1628 = vld [vmem:[%s3 + $0x10] sm:$0xff]
    %v1629 = vld [vmem:[%s3 + $0x18] sm:$0xff]
    %v1630 = vld [vmem:[%s3 + $0x20] sm:$0xff]
    %v1631 = vld [vmem:[%s3 + $0x28] sm:$0xff]
    %v1632 = vld [vmem:[%s3 + $0x30] sm:$0xff]
    %v1633 = vld [vmem:[%s3 + $0x38] sm:$0xff]
    %v1634 = vld [vmem:[%s3 + $0x40] sm:$0xff]
    %v1635 = vld [vmem:[%s3 + $0x48] sm:$0xff]
    %v1636 = vld [vmem:[%s3 + $0x50] sm:$0xff]
    %v1637 = vld [vmem:[%s3 + $0x58] sm:$0xff]
    %v1638 = vld [vmem:[%s3 + $0x60] sm:$0xff]
    %v1639 = vld [vmem:[%s3 + $0x68] sm:$0xff]
    %v1640 = vld [vmem:[%s3 + $0x70] sm:$0xff]
    %v1641 = vld [vmem:[%s3 + $0x78] sm:$0xff]
    %v1642 = vld [vmem:[%s3 + $0x80] sm:$0xff]
    %v1643 = vld [vmem:[%s3 + $0x88] sm:$0xff]
    %v1644 = vld [vmem:[%s3 + $0x90] sm:$0xff]
    %v1645 = vld [vmem:[%s3 + $0x98] sm:$0xff]
    %v1646 = vld [vmem:[%s3 + $0xa0] sm:$0xff]
    %v1647 = vld [vmem:[%s3 + $0xa8] sm:$0xff]
    %v1648 = vld [vmem:[%s3 + $0xb0] sm:$0xff]
    %v1649 = vld [vmem:[%s3 + $0xb8] sm:$0xff]
    %v1650 = vld [vmem:[%s3 + $0xc0] sm:$0xff]
    %v1651 = vld [vmem:[%s3 + $0xc8] sm:$0xff]
    %v1652 = vld [vmem:[%s3 + $0xd0] sm:$0xff]
    %v1653 = vld [vmem:[%s3 + $0xd8] sm:$0xff]
    %v1654 = vld [vmem:[%s3 + $0xe0] sm:$0xff]
    %v1655 = vld [vmem:[%s3 + $0xe8] sm:$0xff]
    %v1656 = vld [vmem:[%s3 + $0xf0] sm:$0xff]
    %v1657 = vld [vmem:[%s3 + $0xf8] sm:$0xff]
    %s1658 = scalar_lea.vmem %s5, 3
    %v1659 = vld [vmem:[%s1658] ss:$8 sm:$0x3]
    %v1661 = vlaneseq
    %v1662 = vshrl.u32 %v1661, 7
    %v1663 = vsub.s32 0, %v1662
    %v1664 = vrot.slane %v1659, %v1663
    %v1665 = vlaneseq
    %v1666 = vshrl.u32 %v1665, 7
    %v1667 = vsub.s32 1, %v1666
    %v1668 = vrot.slane %v1659, %v1667
    %v1703 = vunpack.c.l.b16 %v1626
    %v1704 = vunpack.c.h.b16 %v1626
    %v1705 = vunpack.c.l.b16 %v1627
    %v1706 = vunpack.c.h.b16 %v1627
    %v1707 = vunpack.c.l.b16 %v1628
    %v1708 = vunpack.c.h.b16 %v1628
    %v1709 = vunpack.c.l.b16 %v1629
    %v1710 = vunpack.c.h.b16 %v1629
    %v1711 = vunpack.c.l.b16 %v1630
    %v1712 = vunpack.c.h.b16 %v1630
    %v1713 = vunpack.c.l.b16 %v1631
    %v1714 = vunpack.c.h.b16 %v1631
    %v1715 = vunpack.c.l.b16 %v1632
    %v1716 = vunpack.c.h.b16 %v1632
    %v1717 = vunpack.c.l.b16 %v1633
    %v1718 = vunpack.c.h.b16 %v1633
    %v1719 = vunpack.c.l.b16 %v1634
    %v1720 = vunpack.c.h.b16 %v1634
    %v1721 = vunpack.c.l.b16 %v1635
    %v1722 = vunpack.c.h.b16 %v1635
    %v1723 = vunpack.c.l.b16 %v1636
    %v1724 = vunpack.c.h.b16 %v1636
    %v1725 = vunpack.c.l.b16 %v1637
    %v1726 = vunpack.c.h.b16 %v1637
    %v1727 = vunpack.c.l.b16 %v1638
    %v1728 = vunpack.c.h.b16 %v1638
    %v1729 = vunpack.c.l.b16 %v1639
    %v1730 = vunpack.c.h.b16 %v1639
    %v1731 = vunpack.c.l.b16 %v1640
    %v1732 = vunpack.c.h.b16 %v1640
    %v1733 = vunpack.c.l.b16 %v1641
    %v1734 = vunpack.c.h.b16 %v1641
    %v1735 = vunpack.c.l.b16 %v1642
    %v1736 = vunpack.c.h.b16 %v1642
    %v1737 = vunpack.c.l.b16 %v1643
    %v1738 = vunpack.c.h.b16 %v1643
    %v1739 = vunpack.c.l.b16 %v1644
    %v1740 = vunpack.c.h.b16 %v1644
    %v1741 = vunpack.c.l.b16 %v1645
    %v1742 = vunpack.c.h.b16 %v1645
    %v1743 = vunpack.c.l.b16 %v1646
    %v1744 = vunpack.c.h.b16 %v1646
    %v1745 = vunpack.c.l.b16 %v1647
    %v1746 = vunpack.c.h.b16 %v1647
    %v1747 = vunpack.c.l.b16 %v1648
    %v1748 = vunpack.c.h.b16 %v1648
    %v1749 = vunpack.c.l.b16 %v1649
    %v1750 = vunpack.c.h.b16 %v1649
    %v1751 = vunpack.c.l.b16 %v1650
    %v1752 = vunpack.c.h.b16 %v1650
    %v1753 = vunpack.c.l.b16 %v1651
    %v1754 = vunpack.c.h.b16 %v1651
    %v1755 = vunpack.c.l.b16 %v1652
    %v1756 = vunpack.c.h.b16 %v1652
    %v1757 = vunpack.c.l.b16 %v1653
    %v1758 = vunpack.c.h.b16 %v1653
    %v1759 = vunpack.c.l.b16 %v1654
    %v1760 = vunpack.c.h.b16 %v1654
    %v1761 = vunpack.c.l.b16 %v1655
    %v1762 = vunpack.c.h.b16 %v1655
    %v1763 = vunpack.c.l.b16 %v1656
    %v1764 = vunpack.c.h.b16 %v1656
    %v1765 = vunpack.c.l.b16 %v1657
    %v1766 = vunpack.c.h.b16 %v1657
    %v1767 = vpack.c.b16 %v1705, %v1703
    %v1768 = vpack.c.b16 %v1706, %v1704
    %v1769 = vpack.c.b16 %v1709, %v1707
    %v1770 = vpack.c.b16 %v1710, %v1708
    %v1771 = vpack.c.b16 %v1713, %v1711
    %v1772 = vpack.c.b16 %v1714, %v1712
    %v1773 = vpack.c.b16 %v1717, %v1715
    %v1774 = vpack.c.b16 %v1718, %v1716
    %v1775 = vpack.c.b16 %v1721, %v1719
    %v1776 = vpack.c.b16 %v1722, %v1720
    %v1777 = vpack.c.b16 %v1725, %v1723
    %v1778 = vpack.c.b16 %v1726, %v1724
    %v1779 = vpack.c.b16 %v1729, %v1727
    %v1780 = vpack.c.b16 %v1730, %v1728
    %v1781 = vpack.c.b16 %v1733, %v1731
    %v1782 = vpack.c.b16 %v1734, %v1732
    %v1783 = vpack.c.b16 %v1737, %v1735
    %v1784 = vpack.c.b16 %v1738, %v1736
    %v1785 = vpack.c.b16 %v1741, %v1739
    %v1786 = vpack.c.b16 %v1742, %v1740
    %v1787 = vpack.c.b16 %v1745, %v1743
    %v1788 = vpack.c.b16 %v1746, %v1744
    %v1789 = vpack.c.b16 %v1749, %v1747
    %v1790 = vpack.c.b16 %v1750, %v1748
    %v1791 = vpack.c.b16 %v1753, %v1751
    %v1792 = vpack.c.b16 %v1754, %v1752
    %v1793 = vpack.c.b16 %v1757, %v1755
    %v1794 = vpack.c.b16 %v1758, %v1756
    %v1795 = vpack.c.b16 %v1761, %v1759
    %v1796 = vpack.c.b16 %v1762, %v1760
    %v1797 = vpack.c.b16 %v1765, %v1763
    %v1798 = vpack.c.b16 %v1766, %v1764
    %1831 = vmatprep.subr.bf16.mxu0 %v1768
    %1832 = vmatpush1.bf16.msra.mxu0 %v1767
    %1833 = vmatprep.subr.bf16.mxu0 %v1770
    %1834 = vmatpush1.bf16.msra.mxu0 %v1769
    %1835 = vmatprep.subr.bf16.mxu0 %v1772
    %1836 = vmatpush1.bf16.msra.mxu0 %v1771
    %1837 = vmatprep.subr.bf16.mxu0 %v1774
    %1838 = vmatpush1.bf16.msra.mxu0 %v1773
    %1839 = vmatprep.subr.bf16.mxu0 %v1776
    %1840 = vmatpush1.bf16.msra.mxu0 %v1775
    %1841 = vmatprep.subr.bf16.mxu0 %v1778
    %1842 = vmatpush1.bf16.msra.mxu0 %v1777
    %1843 = vmatprep.subr.bf16.mxu0 %v1780
    %1844 = vmatpush1.bf16.msra.mxu0 %v1779
    %1845 = vmatprep.subr.bf16.mxu0 %v1782
    %1846 = vmatpush1.bf16.msra.mxu0 %v1781
    %1847 = vmatprep.subr.bf16.mxu0 %v1784
    %1848 = vmatpush1.bf16.msra.mxu0 %v1783
    %1849 = vmatprep.subr.bf16.mxu0 %v1786
    %1850 = vmatpush1.bf16.msra.mxu0 %v1785
    %1851 = vmatprep.subr.bf16.mxu0 %v1788
    %1852 = vmatpush1.bf16.msra.mxu0 %v1787
    %1853 = vmatprep.subr.bf16.mxu0 %v1790
    %1854 = vmatpush1.bf16.msra.mxu0 %v1789
    %1855 = vmatprep.subr.bf16.mxu0 %v1792
    %1856 = vmatpush1.bf16.msra.mxu0 %v1791
    %1857 = vmatprep.subr.bf16.mxu0 %v1794
    %1858 = vmatpush1.bf16.msra.mxu0 %v1793
    %1859 = vmatprep.subr.bf16.mxu0 %v1796
    %1860 = vmatpush1.bf16.msra.mxu0 %v1795
    %1861 = vmatprep.subr.bf16.mxu0 %v1798
    %1862 = vmatpush1.bf16.msra.mxu0 %v1797
    %1863 = vmatprep.mubr.bf16.mxu0 %v1625
    %1864 = vmatmul.mubr.bf16.gmra.mrb[0].mxu0 %v1624
    %v1865 = vpop.f32.mrb[0].mxu0
    %v1866 = vadd.f32 %v1664, %v1865
    %v1867 = vpop.f32.mrb[0].mxu0
    %v1868 = vadd.f32 %v1668, %v1867
    %v1869 = vpop.f32.mrb[0].mxu0
    %v1870 = vpop.f32.mrb[0].mxu0
    %1871 = vdwg.mxu0
    %v1872 = vmax.f32 %v1866, 0.0
    %v1873 = vmax.f32 %v1868, 0.0
    %v1874 = vld [vmem:[%s4] sm:$0xff]
    %v1875 = vld [vmem:[%s4 + $0x8] sm:$0xff]
    %v1876 = vld [vmem:[%s4 + $0x10] sm:$0xff]
    %v1877 = vld [vmem:[%s4 + $0x18] sm:$0xff]
    %v1878 = vld [vmem:[%s4 + $0x20] sm:$0xff]
    %v1879 = vld [vmem:[%s4 + $0x28] sm:$0xff]
    %v1880 = vld [vmem:[%s4 + $0x30] sm:$0xff]
    %v1881 = vld [vmem:[%s4 + $0x38] sm:$0xff]
    %v1882 = vld [vmem:[%s4 + $0x40] sm:$0xff]
    %v1883 = vld [vmem:[%s4 + $0x48] sm:$0xff]
    %v1884 = vld [vmem:[%s4 + $0x50] sm:$0xff]
    %v1885 = vld [vmem:[%s4 + $0x58] sm:$0xff]
    %v1886 = vld [vmem:[%s4 + $0x60] sm:$0xff]
    %v1887 = vld [vmem:[%s4 + $0x68] sm:$0xff]
    %v1888 = vld [vmem:[%s4 + $0x70] sm:$0xff]
    %v1889 = vld [vmem:[%s4 + $0x78] sm:$0xff]
    %v1890 = vld [vmem:[%s4 + $0x80] sm:$0xff]
    %v1891 = vld [vmem:[%s4 + $0x88] sm:$0xff]
    %v1892 = vld [vmem:[%s4 + $0x90] sm:$0xff]
    %v1893 = vld [vmem:[%s4 + $0x98] sm:$0xff]
    %v1894 = vld [vmem:[%s4 + $0xa0] sm:$0xff]
    %v1895 = vld [vmem:[%s4 + $0xa8] sm:$0xff]
    %v1896 = vld [vmem:[%s4 + $0xb0] sm:$0xff]
    %v1897 = vld [vmem:[%s4 + $0xb8] sm:$0xff]
    %v1898 = vld [vmem:[%s4 + $0xc0] sm:$0xff]
    %v1899 = vld [vmem:[%s4 + $0xc8] sm:$0xff]
    %v1900 = vld [vmem:[%s4 + $0xd0] sm:$0xff]
    %v1901 = vld [vmem:[%s4 + $0xd8] sm:$0xff]
    %v1902 = vld [vmem:[%s4 + $0xe0] sm:$0xff]
    %v1903 = vld [vmem:[%s4 + $0xe8] sm:$0xff]
    %v1904 = vld [vmem:[%s4 + $0xf0] sm:$0xff]
    %v1905 = vld [vmem:[%s4 + $0xf8] sm:$0xff]
    %v1906 = vld [vmem:[%s5 + $0x4] ss:$0 sm:$0xff]
    %1907 = vmatprep.subr.mxu0 0.0
    %1908 = vmatpush1.msra.mxu0 %v1874
    %1909 = vmatprep.subr.mxu0 0.0
    %1910 = vmatpush1.msra.mxu0 %v1875
    %1911 = vmatprep.subr.mxu0 0.0
    %1912 = vmatpush1.msra.mxu0 %v1876
    %1913 = vmatprep.subr.mxu0 0.0
    %1914 = vmatpush1.msra.mxu0 %v1877
    %1915 = vmatprep.subr.mxu0 0.0
    %1916 = vmatpush1.msra.mxu0 %v1878
    %1917 = vmatprep.subr.mxu0 0.0
    %1918 = vmatpush1.msra.mxu0 %v1879
    %1919 = vmatprep.subr.mxu0 0.0
    %1920 = vmatpush1.msra.mxu0 %v1880
    %1921 = vmatprep.subr.mxu0 0.0
    %1922 = vmatpush1.msra.mxu0 %v1881
    %1923 = vmatprep.subr.mxu0 0.0
    %1924 = vmatpush1.msra.mxu0 %v1882
    %1925 = vmatprep.subr.mxu0 0.0
    %1926 = vmatpush1.msra.mxu0 %v1883
    %1927 = vmatprep.subr.mxu0 0.0
    %1928 = vmatpush1.msra.mxu0 %v1884
    %1929 = vmatprep.subr.mxu0 0.0
    %1930 = vmatpush1.msra.mxu0 %v1885
    %1931 = vmatprep.subr.mxu0 0.0
    %1932 = vmatpush1.msra.mxu0 %v1886
    %1933 = vmatprep.subr.mxu0 0.0
    %1934 = vmatpush1.msra.mxu0 %v1887
    %1935 = vmatprep.subr.mxu0 0.0
    %1936 = vmatpush1.msra.mxu0 %v1888
    %1937 = vmatprep.subr.mxu0 0.0
    %1938 = vmatpush1.msra.mxu0 %v1889
    %1939 = vmatprep.subr.mxu0 0.0
    %1940 = vmatpush1.msra.mxu0 %v1890
    %1941 = vmatprep.subr.mxu0 0.0
    %1942 = vmatpush1.msra.mxu0 %v1891
    %1943 = vmatprep.subr.mxu0 0.0
    %1944 = vmatpush1.msra.mxu0 %v1892
    %1945 = vmatprep.subr.mxu0 0.0
    %1946 = vmatpush1.msra.mxu0 %v1893
    %1947 = vmatprep.subr.mxu0 0.0
    %1948 = vmatpush1.msra.mxu0 %v1894
    %1949 = vmatprep.subr.mxu0 0.0
    %1950 = vmatpush1.msra.mxu0 %v1895
    %1951 = vmatprep.subr.mxu0 0.0
    %1952 = vmatpush1.msra.mxu0 %v1896
    %1953 = vmatprep.subr.mxu0 0.0
    %1954 = vmatpush1.msra.mxu0 %v1897
    %1955 = vmatprep.subr.mxu0 0.0
    %1956 = vmatpush1.msra.mxu0 %v1898
    %1957 = vmatprep.subr.mxu0 0.0
    %1958 = vmatpush1.msra.mxu0 %v1899
    %1959 = vmatprep.subr.mxu0 0.0
    %1960 = vmatpush1.msra.mxu0 %v1900
    %1961 = vmatprep.subr.mxu0 0.0
    %1962 = vmatpush1.msra.mxu0 %v1901
    %1963 = vmatprep.subr.mxu0 0.0
    %1964 = vmatpush1.msra.mxu0 %v1902
    %1965 = vmatprep.subr.mxu0 0.0
    %1966 = vmatpush1.msra.mxu0 %v1903
    %1967 = vmatprep.subr.mxu0 0.0
    %1968 = vmatpush1.msra.mxu0 %v1904
    %1969 = vmatprep.subr.mxu0 0.0
    %1970 = vmatpush1.msra.mxu0 %v1905
    %1971 = vmatprep.mubr.f32.mxu0 %v1873
    %1972 = vmatmul.mubr.f32.gmra.mrb[0].mxu0 %v1872
    %v1973 = vpop.f32.mrb[0].mxu0
    %v1974 = vadd.f32 %v1906, %v1973
    %v1975 = vpop.f32.mrb[0].mxu0
    %1976 = vdwg.mxu0
    %vm1977 = vcmask 9216
    %v1978 = vsel %vm1977, %v1974, -inf
    %1979 = vmax.xlane.f32.xlu0 %v1978
    %v1980 = vpop.xlane.xlu0 %1979
    %v1981 = vsub.f32 %v1974, %v1980
    %v1982 = vmul.f32 %v1981, 1.442695
    %v1983 = vpow.pop %v1982
    %v1984 = vsel %vm1977, %v1983, 0.0
    %1985 = vadd.xlane.f32.xlu0 %v1984
    %v1986 = vpop.xlane.xlu0 %1985
    %v1987 = vrcp.pop %v1986
    %v1988 = vmul.f32 %v1983, %v1987
    %1989 = vst.msk [vmem:[#allocation2] sm:$0x3] %vm1977, %v1988
    // Predicated region
    $region26: #{ponnet_forward.3} parent=1 // pred_check
      _
    $region27: #{ponnet_forward.3} parent=1 // pred_check_branch
      %1991 = sbr.rel (0) target = $region29
    $region28: #{ponnet_forward.3} parent=1 // pred_region
      %s1993 = ssub.s32 32, 32
      %1994 = vsyncadd [#allocation3], %s1993
      %s1996 = sshll.u32 [#allocation2], 4
      %s1997 = int_to_ptr.vmem [resolvable:$true] %s1996
      %1999 = dma.vmem_to_hbm [thread:$0]  %s1997, 32, %s6, [#allocation3]
    $region29: #{ponnet_forward.3} parent=1 // pred_fallthru
      _
    // Predicated region
    $region30: #{ponnet_forward.3} parent=1 // pred_check
      _
    $region31: #{ponnet_forward.3} parent=1 // pred_check_branch
      %2001 = sbr.rel (0) target = $region33
    $region32: #{ponnet_forward.3} parent=1 // pred_region
      %2002 = dma.done [#allocation3], 32
    $region33: #{ponnet_forward.3} parent=1 // pred_fallthru
      _
    %2003 = vsyncpa [#allocation3], 1

</llo_original>
